<compile_context>
chip_gen: v6e
topology: v6e:2x2x1
jax: 0.10.0
libtpu: 0.0.40
codegen_flags: <defaults>
</compile_context>

<pallas_src>
import functools
import math

import jax
import jax.numpy as jnp
from jax import lax
from jax.experimental import pallas as pl
from jax.experimental.pallas import tpu as pltpu


def _basic_layer_kernel(src_ref, pe_ref,
                        wqk_ref, bqk_ref, wv_ref, bv_ref,
                        wo_ref, bo_ref,
                        ln1_g_ref, ln1_b_ref,
                        w1_ref, b1_ref, w2_ref, b2_ref,
                        ln2_g_ref, ln2_b_ref,
                        out_ref, *,
                        num_heads, group_size, activation, eps):
    f32 = jnp.float32
    mxu = jnp.bfloat16                              # MXU operand dtype

    x = src_ref[...].astype(f32)                    # [R, C]
    pe = pe_ref[...].astype(f32)                    # [R, C]
    rows, c = x.shape
    d = c // num_heads
    gb = rows // group_size                         # groups in this block

    # ---- GroupAttention: q = k = x + pe, v = x ----
    # Wq|Wk fused along the output dim ([C, 2C]); 1/sqrt(d) already folded
    # into the Wq half, so a single 256-wide projection feeds both q and k.
    qk_in = (x + pe).astype(mxu)
    qk = jnp.dot(qk_in, wqk_ref[...], preferred_element_type=f32) + bqk_ref[...]
    v = jnp.dot(x.astype(mxu), wv_ref[...], preferred_element_type=f32) + bv_ref[...]
    q = qk[:, :c]                                   # lane-aligned 128-wide slices
    k = qk[:, c:]

    # Per-head attention; each head's result is folded straight into the
    # out-projection and accumulated into a full-width f32 value -> no VMEM
    # scratch slab, no masked 16-lane stores.
    ao = jnp.zeros((rows, c), f32)
    for h in range(num_heads):
        lo = h * d
        qh = q[:, lo:lo + d].reshape(gb, group_size, d).astype(mxu)
        kh = k[:, lo:lo + d].reshape(gb, group_size, d).astype(mxu)
        vh = v[:, lo:lo + d].reshape(gb, group_size, d).astype(mxu)
        s = jnp.einsum('bqd,bkd->bqk', qh, kh,
                       preferred_element_type=f32)          # [gb, G, G]
        s = s - jnp.max(s, axis=-1, keepdims=True)
        p = jnp.exp(s)
        p = p * pl.reciprocal(jnp.sum(p, axis=-1, keepdims=True), approx=True)
        oh = jnp.einsum('bqk,bkd->bqd', p.astype(mxu), vh,
                        preferred_element_type=f32)          # [gb, G, d]
        ao = ao + jnp.dot(oh.reshape(rows, d).astype(mxu),
                          wo_ref[lo:lo + d, :],
                          preferred_element_type=f32)

    # ---- residual + LayerNorm1 ----
    h1 = x + ao + bo_ref[...]
    mu1 = jnp.mean(h1, axis=-1, keepdims=True)
    var1 = jnp.mean((h1 - mu1) ** 2, axis=-1, keepdims=True)
    y1 = (h1 - mu1) * lax.rsqrt(var1 + eps) * ln1_g_ref[...] + ln1_b_ref[...]

    # ---- MLP: fc2(act(fc1(y1))) ----
    f = jnp.dot(y1.astype(mxu), w1_ref[...], preferred_element_type=f32) + b1_ref[...]
    if activation == 'relu':
        a = jnp.maximum(f, 0.0)
    elif activation == 'gelu':
        # TODO(synk): tanh approximation; PyTorch nn.GELU default is exact erf.
        a = 0.5 * f * (1.0 + jnp.tanh(0.7978845608028654
                                      * (f + 0.044715 * f * f * f)))
    else:
        # TODO(synk): 'glu' halves the width (2C->C) and mismatches fc2 in the
        # original module; not supported here.
        raise NotImplementedError(f"activation {activation!r} not supported")
    f2 = jnp.dot(a.astype(mxu), w2_ref[...], preferred_element_type=f32) + b2_ref[...]

    # ---- residual + LayerNorm2 ----
    h2 = y1 + f2
    mu2 = jnp.mean(h2, axis=-1, keepdims=True)
    var2 = jnp.mean((h2 - mu2) ** 2, axis=-1, keepdims=True)
    y2 = (h2 - mu2) * lax.rsqrt(var2 + eps) * ln2_g_ref[...] + ln2_b_ref[...]

    out_ref[...] = y2.astype(out_ref.dtype)


def _vmem_capacity_bytes():
    try:
        return int(pltpu.get_tpu_info().vmem_capacity_bytes)
    except Exception:
        return 64 * 1024 * 1024        # conservative (v7x-sized) fallback


def _pick_target_rows(channels, vmem_bytes):
    """Rows per block sized so the f32 intermediates + double-buffered streams
    fit comfortably in VMEM on this generation (v7x: 64 MiB, v5e/v6e: 128 MiB)."""
    # ~ double-buffered src/pe/out streams (3*2) + ~10 [rows,C] f32
    #   intermediates + 2 [rows,2C] MLP intermediates, all f32.
    per_row_bytes = (3 * 2 + 10 + 2 * 2) * channels * 4
    budget = vmem_bytes // 6
    return int(max(64, min(2048, budget // per_row_bytes)))


def _pick_groups_per_block(num_groups, group_size, target_rows):
    """Largest divisor of num_groups with rows <= target_rows and rows % 8 == 0
    (sublane constraint), preferring >= 4 grid steps (keeps both v7x
    TensorCores busy and lets src/pe/out prefetch overlap compute)."""
    divisors = [g for g in range(1, num_groups + 1) if num_groups % g == 0]
    valid = [g for g in divisors
             if (g * group_size) % 8 == 0 or g == num_groups]
    for min_steps in (4, 2, 1):
        cand = [g for g in valid
                if num_groups // g >= min_steps and g * group_size <= target_rows]
        if cand:
            return max(cand)
    return min(valid)


def _full_block(arr):
    zeros = (0,) * arr.ndim
    return pl.BlockSpec(arr.shape, lambda i: zeros)


def basic_layer_forward(src, pe, params, *, num_heads, group_size,
                        activation='relu', eps=1e-5, groups_per_block=None,
                        out_dtype=None, matmul_dtype=jnp.bfloat16):
    """Pallas implementation of BasicLayer.forward(src, pe)."""
    n, c = src.shape
    assert c % num_heads == 0
    # Same implicit requirement as the PyTorch .view(batch, group_size, -1).
    assert n % group_size == 0, "pad rows to a multiple of group_size"
    num_groups = n // group_size
    d = c // num_heads

    vmem_bytes = _vmem_capacity_bytes()
    if groups_per_block is None:
        groups_per_block = _pick_groups_per_block(
            num_groups, group_size, _pick_target_rows(c, vmem_bytes))
    assert num_groups % groups_per_block == 0
    rows = groups_per_block * group_size
    assert rows % 8 == 0 or rows == n
    out_dtype = out_dtype or src.dtype

    # ---- one-time weight prep (plain JAX, outside the kernel) ----
    f32 = jnp.float32
    scale = 1.0 / math.sqrt(d)                # softmax scale folded into Wq/bq
    wq = params['wq'].astype(f32) * scale
    bq = params['bq'].astype(f32) * scale
    wqk = jnp.concatenate([wq, params['wk'].astype(f32)], axis=1)    # [C, 2C]
    bqk = jnp.concatenate([bq, params['bk'].astype(f32)], axis=1)    # [1, 2C]
    weights = [
        wqk.astype(matmul_dtype), bqk,
        params['wv'].astype(matmul_dtype), params['bv'].astype(f32),
        params['wo'].astype(matmul_dtype), params['bo'].astype(f32),
        params['ln1_g'].astype(f32), params['ln1_b'].astype(f32),
        params['w1'].astype(matmul_dtype), params['b1'].astype(f32),
        params['w2'].astype(matmul_dtype), params['b2'].astype(f32),
        params['ln2_g'].astype(f32), params['ln2_b'].astype(f32),
    ]

    # TODO(synk): @auto_fp16 autocast is approximated by bf16 MXU operands with
    # f32 accumulation; src/pe/out could also be streamed as bf16 if the
    # caller's tolerance allows.
    kernel = functools.partial(
        _basic_layer_kernel,
        num_heads=num_heads,
        group_size=group_size,
        activation=activation,
        eps=float(eps),
    )

    row_spec = pl.BlockSpec((rows, c), lambda i: (i, 0))
    weight_specs = [_full_block(w) for w in weights]

    return pl.pallas_call(
        kernel,
        out_shape=jax.ShapeDtypeStruct((n, c), out_dtype),
        grid_spec=pltpu.PrefetchScalarGridSpec(
            num_scalar_prefetch=0,
            grid=(n // rows,),
            in_specs=[row_spec, row_spec] + weight_specs,
            out_specs=row_spec,
        ),
        compiler_params=pltpu.CompilerParams(
            dimension_semantics=("parallel",),
            vmem_limit_bytes=int(min(vmem_bytes * 3 // 4, 100 * 1024 * 1024))),
    )(src, pe, *weights)


def _reference(src, pe, params, *, num_heads, group_size, activation, eps=1e-5):
    """Plain-JAX f32 transcription of the PyTorch BasicLayer forward."""
    n, c = src.shape
    d = c // num_heads
    b = n // group_size
    with jax.default_matmul_precision("float32"):
        x = src.astype(jnp.float32)
        pe = pe.astype(jnp.float32)
        qk_in = x + pe
        q = qk_in @ params['wq'] + params['bq']
        k = qk_in @ params['wk'] + params['bk']
        v = x @ params['wv'] + params['bv']

        def split_heads(t):
            return t.reshape(b, group_size, num_heads, d).transpose(0, 2, 1, 3)

        qh, kh, vh = split_heads(q), split_heads(k), split_heads(v)
        s = jnp.einsum('bhqd,bhkd->bhqk', qh, kh) / math.sqrt(d)
        p = jax.nn.softmax(s, axis=-1)
        o = jnp.einsum('bhqk,bhkd->bhqd', p, vh)
        o = o.transpose(0, 2, 1, 3).reshape(n, c)
        ao = o @ params['wo'] + params['bo']

        def layernorm(t, g, bb):
            mu = jnp.mean(t, axis=-1, keepdims=True)
            var = jnp.mean((t - mu) ** 2, axis=-1, keepdims=True)
            return (t - mu) * lax.rsqrt(var + eps) * g + bb

        y1 = layernorm(x + ao, params['ln1_g'], params['ln1_b'])
        f = y1 @ params['w1'] + params['b1']
        if activation == 'relu':
            a = jnp.maximum(f, 0.0)
        elif activation == 'gelu':
            a = 0.5 * f * (1.0 + jnp.tanh(0.7978845608028654
                                          * (f + 0.044715 * f ** 3)))
        else:
            raise NotImplementedError(activation)
        f2 = a @ params['w2'] + params['b2']
        y2 = layernorm(y1 + f2, params['ln2_g'], params['ln2_b'])
    return y2


if __name__ == "__main__":
    # Small, deterministic config consistent with the module.
    C = 128            # in_channels (lane-dense output)
    H = 8              # num_heads  -> head_dim 16
    G = 16             # group_size
    N = 64             # rows (4 groups)
    activation = 'relu'

    key = jax.random.PRNGKey(0)
    keys = jax.random.split(key, 20)

    def rnd(k, shape, s=0.05):
        return jax.random.normal(k, shape, jnp.float32) * s

    src = jax.random.normal(keys[0], (N, C), jnp.float32)
    pe = jax.random.normal(keys[1], (N, C), jnp.float32)

    params = dict(
        wq=rnd(keys[2], (C, C)), wk=rnd(keys[3], (C, C)), wv=rnd(keys[4], (C, C)),
        bq=rnd(keys[5], (1, C)), bk=rnd(keys[6], (1, C)), bv=rnd(keys[7], (1, C)),
        wo=rnd(keys[8], (C, C)), bo=rnd(keys[9], (1, C)),
        ln1_g=1.0 + rnd(keys[10], (1, C)), ln1_b=rnd(keys[11], (1, C)),
        w1=rnd(keys[12], (C, 2 * C)), b1=rnd(keys[13], (1, 2 * C)),
        w2=rnd(keys[14], (2 * C, C)), b2=rnd(keys[15], (1, C)),
        ln2_g=1.0 + rnd(keys[16], (1, C)), ln2_b=rnd(keys[17], (1, C)),
    )

    out = basic_layer_forward(
        src, pe, params,
        num_heads=H, group_size=G, activation=activation,
    )
    out = jax.block_until_ready(out)

    ref = _reference(src, pe, params, num_heads=H, group_size=G,
                     activation=activation)

    assert out.shape == (N, C)
    assert out.dtype == jnp.float32
    # Tolerance accounts for bf16 MXU operands (f32 accumulation) and the
    # approx-reciprocal softmax normalization vs. the full-f32 reference.
    assert jnp.allclose(out, ref, atol=2e-2, rtol=2e-2), (
        float(jnp.max(jnp.abs(out - ref))))

    print("KERNEL_OK")
</pallas_src>

<mosaic_0001>
module attributes {stable_mosaic.version = 11 : i64} {
  func.func @_basic_layer_kernel(%arg0: i32, %arg1: memref<16x128xf32, #tpu.memory_space<vmem>>, %arg2: memref<16x128xf32, #tpu.memory_space<vmem>>, %arg3: memref<128x256xbf16, #tpu.memory_space<vmem>>, %arg4: memref<1x256xf32, #tpu.memory_space<vmem>>, %arg5: memref<128x128xbf16, #tpu.memory_space<vmem>>, %arg6: memref<1x128xf32, #tpu.memory_space<vmem>>, %arg7: memref<128x128xbf16, #tpu.memory_space<vmem>>, %arg8: memref<1x128xf32, #tpu.memory_space<vmem>>, %arg9: memref<1x128xf32, #tpu.memory_space<vmem>>, %arg10: memref<1x128xf32, #tpu.memory_space<vmem>>, %arg11: memref<128x256xbf16, #tpu.memory_space<vmem>>, %arg12: memref<1x256xf32, #tpu.memory_space<vmem>>, %arg13: memref<256x128xbf16, #tpu.memory_space<vmem>>, %arg14: memref<1x128xf32, #tpu.memory_space<vmem>>, %arg15: memref<1x128xf32, #tpu.memory_space<vmem>>, %arg16: memref<1x128xf32, #tpu.memory_space<vmem>>, %arg17: memref<16x128xf32, #tpu.memory_space<vmem>>) attributes {dimension_semantics = [#tpu.dimension_semantics<parallel>], iteration_bounds = array<i64: 4>, scalar_prefetch = 0 : i64, scratch_operands = 0 : i64, tpu.core_type = #tpu.core_type<tc>, window_params = [{transform_indices = @transform_0, window_bounds = array<i64: 16, 128>}, {transform_indices = @transform_1, window_bounds = array<i64: 16, 128>}, {pipeline_mode = #tpu.pipeline_mode<synchronous>, transform_indices = @transform_2, window_bounds = array<i64: 128, 256>}, {pipeline_mode = #tpu.pipeline_mode<synchronous>, transform_indices = @transform_3, window_bounds = array<i64: 1, 256>}, {pipeline_mode = #tpu.pipeline_mode<synchronous>, transform_indices = @transform_4, window_bounds = array<i64: 128, 128>}, {pipeline_mode = #tpu.pipeline_mode<synchronous>, transform_indices = @transform_5, window_bounds = array<i64: 1, 128>}, {pipeline_mode = #tpu.pipeline_mode<synchronous>, transform_indices = @transform_6, window_bounds = array<i64: 128, 128>}, {pipeline_mode = #tpu.pipeline_mode<synchronous>, transform_indices = @transform_7, window_bounds = array<i64: 1, 128>}, {pipeline_mode = #tpu.pipeline_mode<synchronous>, transform_indices = @transform_8, window_bounds = array<i64: 1, 128>}, {pipeline_mode = #tpu.pipeline_mode<synchronous>, transform_indices = @transform_9, window_bounds = array<i64: 1, 128>}, {pipeline_mode = #tpu.pipeline_mode<synchronous>, transform_indices = @transform_10, window_bounds = array<i64: 128, 256>}, {pipeline_mode = #tpu.pipeline_mode<synchronous>, transform_indices = @transform_11, window_bounds = array<i64: 1, 256>}, {pipeline_mode = #tpu.pipeline_mode<synchronous>, transform_indices = @transform_12, window_bounds = array<i64: 256, 128>}, {pipeline_mode = #tpu.pipeline_mode<synchronous>, transform_indices = @transform_13, window_bounds = array<i64: 1, 128>}, {pipeline_mode = #tpu.pipeline_mode<synchronous>, transform_indices = @transform_14, window_bounds = array<i64: 1, 128>}, {pipeline_mode = #tpu.pipeline_mode<synchronous>, transform_indices = @transform_15, window_bounds = array<i64: 1, 128>}, {transform_indices = @transform_16, window_bounds = array<i64: 16, 128>}]} {
    %c0 = arith.constant 0 : index
    %c0_0 = arith.constant 0 : index
    %0 = vector.load %arg1[%c0, %c0_0] : memref<16x128xf32, #tpu.memory_space<vmem>>, vector<16x128xf32>
    %c0_1 = arith.constant 0 : index
    %c0_2 = arith.constant 0 : index
    %1 = vector.load %arg2[%c0_1, %c0_2] : memref<16x128xf32, #tpu.memory_space<vmem>>, vector<16x128xf32>
    %2 = arith.addf %0, %1 : vector<16x128xf32>
    %3 = arith.truncf %2 : vector<16x128xf32> to vector<16x128xbf16>
    %c0_3 = arith.constant 0 : index
    %c0_4 = arith.constant 0 : index
    %4 = vector.load %arg3[%c0_3, %c0_4] : memref<128x256xbf16, #tpu.memory_space<vmem>>, vector<128x256xbf16>
    %cst = arith.constant dense<0.000000e+00> : vector<16x256xf32>
    %5 = tpu.matmul %3, %4, %cst {dimension_numbers = #tpu.dot_dimension_numbers<[1], [0], [0], [1], [0, 0, 1, 1], [], []>} : vector<16x128xbf16>, vector<128x256xbf16>, vector<16x256xf32> -> vector<16x256xf32>
    %c0_5 = arith.constant 0 : index
    %c0_6 = arith.constant 0 : index
    %6 = vector.load %arg4[%c0_5, %c0_6] : memref<1x256xf32, #tpu.memory_space<vmem>>, vector<1x256xf32>
    %7 = vector.broadcast %6 : vector<1x256xf32> to vector<16x256xf32>
    %8 = arith.addf %5, %7 : vector<16x256xf32>
    %9 = arith.truncf %0 : vector<16x128xf32> to vector<16x128xbf16>
    %c0_7 = arith.constant 0 : index
    %c0_8 = arith.constant 0 : index
    %10 = vector.load %arg5[%c0_7, %c0_8] : memref<128x128xbf16, #tpu.memory_space<vmem>>, vector<128x128xbf16>
    %cst_9 = arith.constant dense<0.000000e+00> : vector<16x128xf32>
    %11 = tpu.matmul %9, %10, %cst_9 {dimension_numbers = #tpu.dot_dimension_numbers<[1], [0], [0], [1], [0, 0, 1, 1], [], []>} : vector<16x128xbf16>, vector<128x128xbf16>, vector<16x128xf32> -> vector<16x128xf32>
    %c0_10 = arith.constant 0 : index
    %c0_11 = arith.constant 0 : index
    %12 = vector.load %arg6[%c0_10, %c0_11] : memref<1x128xf32, #tpu.memory_space<vmem>>, vector<1x128xf32>
    %13 = vector.broadcast %12 : vector<1x128xf32> to vector<16x128xf32>
    %14 = arith.addf %11, %13 : vector<16x128xf32>
    %15 = vector.extract_strided_slice %8 {offsets = [0, 0], sizes = [16, 128], strides = [1, 1]} : vector<16x256xf32> to vector<16x128xf32>
    %16 = vector.extract_strided_slice %8 {offsets = [0, 128], sizes = [16, 128], strides = [1, 1]} : vector<16x256xf32> to vector<16x128xf32>
    %cst_12 = arith.constant 0.000000e+00 : f32
    %17 = vector.broadcast %cst_12 : f32 to vector<16x128xf32>
    %18 = vector.extract_strided_slice %15 {offsets = [0, 0], sizes = [16, 16], strides = [1, 1]} : vector<16x128xf32> to vector<16x16xf32>
    %19 = vector.shape_cast %18 : vector<16x16xf32> to vector<1x16x16xf32>
    %20 = arith.truncf %19 : vector<1x16x16xf32> to vector<1x16x16xbf16>
    %21 = vector.extract_strided_slice %16 {offsets = [0, 0], sizes = [16, 16], strides = [1, 1]} : vector<16x128xf32> to vector<16x16xf32>
    %22 = vector.shape_cast %21 : vector<16x16xf32> to vector<1x16x16xf32>
    %23 = arith.truncf %22 : vector<1x16x16xf32> to vector<1x16x16xbf16>
    %24 = vector.extract_strided_slice %14 {offsets = [0, 0], sizes = [16, 16], strides = [1, 1]} : vector<16x128xf32> to vector<16x16xf32>
    %25 = vector.shape_cast %24 : vector<16x16xf32> to vector<1x16x16xf32>
    %26 = arith.truncf %25 : vector<1x16x16xf32> to vector<1x16x16xbf16>
    "tpu.trace_start"() <{level = 10 : i32, message = "bqd,bkd->bqk"}> : () -> ()
    %cst_13 = arith.constant dense<0.000000e+00> : vector<1x16x16xf32>
    %27 = tpu.matmul %20, %23, %cst_13 {dimension_numbers = #tpu.dot_dimension_numbers<[2], [2], [1], [1], [0, 0, 0, 1, 1, 1], [0], [0]>} : vector<1x16x16xbf16>, vector<1x16x16xbf16>, vector<1x16x16xf32> -> vector<1x16x16xf32>
    "tpu.trace_stop"() : () -> ()
    %cst_14 = arith.constant dense<0xFF800000> : vector<1x16xf32>
    %28 = vector.multi_reduction <maximumf>, %27, %cst_14 [2] : vector<1x16x16xf32> to vector<1x16xf32>
    %29 = vector.shape_cast %28 : vector<1x16xf32> to vector<1x16x1xf32>
    %30 = vector.broadcast %29 : vector<1x16x1xf32> to vector<1x16x16xf32>
    %31 = arith.subf %27, %30 : vector<1x16x16xf32>
    %32 = math.exp %31 : vector<1x16x16xf32>
    %cst_15 = arith.constant dense<0.000000e+00> : vector<1x16xf32>
    %33 = vector.multi_reduction <add>, %32, %cst_15 [2] : vector<1x16x16xf32> to vector<1x16xf32>
    %34 = vector.shape_cast %33 : vector<1x16xf32> to vector<1x16x1xf32>
    %35 = tpu.reciprocal %34 {approx = true} : vector<1x16x1xf32> -> vector<1x16x1xf32>
    %36 = vector.broadcast %35 : vector<1x16x1xf32> to vector<1x16x16xf32>
    %37 = arith.mulf %32, %36 : vector<1x16x16xf32>
    %38 = arith.truncf %37 : vector<1x16x16xf32> to vector<1x16x16xbf16>
    "tpu.trace_start"() <{level = 10 : i32, message = "bqk,bkd->bqd"}> : () -> ()
    %cst_16 = arith.constant dense<0.000000e+00> : vector<1x16x16xf32>
    %39 = tpu.matmul %38, %26, %cst_16 {dimension_numbers = #tpu.dot_dimension_numbers<[2], [1], [1], [2], [0, 0, 0, 1, 1, 2], [0], [0]>} : vector<1x16x16xbf16>, vector<1x16x16xbf16>, vector<1x16x16xf32> -> vector<1x16x16xf32>
    "tpu.trace_stop"() : () -> ()
    %40 = vector.shape_cast %39 : vector<1x16x16xf32> to vector<16x16xf32>
    %41 = arith.truncf %40 : vector<16x16xf32> to vector<16x16xbf16>
    %c0_17 = arith.constant 0 : index
    %c0_18 = arith.constant 0 : index
    %42 = vector.load %arg7[%c0_17, %c0_18] : memref<128x128xbf16, #tpu.memory_space<vmem>>, vector<16x128xbf16>
    %cst_19 = arith.constant dense<0.000000e+00> : vector<16x128xf32>
    %43 = tpu.matmul %41, %42, %cst_19 {dimension_numbers = #tpu.dot_dimension_numbers<[1], [0], [0], [1], [0, 0, 1, 1], [], []>} : vector<16x16xbf16>, vector<16x128xbf16>, vector<16x128xf32> -> vector<16x128xf32>
    %44 = arith.addf %17, %43 : vector<16x128xf32>
    %45 = vector.extract_strided_slice %15 {offsets = [0, 16], sizes = [16, 16], strides = [1, 1]} : vector<16x128xf32> to vector<16x16xf32>
    %46 = vector.shape_cast %45 : vector<16x16xf32> to vector<1x16x16xf32>
    %47 = arith.truncf %46 : vector<1x16x16xf32> to vector<1x16x16xbf16>
    %48 = vector.extract_strided_slice %16 {offsets = [0, 16], sizes = [16, 16], strides = [1, 1]} : vector<16x128xf32> to vector<16x16xf32>
    %49 = vector.shape_cast %48 : vector<16x16xf32> to vector<1x16x16xf32>
    %50 = arith.truncf %49 : vector<1x16x16xf32> to vector<1x16x16xbf16>
    %51 = vector.extract_strided_slice %14 {offsets = [0, 16], sizes = [16, 16], strides = [1, 1]} : vector<16x128xf32> to vector<16x16xf32>
    %52 = vector.shape_cast %51 : vector<16x16xf32> to vector<1x16x16xf32>
    %53 = arith.truncf %52 : vector<1x16x16xf32> to vector<1x16x16xbf16>
    "tpu.trace_start"() <{level = 10 : i32, message = "bqd,bkd->bqk"}> : () -> ()
    %cst_20 = arith.constant dense<0.000000e+00> : vector<1x16x16xf32>
    %54 = tpu.matmul %47, %50, %cst_20 {dimension_numbers = #tpu.dot_dimension_numbers<[2], [2], [1], [1], [0, 0, 0, 1, 1, 1], [0], [0]>} : vector<1x16x16xbf16>, vector<1x16x16xbf16>, vector<1x16x16xf32> -> vector<1x16x16xf32>
    "tpu.trace_stop"() : () -> ()
    %cst_21 = arith.constant dense<0xFF800000> : vector<1x16xf32>
    %55 = vector.multi_reduction <maximumf>, %54, %cst_21 [2] : vector<1x16x16xf32> to vector<1x16xf32>
    %56 = vector.shape_cast %55 : vector<1x16xf32> to vector<1x16x1xf32>
    %57 = vector.broadcast %56 : vector<1x16x1xf32> to vector<1x16x16xf32>
    %58 = arith.subf %54, %57 : vector<1x16x16xf32>
    %59 = math.exp %58 : vector<1x16x16xf32>
    %cst_22 = arith.constant dense<0.000000e+00> : vector<1x16xf32>
    %60 = vector.multi_reduction <add>, %59, %cst_22 [2] : vector<1x16x16xf32> to vector<1x16xf32>
    %61 = vector.shape_cast %60 : vector<1x16xf32> to vector<1x16x1xf32>
    %62 = tpu.reciprocal %61 {approx = true} : vector<1x16x1xf32> -> vector<1x16x1xf32>
    %63 = vector.broadcast %62 : vector<1x16x1xf32> to vector<1x16x16xf32>
    %64 = arith.mulf %59, %63 : vector<1x16x16xf32>
    %65 = arith.truncf %64 : vector<1x16x16xf32> to vector<1x16x16xbf16>
    "tpu.trace_start"() <{level = 10 : i32, message = "bqk,bkd->bqd"}> : () -> ()
    %cst_23 = arith.constant dense<0.000000e+00> : vector<1x16x16xf32>
    %66 = tpu.matmul %65, %53, %cst_23 {dimension_numbers = #tpu.dot_dimension_numbers<[2], [1], [1], [2], [0, 0, 0, 1, 1, 2], [0], [0]>} : vector<1x16x16xbf16>, vector<1x16x16xbf16>, vector<1x16x16xf32> -> vector<1x16x16xf32>
    "tpu.trace_stop"() : () -> ()
    %67 = vector.shape_cast %66 : vector<1x16x16xf32> to vector<16x16xf32>
    %68 = arith.truncf %67 : vector<16x16xf32> to vector<16x16xbf16>
    %c16 = arith.constant 16 : index
    %c0_24 = arith.constant 0 : index
    %69 = vector.load %arg7[%c16, %c0_24] : memref<128x128xbf16, #tpu.memory_space<vmem>>, vector<16x128xbf16>
    %cst_25 = arith.constant dense<0.000000e+00> : vector<16x128xf32>
    %70 = tpu.matmul %68, %69, %cst_25 {dimension_numbers = #tpu.dot_dimension_numbers<[1], [0], [0], [1], [0, 0, 1, 1], [], []>} : vector<16x16xbf16>, vector<16x128xbf16>, vector<16x128xf32> -> vector<16x128xf32>
    %71 = arith.addf %44, %70 : vector<16x128xf32>
    %72 = vector.extract_strided_slice %15 {offsets = [0, 32], sizes = [16, 16], strides = [1, 1]} : vector<16x128xf32> to vector<16x16xf32>
    %73 = vector.shape_cast %72 : vector<16x16xf32> to vector<1x16x16xf32>
    %74 = arith.truncf %73 : vector<1x16x16xf32> to vector<1x16x16xbf16>
    %75 = vector.extract_strided_slice %16 {offsets = [0, 32], sizes = [16, 16], strides = [1, 1]} : vector<16x128xf32> to vector<16x16xf32>
    %76 = vector.shape_cast %75 : vector<16x16xf32> to vector<1x16x16xf32>
    %77 = arith.truncf %76 : vector<1x16x16xf32> to vector<1x16x16xbf16>
    %78 = vector.extract_strided_slice %14 {offsets = [0, 32], sizes = [16, 16], strides = [1, 1]} : vector<16x128xf32> to vector<16x16xf32>
    %79 = vector.shape_cast %78 : vector<16x16xf32> to vector<1x16x16xf32>
    %80 = arith.truncf %79 : vector<1x16x16xf32> to vector<1x16x16xbf16>
    "tpu.trace_start"() <{level = 10 : i32, message = "bqd,bkd->bqk"}> : () -> ()
    %cst_26 = arith.constant dense<0.000000e+00> : vector<1x16x16xf32>
    %81 = tpu.matmul %74, %77, %cst_26 {dimension_numbers = #tpu.dot_dimension_numbers<[2], [2], [1], [1], [0, 0, 0, 1, 1, 1], [0], [0]>} : vector<1x16x16xbf16>, vector<1x16x16xbf16>, vector<1x16x16xf32> -> vector<1x16x16xf32>
    "tpu.trace_stop"() : () -> ()
    %cst_27 = arith.constant dense<0xFF800000> : vector<1x16xf32>
    %82 = vector.multi_reduction <maximumf>, %81, %cst_27 [2] : vector<1x16x16xf32> to vector<1x16xf32>
    %83 = vector.shape_cast %82 : vector<1x16xf32> to vector<1x16x1xf32>
    %84 = vector.broadcast %83 : vector<1x16x1xf32> to vector<1x16x16xf32>
    %85 = arith.subf %81, %84 : vector<1x16x16xf32>
    %86 = math.exp %85 : vector<1x16x16xf32>
    %cst_28 = arith.constant dense<0.000000e+00> : vector<1x16xf32>
    %87 = vector.multi_reduction <add>, %86, %cst_28 [2] : vector<1x16x16xf32> to vector<1x16xf32>
    %88 = vector.shape_cast %87 : vector<1x16xf32> to vector<1x16x1xf32>
    %89 = tpu.reciprocal %88 {approx = true} : vector<1x16x1xf32> -> vector<1x16x1xf32>
    %90 = vector.broadcast %89 : vector<1x16x1xf32> to vector<1x16x16xf32>
    %91 = arith.mulf %86, %90 : vector<1x16x16xf32>
    %92 = arith.truncf %91 : vector<1x16x16xf32> to vector<1x16x16xbf16>
    "tpu.trace_start"() <{level = 10 : i32, message = "bqk,bkd->bqd"}> : () -> ()
    %cst_29 = arith.constant dense<0.000000e+00> : vector<1x16x16xf32>
    %93 = tpu.matmul %92, %80, %cst_29 {dimension_numbers = #tpu.dot_dimension_numbers<[2], [1], [1], [2], [0, 0, 0, 1, 1, 2], [0], [0]>} : vector<1x16x16xbf16>, vector<1x16x16xbf16>, vector<1x16x16xf32> -> vector<1x16x16xf32>
    "tpu.trace_stop"() : () -> ()
    %94 = vector.shape_cast %93 : vector<1x16x16xf32> to vector<16x16xf32>
    %95 = arith.truncf %94 : vector<16x16xf32> to vector<16x16xbf16>
    %c32 = arith.constant 32 : index
    %c0_30 = arith.constant 0 : index
    %96 = vector.load %arg7[%c32, %c0_30] : memref<128x128xbf16, #tpu.memory_space<vmem>>, vector<16x128xbf16>
    %cst_31 = arith.constant dense<0.000000e+00> : vector<16x128xf32>
    %97 = tpu.matmul %95, %96, %cst_31 {dimension_numbers = #tpu.dot_dimension_numbers<[1], [0], [0], [1], [0, 0, 1, 1], [], []>} : vector<16x16xbf16>, vector<16x128xbf16>, vector<16x128xf32> -> vector<16x128xf32>
    %98 = arith.addf %71, %97 : vector<16x128xf32>
    %99 = vector.extract_strided_slice %15 {offsets = [0, 48], sizes = [16, 16], strides = [1, 1]} : vector<16x128xf32> to vector<16x16xf32>
    %100 = vector.shape_cast %99 : vector<16x16xf32> to vector<1x16x16xf32>
    %101 = arith.truncf %100 : vector<1x16x16xf32> to vector<1x16x16xbf16>
    %102 = vector.extract_strided_slice %16 {offsets = [0, 48], sizes = [16, 16], strides = [1, 1]} : vector<16x128xf32> to vector<16x16xf32>
    %103 = vector.shape_cast %102 : vector<16x16xf32> to vector<1x16x16xf32>
    %104 = arith.truncf %103 : vector<1x16x16xf32> to vector<1x16x16xbf16>
    %105 = vector.extract_strided_slice %14 {offsets = [0, 48], sizes = [16, 16], strides = [1, 1]} : vector<16x128xf32> to vector<16x16xf32>
    %106 = vector.shape_cast %105 : vector<16x16xf32> to vector<1x16x16xf32>
    %107 = arith.truncf %106 : vector<1x16x16xf32> to vector<1x16x16xbf16>
    "tpu.trace_start"() <{level = 10 : i32, message = "bqd,bkd->bqk"}> : () -> ()
    %cst_32 = arith.constant dense<0.000000e+00> : vector<1x16x16xf32>
    %108 = tpu.matmul %101, %104, %cst_32 {dimension_numbers = #tpu.dot_dimension_numbers<[2], [2], [1], [1], [0, 0, 0, 1, 1, 1], [0], [0]>} : vector<1x16x16xbf16>, vector<1x16x16xbf16>, vector<1x16x16xf32> -> vector<1x16x16xf32>
    "tpu.trace_stop"() : () -> ()
    %cst_33 = arith.constant dense<0xFF800000> : vector<1x16xf32>
    %109 = vector.multi_reduction <maximumf>, %108, %cst_33 [2] : vector<1x16x16xf32> to vector<1x16xf32>
    %110 = vector.shape_cast %109 : vector<1x16xf32> to vector<1x16x1xf32>
    %111 = vector.broadcast %110 : vector<1x16x1xf32> to vector<1x16x16xf32>
    %112 = arith.subf %108, %111 : vector<1x16x16xf32>
    %113 = math.exp %112 : vector<1x16x16xf32>
    %cst_34 = arith.constant dense<0.000000e+00> : vector<1x16xf32>
    %114 = vector.multi_reduction <add>, %113, %cst_34 [2] : vector<1x16x16xf32> to vector<1x16xf32>
    %115 = vector.shape_cast %114 : vector<1x16xf32> to vector<1x16x1xf32>
    %116 = tpu.reciprocal %115 {approx = true} : vector<1x16x1xf32> -> vector<1x16x1xf32>
    %117 = vector.broadcast %116 : vector<1x16x1xf32> to vector<1x16x16xf32>
    %118 = arith.mulf %113, %117 : vector<1x16x16xf32>
    %119 = arith.truncf %118 : vector<1x16x16xf32> to vector<1x16x16xbf16>
    "tpu.trace_start"() <{level = 10 : i32, message = "bqk,bkd->bqd"}> : () -> ()
    %cst_35 = arith.constant dense<0.000000e+00> : vector<1x16x16xf32>
    %120 = tpu.matmul %119, %107, %cst_35 {dimension_numbers = #tpu.dot_dimension_numbers<[2], [1], [1], [2], [0, 0, 0, 1, 1, 2], [0], [0]>} : vector<1x16x16xbf16>, vector<1x16x16xbf16>, vector<1x16x16xf32> -> vector<1x16x16xf32>
    "tpu.trace_stop"() : () -> ()
    %121 = vector.shape_cast %120 : vector<1x16x16xf32> to vector<16x16xf32>
    %122 = arith.truncf %121 : vector<16x16xf32> to vector<16x16xbf16>
    %c48 = arith.constant 48 : index
    %c0_36 = arith.constant 0 : index
    %123 = vector.load %arg7[%c48, %c0_36] : memref<128x128xbf16, #tpu.memory_space<vmem>>, vector<16x128xbf16>
    %cst_37 = arith.constant dense<0.000000e+00> : vector<16x128xf32>
    %124 = tpu.matmul %122, %123, %cst_37 {dimension_numbers = #tpu.dot_dimension_numbers<[1], [0], [0], [1], [0, 0, 1, 1], [], []>} : vector<16x16xbf16>, vector<16x128xbf16>, vector<16x128xf32> -> vector<16x128xf32>
    %125 = arith.addf %98, %124 : vector<16x128xf32>
    %126 = vector.extract_strided_slice %15 {offsets = [0, 64], sizes = [16, 16], strides = [1, 1]} : vector<16x128xf32> to vector<16x16xf32>
    %127 = vector.shape_cast %126 : vector<16x16xf32> to vector<1x16x16xf32>
    %128 = arith.truncf %127 : vector<1x16x16xf32> to vector<1x16x16xbf16>
    %129 = vector.extract_strided_slice %16 {offsets = [0, 64], sizes = [16, 16], strides = [1, 1]} : vector<16x128xf32> to vector<16x16xf32>
    %130 = vector.shape_cast %129 : vector<16x16xf32> to vector<1x16x16xf32>
    %131 = arith.truncf %130 : vector<1x16x16xf32> to vector<1x16x16xbf16>
    %132 = vector.extract_strided_slice %14 {offsets = [0, 64], sizes = [16, 16], strides = [1, 1]} : vector<16x128xf32> to vector<16x16xf32>
    %133 = vector.shape_cast %132 : vector<16x16xf32> to vector<1x16x16xf32>
    %134 = arith.truncf %133 : vector<1x16x16xf32> to vector<1x16x16xbf16>
    "tpu.trace_start"() <{level = 10 : i32, message = "bqd,bkd->bqk"}> : () -> ()
    %cst_38 = arith.constant dense<0.000000e+00> : vector<1x16x16xf32>
    %135 = tpu.matmul %128, %131, %cst_38 {dimension_numbers = #tpu.dot_dimension_numbers<[2], [2], [1], [1], [0, 0, 0, 1, 1, 1], [0], [0]>} : vector<1x16x16xbf16>, vector<1x16x16xbf16>, vector<1x16x16xf32> -> vector<1x16x16xf32>
    "tpu.trace_stop"() : () -> ()
    %cst_39 = arith.constant dense<0xFF800000> : vector<1x16xf32>
    %136 = vector.multi_reduction <maximumf>, %135, %cst_39 [2] : vector<1x16x16xf32> to vector<1x16xf32>
    %137 = vector.shape_cast %136 : vector<1x16xf32> to vector<1x16x1xf32>
    %138 = vector.broadcast %137 : vector<1x16x1xf32> to vector<1x16x16xf32>
    %139 = arith.subf %135, %138 : vector<1x16x16xf32>
    %140 = math.exp %139 : vector<1x16x16xf32>
    %cst_40 = arith.constant dense<0.000000e+00> : vector<1x16xf32>
    %141 = vector.multi_reduction <add>, %140, %cst_40 [2] : vector<1x16x16xf32> to vector<1x16xf32>
    %142 = vector.shape_cast %141 : vector<1x16xf32> to vector<1x16x1xf32>
    %143 = tpu.reciprocal %142 {approx = true} : vector<1x16x1xf32> -> vector<1x16x1xf32>
    %144 = vector.broadcast %143 : vector<1x16x1xf32> to vector<1x16x16xf32>
    %145 = arith.mulf %140, %144 : vector<1x16x16xf32>
    %146 = arith.truncf %145 : vector<1x16x16xf32> to vector<1x16x16xbf16>
    "tpu.trace_start"() <{level = 10 : i32, message = "bqk,bkd->bqd"}> : () -> ()
    %cst_41 = arith.constant dense<0.000000e+00> : vector<1x16x16xf32>
    %147 = tpu.matmul %146, %134, %cst_41 {dimension_numbers = #tpu.dot_dimension_numbers<[2], [1], [1], [2], [0, 0, 0, 1, 1, 2], [0], [0]>} : vector<1x16x16xbf16>, vector<1x16x16xbf16>, vector<1x16x16xf32> -> vector<1x16x16xf32>
    "tpu.trace_stop"() : () -> ()
    %148 = vector.shape_cast %147 : vector<1x16x16xf32> to vector<16x16xf32>
    %149 = arith.truncf %148 : vector<16x16xf32> to vector<16x16xbf16>
    %c64 = arith.constant 64 : index
    %c0_42 = arith.constant 0 : index
    %150 = vector.load %arg7[%c64, %c0_42] : memref<128x128xbf16, #tpu.memory_space<vmem>>, vector<16x128xbf16>
    %cst_43 = arith.constant dense<0.000000e+00> : vector<16x128xf32>
    %151 = tpu.matmul %149, %150, %cst_43 {dimension_numbers = #tpu.dot_dimension_numbers<[1], [0], [0], [1], [0, 0, 1, 1], [], []>} : vector<16x16xbf16>, vector<16x128xbf16>, vector<16x128xf32> -> vector<16x128xf32>
    %152 = arith.addf %125, %151 : vector<16x128xf32>
    %153 = vector.extract_strided_slice %15 {offsets = [0, 80], sizes = [16, 16], strides = [1, 1]} : vector<16x128xf32> to vector<16x16xf32>
    %154 = vector.shape_cast %153 : vector<16x16xf32> to vector<1x16x16xf32>
    %155 = arith.truncf %154 : vector<1x16x16xf32> to vector<1x16x16xbf16>
    %156 = vector.extract_strided_slice %16 {offsets = [0, 80], sizes = [16, 16], strides = [1, 1]} : vector<16x128xf32> to vector<16x16xf32>
    %157 = vector.shape_cast %156 : vector<16x16xf32> to vector<1x16x16xf32>
    %158 = arith.truncf %157 : vector<1x16x16xf32> to vector<1x16x16xbf16>
    %159 = vector.extract_strided_slice %14 {offsets = [0, 80], sizes = [16, 16], strides = [1, 1]} : vector<16x128xf32> to vector<16x16xf32>
    %160 = vector.shape_cast %159 : vector<16x16xf32> to vector<1x16x16xf32>
    %161 = arith.truncf %160 : vector<1x16x16xf32> to vector<1x16x16xbf16>
    "tpu.trace_start"() <{level = 10 : i32, message = "bqd,bkd->bqk"}> : () -> ()
    %cst_44 = arith.constant dense<0.000000e+00> : vector<1x16x16xf32>
    %162 = tpu.matmul %155, %158, %cst_44 {dimension_numbers = #tpu.dot_dimension_numbers<[2], [2], [1], [1], [0, 0, 0, 1, 1, 1], [0], [0]>} : vector<1x16x16xbf16>, vector<1x16x16xbf16>, vector<1x16x16xf32> -> vector<1x16x16xf32>
    "tpu.trace_stop"() : () -> ()
    %cst_45 = arith.constant dense<0xFF800000> : vector<1x16xf32>
    %163 = vector.multi_reduction <maximumf>, %162, %cst_45 [2] : vector<1x16x16xf32> to vector<1x16xf32>
    %164 = vector.shape_cast %163 : vector<1x16xf32> to vector<1x16x1xf32>
    %165 = vector.broadcast %164 : vector<1x16x1xf32> to vector<1x16x16xf32>
    %166 = arith.subf %162, %165 : vector<1x16x16xf32>
    %167 = math.exp %166 : vector<1x16x16xf32>
    %cst_46 = arith.constant dense<0.000000e+00> : vector<1x16xf32>
    %168 = vector.multi_reduction <add>, %167, %cst_46 [2] : vector<1x16x16xf32> to vector<1x16xf32>
    %169 = vector.shape_cast %168 : vector<1x16xf32> to vector<1x16x1xf32>
    %170 = tpu.reciprocal %169 {approx = true} : vector<1x16x1xf32> -> vector<1x16x1xf32>
    %171 = vector.broadcast %170 : vector<1x16x1xf32> to vector<1x16x16xf32>
    %172 = arith.mulf %167, %171 : vector<1x16x16xf32>
    %173 = arith.truncf %172 : vector<1x16x16xf32> to vector<1x16x16xbf16>
    "tpu.trace_start"() <{level = 10 : i32, message = "bqk,bkd->bqd"}> : () -> ()
    %cst_47 = arith.constant dense<0.000000e+00> : vector<1x16x16xf32>
    %174 = tpu.matmul %173, %161, %cst_47 {dimension_numbers = #tpu.dot_dimension_numbers<[2], [1], [1], [2], [0, 0, 0, 1, 1, 2], [0], [0]>} : vector<1x16x16xbf16>, vector<1x16x16xbf16>, vector<1x16x16xf32> -> vector<1x16x16xf32>
    "tpu.trace_stop"() : () -> ()
    %175 = vector.shape_cast %174 : vector<1x16x16xf32> to vector<16x16xf32>
    %176 = arith.truncf %175 : vector<16x16xf32> to vector<16x16xbf16>
    %c80 = arith.constant 80 : index
    %c0_48 = arith.constant 0 : index
    %177 = vector.load %arg7[%c80, %c0_48] : memref<128x128xbf16, #tpu.memory_space<vmem>>, vector<16x128xbf16>
    %cst_49 = arith.constant dense<0.000000e+00> : vector<16x128xf32>
    %178 = tpu.matmul %176, %177, %cst_49 {dimension_numbers = #tpu.dot_dimension_numbers<[1], [0], [0], [1], [0, 0, 1, 1], [], []>} : vector<16x16xbf16>, vector<16x128xbf16>, vector<16x128xf32> -> vector<16x128xf32>
    %179 = arith.addf %152, %178 : vector<16x128xf32>
    %180 = vector.extract_strided_slice %15 {offsets = [0, 96], sizes = [16, 16], strides = [1, 1]} : vector<16x128xf32> to vector<16x16xf32>
    %181 = vector.shape_cast %180 : vector<16x16xf32> to vector<1x16x16xf32>
    %182 = arith.truncf %181 : vector<1x16x16xf32> to vector<1x16x16xbf16>
    %183 = vector.extract_strided_slice %16 {offsets = [0, 96], sizes = [16, 16], strides = [1, 1]} : vector<16x128xf32> to vector<16x16xf32>
    %184 = vector.shape_cast %183 : vector<16x16xf32> to vector<1x16x16xf32>
    %185 = arith.truncf %184 : vector<1x16x16xf32> to vector<1x16x16xbf16>
    %186 = vector.extract_strided_slice %14 {offsets = [0, 96], sizes = [16, 16], strides = [1, 1]} : vector<16x128xf32> to vector<16x16xf32>
    %187 = vector.shape_cast %186 : vector<16x16xf32> to vector<1x16x16xf32>
    %188 = arith.truncf %187 : vector<1x16x16xf32> to vector<1x16x16xbf16>
    "tpu.trace_start"() <{level = 10 : i32, message = "bqd,bkd->bqk"}> : () -> ()
    %cst_50 = arith.constant dense<0.000000e+00> : vector<1x16x16xf32>
    %189 = tpu.matmul %182, %185, %cst_50 {dimension_numbers = #tpu.dot_dimension_numbers<[2], [2], [1], [1], [0, 0, 0, 1, 1, 1], [0], [0]>} : vector<1x16x16xbf16>, vector<1x16x16xbf16>, vector<1x16x16xf32> -> vector<1x16x16xf32>
    "tpu.trace_stop"() : () -> ()
    %cst_51 = arith.constant dense<0xFF800000> : vector<1x16xf32>
    %190 = vector.multi_reduction <maximumf>, %189, %cst_51 [2] : vector<1x16x16xf32> to vector<1x16xf32>
    %191 = vector.shape_cast %190 : vector<1x16xf32> to vector<1x16x1xf32>
    %192 = vector.broadcast %191 : vector<1x16x1xf32> to vector<1x16x16xf32>
    %193 = arith.subf %189, %192 : vector<1x16x16xf32>
    %194 = math.exp %193 : vector<1x16x16xf32>
    %cst_52 = arith.constant dense<0.000000e+00> : vector<1x16xf32>
    %195 = vector.multi_reduction <add>, %194, %cst_52 [2] : vector<1x16x16xf32> to vector<1x16xf32>
    %196 = vector.shape_cast %195 : vector<1x16xf32> to vector<1x16x1xf32>
    %197 = tpu.reciprocal %196 {approx = true} : vector<1x16x1xf32> -> vector<1x16x1xf32>
    %198 = vector.broadcast %197 : vector<1x16x1xf32> to vector<1x16x16xf32>
    %199 = arith.mulf %194, %198 : vector<1x16x16xf32>
    %200 = arith.truncf %199 : vector<1x16x16xf32> to vector<1x16x16xbf16>
    "tpu.trace_start"() <{level = 10 : i32, message = "bqk,bkd->bqd"}> : () -> ()
    %cst_53 = arith.constant dense<0.000000e+00> : vector<1x16x16xf32>
    %201 = tpu.matmul %200, %188, %cst_53 {dimension_numbers = #tpu.dot_dimension_numbers<[2], [1], [1], [2], [0, 0, 0, 1, 1, 2], [0], [0]>} : vector<1x16x16xbf16>, vector<1x16x16xbf16>, vector<1x16x16xf32> -> vector<1x16x16xf32>
    "tpu.trace_stop"() : () -> ()
    %202 = vector.shape_cast %201 : vector<1x16x16xf32> to vector<16x16xf32>
    %203 = arith.truncf %202 : vector<16x16xf32> to vector<16x16xbf16>
    %c96 = arith.constant 96 : index
    %c0_54 = arith.constant 0 : index
    %204 = vector.load %arg7[%c96, %c0_54] : memref<128x128xbf16, #tpu.memory_space<vmem>>, vector<16x128xbf16>
    %cst_55 = arith.constant dense<0.000000e+00> : vector<16x128xf32>
    %205 = tpu.matmul %203, %204, %cst_55 {dimension_numbers = #tpu.dot_dimension_numbers<[1], [0], [0], [1], [0, 0, 1, 1], [], []>} : vector<16x16xbf16>, vector<16x128xbf16>, vector<16x128xf32> -> vector<16x128xf32>
    %206 = arith.addf %179, %205 : vector<16x128xf32>
    %207 = vector.extract_strided_slice %15 {offsets = [0, 112], sizes = [16, 16], strides = [1, 1]} : vector<16x128xf32> to vector<16x16xf32>
    %208 = vector.shape_cast %207 : vector<16x16xf32> to vector<1x16x16xf32>
    %209 = arith.truncf %208 : vector<1x16x16xf32> to vector<1x16x16xbf16>
    %210 = vector.extract_strided_slice %16 {offsets = [0, 112], sizes = [16, 16], strides = [1, 1]} : vector<16x128xf32> to vector<16x16xf32>
    %211 = vector.shape_cast %210 : vector<16x16xf32> to vector<1x16x16xf32>
    %212 = arith.truncf %211 : vector<1x16x16xf32> to vector<1x16x16xbf16>
    %213 = vector.extract_strided_slice %14 {offsets = [0, 112], sizes = [16, 16], strides = [1, 1]} : vector<16x128xf32> to vector<16x16xf32>
    %214 = vector.shape_cast %213 : vector<16x16xf32> to vector<1x16x16xf32>
    %215 = arith.truncf %214 : vector<1x16x16xf32> to vector<1x16x16xbf16>
    "tpu.trace_start"() <{level = 10 : i32, message = "bqd,bkd->bqk"}> : () -> ()
    %cst_56 = arith.constant dense<0.000000e+00> : vector<1x16x16xf32>
    %216 = tpu.matmul %209, %212, %cst_56 {dimension_numbers = #tpu.dot_dimension_numbers<[2], [2], [1], [1], [0, 0, 0, 1, 1, 1], [0], [0]>} : vector<1x16x16xbf16>, vector<1x16x16xbf16>, vector<1x16x16xf32> -> vector<1x16x16xf32>
    "tpu.trace_stop"() : () -> ()
    %cst_57 = arith.constant dense<0xFF800000> : vector<1x16xf32>
    %217 = vector.multi_reduction <maximumf>, %216, %cst_57 [2] : vector<1x16x16xf32> to vector<1x16xf32>
    %218 = vector.shape_cast %217 : vector<1x16xf32> to vector<1x16x1xf32>
    %219 = vector.broadcast %218 : vector<1x16x1xf32> to vector<1x16x16xf32>
    %220 = arith.subf %216, %219 : vector<1x16x16xf32>
    %221 = math.exp %220 : vector<1x16x16xf32>
    %cst_58 = arith.constant dense<0.000000e+00> : vector<1x16xf32>
    %222 = vector.multi_reduction <add>, %221, %cst_58 [2] : vector<1x16x16xf32> to vector<1x16xf32>
    %223 = vector.shape_cast %222 : vector<1x16xf32> to vector<1x16x1xf32>
    %224 = tpu.reciprocal %223 {approx = true} : vector<1x16x1xf32> -> vector<1x16x1xf32>
    %225 = vector.broadcast %224 : vector<1x16x1xf32> to vector<1x16x16xf32>
    %226 = arith.mulf %221, %225 : vector<1x16x16xf32>
    %227 = arith.truncf %226 : vector<1x16x16xf32> to vector<1x16x16xbf16>
    "tpu.trace_start"() <{level = 10 : i32, message = "bqk,bkd->bqd"}> : () -> ()
    %cst_59 = arith.constant dense<0.000000e+00> : vector<1x16x16xf32>
    %228 = tpu.matmul %227, %215, %cst_59 {dimension_numbers = #tpu.dot_dimension_numbers<[2], [1], [1], [2], [0, 0, 0, 1, 1, 2], [0], [0]>} : vector<1x16x16xbf16>, vector<1x16x16xbf16>, vector<1x16x16xf32> -> vector<1x16x16xf32>
    "tpu.trace_stop"() : () -> ()
    %229 = vector.shape_cast %228 : vector<1x16x16xf32> to vector<16x16xf32>
    %230 = arith.truncf %229 : vector<16x16xf32> to vector<16x16xbf16>
    %c112 = arith.constant 112 : index
    %c0_60 = arith.constant 0 : index
    %231 = vector.load %arg7[%c112, %c0_60] : memref<128x128xbf16, #tpu.memory_space<vmem>>, vector<16x128xbf16>
    %cst_61 = arith.constant dense<0.000000e+00> : vector<16x128xf32>
    %232 = tpu.matmul %230, %231, %cst_61 {dimension_numbers = #tpu.dot_dimension_numbers<[1], [0], [0], [1], [0, 0, 1, 1], [], []>} : vector<16x16xbf16>, vector<16x128xbf16>, vector<16x128xf32> -> vector<16x128xf32>
    %233 = arith.addf %206, %232 : vector<16x128xf32>
    %234 = arith.addf %0, %233 : vector<16x128xf32>
    %c0_62 = arith.constant 0 : index
    %c0_63 = arith.constant 0 : index
    %235 = vector.load %arg8[%c0_62, %c0_63] : memref<1x128xf32, #tpu.memory_space<vmem>>, vector<1x128xf32>
    %236 = vector.broadcast %235 : vector<1x128xf32> to vector<16x128xf32>
    %237 = arith.addf %234, %236 : vector<16x128xf32>
    %cst_64 = arith.constant dense<0.000000e+00> : vector<16xf32>
    %238 = vector.multi_reduction <add>, %237, %cst_64 [1] : vector<16x128xf32> to vector<16xf32>
    %239 = vector.shape_cast %238 : vector<16xf32> to vector<16x1xf32>
    %cst_65 = arith.constant 1.280000e+02 : f32
    %240 = vector.broadcast %cst_65 : f32 to vector<16x1xf32>
    %241 = arith.divf %239, %240 : vector<16x1xf32>
    %242 = vector.broadcast %241 : vector<16x1xf32> to vector<16x128xf32>
    %243 = arith.subf %237, %242 : vector<16x128xf32>
    %244 = arith.mulf %243, %243 : vector<16x128xf32>
    %cst_66 = arith.constant dense<0.000000e+00> : vector<16xf32>
    %245 = vector.multi_reduction <add>, %244, %cst_66 [1] : vector<16x128xf32> to vector<16xf32>
    %246 = vector.shape_cast %245 : vector<16xf32> to vector<16x1xf32>
    %cst_67 = arith.constant 1.280000e+02 : f32
    %247 = vector.broadcast %cst_67 : f32 to vector<16x1xf32>
    %248 = arith.divf %246, %247 : vector<16x1xf32>
    %249 = vector.broadcast %241 : vector<16x1xf32> to vector<16x128xf32>
    %250 = arith.subf %237, %249 : vector<16x128xf32>
    %cst_68 = arith.constant 9.99999974E-6 : f32
    %251 = vector.broadcast %cst_68 : f32 to vector<16x1xf32>
    %252 = arith.addf %248, %251 : vector<16x1xf32>
    %253 = math.rsqrt %252 : vector<16x1xf32>
    %254 = vector.broadcast %253 : vector<16x1xf32> to vector<16x128xf32>
    %255 = arith.mulf %250, %254 : vector<16x128xf32>
    %c0_69 = arith.constant 0 : index
    %c0_70 = arith.constant 0 : index
    %256 = vector.load %arg9[%c0_69, %c0_70] : memref<1x128xf32, #tpu.memory_space<vmem>>, vector<1x128xf32>
    %257 = vector.broadcast %256 : vector<1x128xf32> to vector<16x128xf32>
    %258 = arith.mulf %255, %257 : vector<16x128xf32>
    %c0_71 = arith.constant 0 : index
    %c0_72 = arith.constant 0 : index
    %259 = vector.load %arg10[%c0_71, %c0_72] : memref<1x128xf32, #tpu.memory_space<vmem>>, vector<1x128xf32>
    %260 = vector.broadcast %259 : vector<1x128xf32> to vector<16x128xf32>
    %261 = arith.addf %258, %260 : vector<16x128xf32>
    %262 = arith.truncf %261 : vector<16x128xf32> to vector<16x128xbf16>
    %c0_73 = arith.constant 0 : index
    %c0_74 = arith.constant 0 : index
    %263 = vector.load %arg11[%c0_73, %c0_74] : memref<128x256xbf16, #tpu.memory_space<vmem>>, vector<128x256xbf16>
    %cst_75 = arith.constant dense<0.000000e+00> : vector<16x256xf32>
    %264 = tpu.matmul %262, %263, %cst_75 {dimension_numbers = #tpu.dot_dimension_numbers<[1], [0], [0], [1], [0, 0, 1, 1], [], []>} : vector<16x128xbf16>, vector<128x256xbf16>, vector<16x256xf32> -> vector<16x256xf32>
    %c0_76 = arith.constant 0 : index
    %c0_77 = arith.constant 0 : index
    %265 = vector.load %arg12[%c0_76, %c0_77] : memref<1x256xf32, #tpu.memory_space<vmem>>, vector<1x256xf32>
    %266 = vector.broadcast %265 : vector<1x256xf32> to vector<16x256xf32>
    %267 = arith.addf %264, %266 : vector<16x256xf32>
    %cst_78 = arith.constant 0.000000e+00 : f32
    %268 = vector.broadcast %cst_78 : f32 to vector<16x256xf32>
    %269 = arith.maximumf %267, %268 : vector<16x256xf32>
    %270 = arith.truncf %269 : vector<16x256xf32> to vector<16x256xbf16>
    %c0_79 = arith.constant 0 : index
    %c0_80 = arith.constant 0 : index
    %271 = vector.load %arg13[%c0_79, %c0_80] : memref<256x128xbf16, #tpu.memory_space<vmem>>, vector<256x128xbf16>
    %cst_81 = arith.constant dense<0.000000e+00> : vector<16x128xf32>
    %272 = tpu.matmul %270, %271, %cst_81 {dimension_numbers = #tpu.dot_dimension_numbers<[1], [0], [0], [1], [0, 0, 1, 1], [], []>} : vector<16x256xbf16>, vector<256x128xbf16>, vector<16x128xf32> -> vector<16x128xf32>
    %c0_82 = arith.constant 0 : index
    %c0_83 = arith.constant 0 : index
    %273 = vector.load %arg14[%c0_82, %c0_83] : memref<1x128xf32, #tpu.memory_space<vmem>>, vector<1x128xf32>
    %274 = vector.broadcast %273 : vector<1x128xf32> to vector<16x128xf32>
    %275 = arith.addf %272, %274 : vector<16x128xf32>
    %276 = arith.addf %261, %275 : vector<16x128xf32>
    %cst_84 = arith.constant dense<0.000000e+00> : vector<16xf32>
    %277 = vector.multi_reduction <add>, %276, %cst_84 [1] : vector<16x128xf32> to vector<16xf32>
    %278 = vector.shape_cast %277 : vector<16xf32> to vector<16x1xf32>
    %cst_85 = arith.constant 1.280000e+02 : f32
    %279 = vector.broadcast %cst_85 : f32 to vector<16x1xf32>
    %280 = arith.divf %278, %279 : vector<16x1xf32>
    %281 = vector.broadcast %280 : vector<16x1xf32> to vector<16x128xf32>
    %282 = arith.subf %276, %281 : vector<16x128xf32>
    %283 = arith.mulf %282, %282 : vector<16x128xf32>
    %cst_86 = arith.constant dense<0.000000e+00> : vector<16xf32>
    %284 = vector.multi_reduction <add>, %283, %cst_86 [1] : vector<16x128xf32> to vector<16xf32>
    %285 = vector.shape_cast %284 : vector<16xf32> to vector<16x1xf32>
    %cst_87 = arith.constant 1.280000e+02 : f32
    %286 = vector.broadcast %cst_87 : f32 to vector<16x1xf32>
    %287 = arith.divf %285, %286 : vector<16x1xf32>
    %288 = vector.broadcast %280 : vector<16x1xf32> to vector<16x128xf32>
    %289 = arith.subf %276, %288 : vector<16x128xf32>
    %cst_88 = arith.constant 9.99999974E-6 : f32
    %290 = vector.broadcast %cst_88 : f32 to vector<16x1xf32>
    %291 = arith.addf %287, %290 : vector<16x1xf32>
    %292 = math.rsqrt %291 : vector<16x1xf32>
    %293 = vector.broadcast %292 : vector<16x1xf32> to vector<16x128xf32>
    %294 = arith.mulf %289, %293 : vector<16x128xf32>
    %c0_89 = arith.constant 0 : index
    %c0_90 = arith.constant 0 : index
    %295 = vector.load %arg15[%c0_89, %c0_90] : memref<1x128xf32, #tpu.memory_space<vmem>>, vector<1x128xf32>
    %296 = vector.broadcast %295 : vector<1x128xf32> to vector<16x128xf32>
    %297 = arith.mulf %294, %296 : vector<16x128xf32>
    %c0_91 = arith.constant 0 : index
    %c0_92 = arith.constant 0 : index
    %298 = vector.load %arg16[%c0_91, %c0_92] : memref<1x128xf32, #tpu.memory_space<vmem>>, vector<1x128xf32>
    %299 = vector.broadcast %298 : vector<1x128xf32> to vector<16x128xf32>
    %300 = arith.addf %297, %299 : vector<16x128xf32>
    %c0_93 = arith.constant 0 : index
    %c0_94 = arith.constant 0 : index
    %301 = vector.load %arg17[%c0_93, %c0_94] : memref<16x128xf32, #tpu.memory_space<vmem>>, vector<16x128xf32>
    tpu.vector_store %arg17[%c0_93, %c0_94], %300 {strides = array<i32>} : memref<16x128xf32, #tpu.memory_space<vmem>>, vector<16x128xf32>,
    return
  }
  func.func @transform_0(%arg0: i32) -> (i32, i32) {
    %c0_i32 = arith.constant 0 : i32
    %c0_i32_0 = arith.constant 0 : i32
    return %arg0, %c0_i32 : i32, i32
  }
  func.func @transform_1(%arg0: i32) -> (i32, i32) {
    %c0_i32 = arith.constant 0 : i32
    %c0_i32_0 = arith.constant 0 : i32
    return %arg0, %c0_i32 : i32, i32
  }
  func.func @transform_2(%arg0: i32) -> (i32, i32) {
    %c0_i32 = arith.constant 0 : i32
    %c0_i32_0 = arith.constant 0 : i32
    %c0_i32_1 = arith.constant 0 : i32
    return %c0_i32, %c0_i32_0 : i32, i32
  }
  func.func @transform_3(%arg0: i32) -> (i32, i32) {
    %c0_i32 = arith.constant 0 : i32
    %c0_i32_0 = arith.constant 0 : i32
    %c0_i32_1 = arith.constant 0 : i32
    return %c0_i32, %c0_i32_0 : i32, i32
  }
  func.func @transform_4(%arg0: i32) -> (i32, i32) {
    %c0_i32 = arith.constant 0 : i32
    %c0_i32_0 = arith.constant 0 : i32
    %c0_i32_1 = arith.constant 0 : i32
    return %c0_i32, %c0_i32_0 : i32, i32
  }
  func.func @transform_5(%arg0: i32) -> (i32, i32) {
    %c0_i32 = arith.constant 0 : i32
    %c0_i32_0 = arith.constant 0 : i32
    %c0_i32_1 = arith.constant 0 : i32
    return %c0_i32, %c0_i32_0 : i32, i32
  }
  func.func @transform_6(%arg0: i32) -> (i32, i32) {
    %c0_i32 = arith.constant 0 : i32
    %c0_i32_0 = arith.constant 0 : i32
    %c0_i32_1 = arith.constant 0 : i32
    return %c0_i32, %c0_i32_0 : i32, i32
  }
  func.func @transform_7(%arg0: i32) -> (i32, i32) {
    %c0_i32 = arith.constant 0 : i32
    %c0_i32_0 = arith.constant 0 : i32
    %c0_i32_1 = arith.constant 0 : i32
    return %c0_i32, %c0_i32_0 : i32, i32
  }
  func.func @transform_8(%arg0: i32) -> (i32, i32) {
    %c0_i32 = arith.constant 0 : i32
    %c0_i32_0 = arith.constant 0 : i32
    %c0_i32_1 = arith.constant 0 : i32
    return %c0_i32, %c0_i32_0 : i32, i32
  }
  func.func @transform_9(%arg0: i32) -> (i32, i32) {
    %c0_i32 = arith.constant 0 : i32
    %c0_i32_0 = arith.constant 0 : i32
    %c0_i32_1 = arith.constant 0 : i32
    return %c0_i32, %c0_i32_0 : i32, i32
  }
  func.func @transform_10(%arg0: i32) -> (i32, i32) {
    %c0_i32 = arith.constant 0 : i32
    %c0_i32_0 = arith.constant 0 : i32
    %c0_i32_1 = arith.constant 0 : i32
    return %c0_i32, %c0_i32_0 : i32, i32
  }
  func.func @transform_11(%arg0: i32) -> (i32, i32) {
    %c0_i32 = arith.constant 0 : i32
    %c0_i32_0 = arith.constant 0 : i32
    %c0_i32_1 = arith.constant 0 : i32
    return %c0_i32, %c0_i32_0 : i32, i32
  }
  func.func @transform_12(%arg0: i32) -> (i32, i32) {
    %c0_i32 = arith.constant 0 : i32
    %c0_i32_0 = arith.constant 0 : i32
    %c0_i32_1 = arith.constant 0 : i32
    return %c0_i32, %c0_i32_0 : i32, i32
  }
  func.func @transform_13(%arg0: i32) -> (i32, i32) {
    %c0_i32 = arith.constant 0 : i32
    %c0_i32_0 = arith.constant 0 : i32
    %c0_i32_1 = arith.constant 0 : i32
    return %c0_i32, %c0_i32_0 : i32, i32
  }
  func.func @transform_14(%arg0: i32) -> (i32, i32) {
    %c0_i32 = arith.constant 0 : i32
    %c0_i32_0 = arith.constant 0 : i32
    %c0_i32_1 = arith.constant 0 : i32
    return %c0_i32, %c0_i32_0 : i32, i32
  }
  func.func @transform_15(%arg0: i32) -> (i32, i32) {
    %c0_i32 = arith.constant 0 : i32
    %c0_i32_0 = arith.constant 0 : i32
    %c0_i32_1 = arith.constant 0 : i32
    return %c0_i32, %c0_i32_0 : i32, i32
  }
  func.func @transform_16(%arg0: i32) -> (i32, i32) {
    %c0_i32 = arith.constant 0 : i32
    %c0_i32_0 = arith.constant 0 : i32
    return %arg0, %c0_i32 : i32, i32
  }
}

</mosaic_0001>

<llo_original>
// kernel: tpu_custom_call.1
$region0: #{tpu_custom_call.1}
  #allocation0 [shape = 'u32[]', space=smem, size = 0x4, offset = 0x4, fixed_abs, tag = 'smem constant byte address 0x4 - core index']
  #allocation1 [shape = 'u32[144,128]{1,0:T(1,128)}', space=vmem, size = 0x12000, scoped, tag = 'internal scratch']
  %s0 = inlined_call_operand.hbm [shape: f32[64,128], index: 0, kind: input, shape index: {}]
  %s1 = inlined_call_operand.hbm [shape: f32[64,128], index: 1, kind: input, shape index: {}]
  %s2 = inlined_call_operand.hbm [shape: bf16[128,256], index: 2, kind: input, shape index: {}]
  %s3 = inlined_call_operand.vmem [shape: f32[1,256], index: 3, kind: input, shape index: {}]
  %s4 = inlined_call_operand.hbm [shape: bf16[128,128], index: 4, kind: input, shape index: {}]
  %s5 = inlined_call_operand.vmem [shape: f32[1,128], index: 5, kind: input, shape index: {}]
  %s6 = inlined_call_operand.hbm [shape: bf16[128,128], index: 6, kind: input, shape index: {}]
  %s7 = inlined_call_operand.vmem [shape: f32[1,128], index: 7, kind: input, shape index: {}]
  %s8 = inlined_call_operand.vmem [shape: f32[1,128], index: 8, kind: input, shape index: {}]
  %s9 = inlined_call_operand.vmem [shape: f32[1,128], index: 9, kind: input, shape index: {}]
  %s10 = inlined_call_operand.hbm [shape: bf16[128,256], index: 10, kind: input, shape index: {}]
  %s11 = inlined_call_operand.vmem [shape: f32[1,256], index: 11, kind: input, shape index: {}]
  %s12 = inlined_call_operand.hbm [shape: bf16[256,128], index: 12, kind: input, shape index: {}]
  %s13 = inlined_call_operand.vmem [shape: f32[1,128], index: 13, kind: input, shape index: {}]
  %s14 = inlined_call_operand.vmem [shape: f32[1,128], index: 14, kind: input, shape index: {}]
  %s15 = inlined_call_operand.vmem [shape: f32[1,128], index: 15, kind: input, shape index: {}]
  %s16 = inlined_call_operand.hbm [shape: f32[64,128], index: 16, kind: output, shape index: {}]
  %s17 = sld [smem:[#allocation0]]
  $region125: #{tpu_custom_call.1} parent=0
    _
  %s19 = ssub.s32 1, %s17
  %s20 = scalar_select 0, %s19, %s17
  $region1: #{tpu_custom_call.1} parent=0
    #allocation2 [shape = 'u8[16384]{0}', space=vmem, size = 0x4000, scoped, tag = 'input window, operand 0']
    #allocation3 [shape = 's32[2]{0}', space=sflag, size = 0x8, scoped, tag = 'scoped memory for tpu_custom_call.1']
    #allocation4 [shape = 's32[2]{0}', space=sflag, size = 0x8, scoped, tag = 'scoped memory for tpu_custom_call.1']
    #allocation5 [shape = 'u8[16384]{0}', space=vmem, size = 0x4000, scoped, tag = 'input window, operand 1']
    #allocation6 [shape = 's32[2]{0}', space=sflag, size = 0x8, scoped, tag = 'scoped memory for tpu_custom_call.1']
    #allocation7 [shape = 'u8[65536]{0}', space=vmem, size = 0x10000, scoped, tag = 'input window, operand 2, single buffered']
    #allocation8 [shape = 'u8[32768]{0}', space=vmem, size = 0x8000, scoped, tag = 'input window, operand 4, single buffered']
    #allocation9 [shape = 's32[1]{0}', space=sflag, size = 0x4, scoped, tag = 'scoped memory for tpu_custom_call.1']
    #allocation10 [shape = 'u8[32768]{0}', space=vmem, size = 0x8000, scoped, tag = 'input window, operand 6, single buffered']
    #allocation11 [shape = 'u8[65536]{0}', space=vmem, size = 0x10000, scoped, tag = 'input window, operand 10, single buffered']
    #allocation12 [shape = 's32[1]{0}', space=sflag, size = 0x4, scoped, tag = 'scoped memory for tpu_custom_call.1']
    #allocation13 [shape = 'u8[65536]{0}', space=vmem, size = 0x10000, scoped, tag = 'input window, operand 12, single buffered']
    #allocation14 [shape = 'u8[16384]{0}', space=vmem, size = 0x4000, scoped, tag = 'output window, operand 0']
    %21 = vsyncpa [#allocation3], 0
    %s22 = scalar_lea.sflag [#allocation3], 1
    %23 = vsyncpa %s22, 0
    %24 = vsyncpa [#allocation6], 0
    %s25 = scalar_lea.sflag [#allocation6], 1
    %26 = vsyncpa %s25, 0
    %27 = vsyncpa [#allocation9], 0
    %28 = vsyncpa [#allocation12], 0
    %29 = vsyncpa [#allocation4], 0
    %s30 = scalar_lea.sflag [#allocation4], 1
    %31 = vsyncpa %s30, 0
    loop: start=0, step=1, limit=6
    $region2: #{tpu_custom_call.1} parent=1 // loop_pre_header
      _
    $region3: #{tpu_custom_call.1} parent=1 // loop_header
      %s33 = sphi 0, %s37
      %p34 = scmp.ge.s32.totalorder %s33, 6
      %s43 = sphi 0, %s45
      %s46 = sphi 0, %s43
      %s47 = sphi 0, %s46
      %s63 = sphi 0, %s47
      %s69 = sphi 0, %s71
      %s72 = sphi 0, %s69
      %s73 = sphi 0, %s72
      %s89 = sphi 0, %s73
      %s93 = sphi 0, %s93
      %s95 = sphi 0, %s93
      %s96 = sphi 0, %s95
      %s110 = sphi 0, %s96
      %s114 = sphi 0, %s114
      %s116 = sphi 0, %s114
      %s117 = sphi 0, %s116
      %s131 = sphi 0, %s117
      %s135 = sphi 0, %s135
      %s137 = sphi 0, %s135
      %s138 = sphi 0, %s137
      %s152 = sphi 0, %s138
      %s156 = sphi 0, %s156
      %s158 = sphi 0, %s156
      %s159 = sphi 0, %s158
      %s173 = sphi 0, %s159
      %s177 = sphi 0, %s177
      %s179 = sphi 0, %s177
      %s180 = sphi 0, %s179
      %s194 = sphi 0, %s180
      %s198 = sphi 0, %s198
      %s200 = sphi 0, %s198
      %s201 = sphi 0, %s200
      %s215 = sphi 0, %s201
      %s219 = sphi 0, %s219
      %s221 = sphi 0, %s219
      %s222 = sphi 0, %s221
      %s236 = sphi 0, %s222
      %s240 = sphi 0, %s240
      %s242 = sphi 0, %s240
      %s243 = sphi 0, %s242
      %s257 = sphi 0, %s243
      %s261 = sphi 0, %s261
      %s263 = sphi 0, %s261
      %s264 = sphi 0, %s263
      %s278 = sphi 0, %s264
      %s282 = sphi 0, %s282
      %s284 = sphi 0, %s282
      %s285 = sphi 0, %s284
      %s299 = sphi 0, %s285
      %s303 = sphi 0, %s303
      %s305 = sphi 0, %s303
      %s306 = sphi 0, %s305
      %s320 = sphi 0, %s306
      %s324 = sphi 0, %s324
      %s326 = sphi 0, %s324
      %s327 = sphi 0, %s326
      %s341 = sphi 0, %s327
      %s345 = sphi 0, %s345
      %s347 = sphi 0, %s345
      %s348 = sphi 0, %s347
      %s362 = sphi 0, %s348
      %s366 = sphi 0, %s366
      %s368 = sphi 0, %s366
      %s369 = sphi 0, %s368
      %s383 = sphi 0, %s369
      %s389 = sphi 0, %s391
      %s392 = sphi 0, %s389
      %s393 = sphi 0, %s392
      %s409 = sphi 0, %s393
    $region4: #{tpu_custom_call.1} parent=1 // loop_header_branch
      %36 = sbr.rel (%p34) target = $region8
    $region5: #{tpu_custom_call.1} parent=1 // loop_body
      %s38 = ssub.s32 %s33, 1
      %s39 = ssub.s32 %s33, 2
      %s40 = sadd.s32 %s33, 1
      %s41 = ssub.s32 %s33, %s40
      %p42 = scmp.eq.s32.totalorder %s41, 0
      %s44 = sadd.s32 %s43, 1
      %s45 = scalar_select %p42, %s43, %s44
      %p48 = pneg %p42
      %p49 = scmp.eq.s32.totalorder %s33, 3
      %p50 = por %p48, %p49
      %p51 = scmp.ne.s32.totalorder %s43, %s46
      %p52 = scmp.eq.s32.totalorder %s33, 0
      %p53 = por %p51, %p52
      %p54 = scmp.ne.s32.totalorder %s43, %s46
      %p55 = scmp.eq.s32.totalorder %s38, 3
      %p56 = por %p54, %p55
      %p57 = scmp.ne.s32.totalorder %s46, %s47
      %p58 = scmp.eq.s32.totalorder %s38, 0
      %p59 = por %p57, %p58
      %p60 = scmp.ne.s32.totalorder %s46, %s47
      %p61 = scmp.eq.s32.totalorder %s39, 3
      %p62 = por %p60, %p61
      %p64 = scmp.ne.s32.totalorder %s47, %s63
      %p65 = scmp.eq.s32.totalorder %s39, 0
      %p66 = por %p64, %p65
      %s67 = ssub.s32 %s33, %s40
      %p68 = scmp.eq.s32.totalorder %s67, 0
      %s70 = sadd.s32 %s69, 1
      %s71 = scalar_select %p68, %s69, %s70
      %p74 = pneg %p68
      %p75 = scmp.eq.s32.totalorder %s33, 3
      %p76 = por %p74, %p75
      %p77 = scmp.ne.s32.totalorder %s69, %s72
      %p78 = scmp.eq.s32.totalorder %s33, 0
      %p79 = por %p77, %p78
      %p80 = scmp.ne.s32.totalorder %s69, %s72
      %p81 = scmp.eq.s32.totalorder %s38, 3
      %p82 = por %p80, %p81
      %p83 = scmp.ne.s32.totalorder %s72, %s73
      %p84 = scmp.eq.s32.totalorder %s38, 0
      %p85 = por %p83, %p84
      %p86 = scmp.ne.s32.totalorder %s72, %s73
      %p87 = scmp.eq.s32.totalorder %s39, 3
      %p88 = por %p86, %p87
      %p90 = scmp.ne.s32.totalorder %s73, %s89
      %p91 = scmp.eq.s32.totalorder %s39, 0
      %p92 = por %p90, %p91
      %s94 = sadd.s32 %s93, 1
      %p97 = scmp.eq.s32.totalorder %s33, 3
      %p98 = scmp.ne.s32.totalorder %s93, %s95
      %p99 = scmp.eq.s32.totalorder %s33, 0
      %p100 = por %p98, %p99
      %p101 = scmp.ne.s32.totalorder %s93, %s95
      %p102 = scmp.eq.s32.totalorder %s38, 3
      %p103 = por %p101, %p102
      %p104 = scmp.ne.s32.totalorder %s95, %s96
      %p105 = scmp.eq.s32.totalorder %s38, 0
      %p106 = por %p104, %p105
      %p107 = scmp.ne.s32.totalorder %s95, %s96
      %p108 = scmp.eq.s32.totalorder %s39, 3
      %p109 = por %p107, %p108
      %p111 = scmp.ne.s32.totalorder %s96, %s110
      %p112 = scmp.eq.s32.totalorder %s39, 0
      %p113 = por %p111, %p112
      %s115 = sadd.s32 %s114, 1
      %p118 = scmp.eq.s32.totalorder %s33, 3
      %p119 = scmp.ne.s32.totalorder %s114, %s116
      %p120 = scmp.eq.s32.totalorder %s33, 0
      %p121 = por %p119, %p120
      %p122 = scmp.ne.s32.totalorder %s114, %s116
      %p123 = scmp.eq.s32.totalorder %s38, 3
      %p124 = por %p122, %p123
      %p125 = scmp.ne.s32.totalorder %s116, %s117
      %p126 = scmp.eq.s32.totalorder %s38, 0
      %p127 = por %p125, %p126
      %p128 = scmp.ne.s32.totalorder %s116, %s117
      %p129 = scmp.eq.s32.totalorder %s39, 3
      %p130 = por %p128, %p129
      %p132 = scmp.ne.s32.totalorder %s117, %s131
      %p133 = scmp.eq.s32.totalorder %s39, 0
      %p134 = por %p132, %p133
      %s136 = sadd.s32 %s135, 1
      %p139 = scmp.eq.s32.totalorder %s33, 3
      %p140 = scmp.ne.s32.totalorder %s135, %s137
      %p141 = scmp.eq.s32.totalorder %s33, 0
      %p142 = por %p140, %p141
      %p143 = scmp.ne.s32.totalorder %s135, %s137
      %p144 = scmp.eq.s32.totalorder %s38, 3
      %p145 = por %p143, %p144
      %p146 = scmp.ne.s32.totalorder %s137, %s138
      %p147 = scmp.eq.s32.totalorder %s38, 0
      %p148 = por %p146, %p147
      %p149 = scmp.ne.s32.totalorder %s137, %s138
      %p150 = scmp.eq.s32.totalorder %s39, 3
      %p151 = por %p149, %p150
      %p153 = scmp.ne.s32.totalorder %s138, %s152
      %p154 = scmp.eq.s32.totalorder %s39, 0
      %p155 = por %p153, %p154
      %s157 = sadd.s32 %s156, 1
      %p160 = scmp.eq.s32.totalorder %s33, 3
      %p161 = scmp.ne.s32.totalorder %s156, %s158
      %p162 = scmp.eq.s32.totalorder %s33, 0
      %p163 = por %p161, %p162
      %p164 = scmp.ne.s32.totalorder %s156, %s158
      %p165 = scmp.eq.s32.totalorder %s38, 3
      %p166 = por %p164, %p165
      %p167 = scmp.ne.s32.totalorder %s158, %s159
      %p168 = scmp.eq.s32.totalorder %s38, 0
      %p169 = por %p167, %p168
      %p170 = scmp.ne.s32.totalorder %s158, %s159
      %p171 = scmp.eq.s32.totalorder %s39, 3
      %p172 = por %p170, %p171
      %p174 = scmp.ne.s32.totalorder %s159, %s173
      %p175 = scmp.eq.s32.totalorder %s39, 0
      %p176 = por %p174, %p175
      %s178 = sadd.s32 %s177, 1
      %p181 = scmp.eq.s32.totalorder %s33, 3
      %p182 = scmp.ne.s32.totalorder %s177, %s179
      %p183 = scmp.eq.s32.totalorder %s33, 0
      %p184 = por %p182, %p183
      %p185 = scmp.ne.s32.totalorder %s177, %s179
      %p186 = scmp.eq.s32.totalorder %s38, 3
      %p187 = por %p185, %p186
      %p188 = scmp.ne.s32.totalorder %s179, %s180
      %p189 = scmp.eq.s32.totalorder %s38, 0
      %p190 = por %p188, %p189
      %p191 = scmp.ne.s32.totalorder %s179, %s180
      %p192 = scmp.eq.s32.totalorder %s39, 3
      %p193 = por %p191, %p192
      %p195 = scmp.ne.s32.totalorder %s180, %s194
      %p196 = scmp.eq.s32.totalorder %s39, 0
      %p197 = por %p195, %p196
      %s199 = sadd.s32 %s198, 1
      %p202 = scmp.eq.s32.totalorder %s33, 3
      %p203 = scmp.ne.s32.totalorder %s198, %s200
      %p204 = scmp.eq.s32.totalorder %s33, 0
      %p205 = por %p203, %p204
      %p206 = scmp.ne.s32.totalorder %s198, %s200
      %p207 = scmp.eq.s32.totalorder %s38, 3
      %p208 = por %p206, %p207
      %p209 = scmp.ne.s32.totalorder %s200, %s201
      %p210 = scmp.eq.s32.totalorder %s38, 0
      %p211 = por %p209, %p210
      %p212 = scmp.ne.s32.totalorder %s200, %s201
      %p213 = scmp.eq.s32.totalorder %s39, 3
      %p214 = por %p212, %p213
      %p216 = scmp.ne.s32.totalorder %s201, %s215
      %p217 = scmp.eq.s32.totalorder %s39, 0
      %p218 = por %p216, %p217
      %s220 = sadd.s32 %s219, 1
      %p223 = scmp.eq.s32.totalorder %s33, 3
      %p224 = scmp.ne.s32.totalorder %s219, %s221
      %p225 = scmp.eq.s32.totalorder %s33, 0
      %p226 = por %p224, %p225
      %p227 = scmp.ne.s32.totalorder %s219, %s221
      %p228 = scmp.eq.s32.totalorder %s38, 3
      %p229 = por %p227, %p228
      %p230 = scmp.ne.s32.totalorder %s221, %s222
      %p231 = scmp.eq.s32.totalorder %s38, 0
      %p232 = por %p230, %p231
      %p233 = scmp.ne.s32.totalorder %s221, %s222
      %p234 = scmp.eq.s32.totalorder %s39, 3
      %p235 = por %p233, %p234
      %p237 = scmp.ne.s32.totalorder %s222, %s236
      %p238 = scmp.eq.s32.totalorder %s39, 0
      %p239 = por %p237, %p238
      %s241 = sadd.s32 %s240, 1
      %p244 = scmp.eq.s32.totalorder %s33, 3
      %p245 = scmp.ne.s32.totalorder %s240, %s242
      %p246 = scmp.eq.s32.totalorder %s33, 0
      %p247 = por %p245, %p246
      %p248 = scmp.ne.s32.totalorder %s240, %s242
      %p249 = scmp.eq.s32.totalorder %s38, 3
      %p250 = por %p248, %p249
      %p251 = scmp.ne.s32.totalorder %s242, %s243
      %p252 = scmp.eq.s32.totalorder %s38, 0
      %p253 = por %p251, %p252
      %p254 = scmp.ne.s32.totalorder %s242, %s243
      %p255 = scmp.eq.s32.totalorder %s39, 3
      %p256 = por %p254, %p255
      %p258 = scmp.ne.s32.totalorder %s243, %s257
      %p259 = scmp.eq.s32.totalorder %s39, 0
      %p260 = por %p258, %p259
      %s262 = sadd.s32 %s261, 1
      %p265 = scmp.eq.s32.totalorder %s33, 3
      %p266 = scmp.ne.s32.totalorder %s261, %s263
      %p267 = scmp.eq.s32.totalorder %s33, 0
      %p268 = por %p266, %p267
      %p269 = scmp.ne.s32.totalorder %s261, %s263
      %p270 = scmp.eq.s32.totalorder %s38, 3
      %p271 = por %p269, %p270
      %p272 = scmp.ne.s32.totalorder %s263, %s264
      %p273 = scmp.eq.s32.totalorder %s38, 0
      %p274 = por %p272, %p273
      %p275 = scmp.ne.s32.totalorder %s263, %s264
      %p276 = scmp.eq.s32.totalorder %s39, 3
      %p277 = por %p275, %p276
      %p279 = scmp.ne.s32.totalorder %s264, %s278
      %p280 = scmp.eq.s32.totalorder %s39, 0
      %p281 = por %p279, %p280
      %s283 = sadd.s32 %s282, 1
      %p286 = scmp.eq.s32.totalorder %s33, 3
      %p287 = scmp.ne.s32.totalorder %s282, %s284
      %p288 = scmp.eq.s32.totalorder %s33, 0
      %p289 = por %p287, %p288
      %p290 = scmp.ne.s32.totalorder %s282, %s284
      %p291 = scmp.eq.s32.totalorder %s38, 3
      %p292 = por %p290, %p291
      %p293 = scmp.ne.s32.totalorder %s284, %s285
      %p294 = scmp.eq.s32.totalorder %s38, 0
      %p295 = por %p293, %p294
      %p296 = scmp.ne.s32.totalorder %s284, %s285
      %p297 = scmp.eq.s32.totalorder %s39, 3
      %p298 = por %p296, %p297
      %p300 = scmp.ne.s32.totalorder %s285, %s299
      %p301 = scmp.eq.s32.totalorder %s39, 0
      %p302 = por %p300, %p301
      %s304 = sadd.s32 %s303, 1
      %p307 = scmp.eq.s32.totalorder %s33, 3
      %p308 = scmp.ne.s32.totalorder %s303, %s305
      %p309 = scmp.eq.s32.totalorder %s33, 0
      %p310 = por %p308, %p309
      %p311 = scmp.ne.s32.totalorder %s303, %s305
      %p312 = scmp.eq.s32.totalorder %s38, 3
      %p313 = por %p311, %p312
      %p314 = scmp.ne.s32.totalorder %s305, %s306
      %p315 = scmp.eq.s32.totalorder %s38, 0
      %p316 = por %p314, %p315
      %p317 = scmp.ne.s32.totalorder %s305, %s306
      %p318 = scmp.eq.s32.totalorder %s39, 3
      %p319 = por %p317, %p318
      %p321 = scmp.ne.s32.totalorder %s306, %s320
      %p322 = scmp.eq.s32.totalorder %s39, 0
      %p323 = por %p321, %p322
      %s325 = sadd.s32 %s324, 1
      %p328 = scmp.eq.s32.totalorder %s33, 3
      %p329 = scmp.ne.s32.totalorder %s324, %s326
      %p330 = scmp.eq.s32.totalorder %s33, 0
      %p331 = por %p329, %p330
      %p332 = scmp.ne.s32.totalorder %s324, %s326
      %p333 = scmp.eq.s32.totalorder %s38, 3
      %p334 = por %p332, %p333
      %p335 = scmp.ne.s32.totalorder %s326, %s327
      %p336 = scmp.eq.s32.totalorder %s38, 0
      %p337 = por %p335, %p336
      %p338 = scmp.ne.s32.totalorder %s326, %s327
      %p339 = scmp.eq.s32.totalorder %s39, 3
      %p340 = por %p338, %p339
      %p342 = scmp.ne.s32.totalorder %s327, %s341
      %p343 = scmp.eq.s32.totalorder %s39, 0
      %p344 = por %p342, %p343
      %s346 = sadd.s32 %s345, 1
      %p349 = scmp.eq.s32.totalorder %s33, 3
      %p350 = scmp.ne.s32.totalorder %s345, %s347
      %p351 = scmp.eq.s32.totalorder %s33, 0
      %p352 = por %p350, %p351
      %p353 = scmp.ne.s32.totalorder %s345, %s347
      %p354 = scmp.eq.s32.totalorder %s38, 3
      %p355 = por %p353, %p354
      %p356 = scmp.ne.s32.totalorder %s347, %s348
      %p357 = scmp.eq.s32.totalorder %s38, 0
      %p358 = por %p356, %p357
      %p359 = scmp.ne.s32.totalorder %s347, %s348
      %p360 = scmp.eq.s32.totalorder %s39, 3
      %p361 = por %p359, %p360
      %p363 = scmp.ne.s32.totalorder %s348, %s362
      %p364 = scmp.eq.s32.totalorder %s39, 0
      %p365 = por %p363, %p364
      %s367 = sadd.s32 %s366, 1
      %p370 = scmp.eq.s32.totalorder %s33, 3
      %p371 = scmp.ne.s32.totalorder %s366, %s368
      %p372 = scmp.eq.s32.totalorder %s33, 0
      %p373 = por %p371, %p372
      %p374 = scmp.ne.s32.totalorder %s366, %s368
      %p375 = scmp.eq.s32.totalorder %s38, 3
      %p376 = por %p374, %p375
      %p377 = scmp.ne.s32.totalorder %s368, %s369
      %p378 = scmp.eq.s32.totalorder %s38, 0
      %p379 = por %p377, %p378
      %p380 = scmp.ne.s32.totalorder %s368, %s369
      %p381 = scmp.eq.s32.totalorder %s39, 3
      %p382 = por %p380, %p381
      %p384 = scmp.ne.s32.totalorder %s369, %s383
      %p385 = scmp.eq.s32.totalorder %s39, 0
      %p386 = por %p384, %p385
      %s387 = ssub.s32 %s33, %s40
      %p388 = scmp.eq.s32.totalorder %s387, 0
      %s390 = sadd.s32 %s389, 1
      %s391 = scalar_select %p388, %s389, %s390
      %p394 = pneg %p388
      %p395 = scmp.eq.s32.totalorder %s33, 3
      %p396 = por %p394, %p395
      %p397 = scmp.ne.s32.totalorder %s389, %s392
      %p398 = scmp.eq.s32.totalorder %s33, 0
      %p399 = por %p397, %p398
      %p400 = scmp.ne.s32.totalorder %s389, %s392
      %p401 = scmp.eq.s32.totalorder %s38, 3
      %p402 = por %p400, %p401
      %p403 = scmp.ne.s32.totalorder %s392, %s393
      %p404 = scmp.eq.s32.totalorder %s38, 0
      %p405 = por %p403, %p404
      %p406 = scmp.ne.s32.totalorder %s392, %s393
      %p407 = scmp.eq.s32.totalorder %s39, 3
      %p408 = por %p406, %p407
      %p410 = scmp.ne.s32.totalorder %s393, %s409
      %p411 = scmp.eq.s32.totalorder %s39, 0
      %p412 = por %p410, %p411
      %p413 = scmp.le.s32.totalorder 1, %s33
      %p414 = scmp.lt.s32.totalorder %s33, 5
      %p415 = pnand %p413, %p414
      %p416 = pneg %p415
      // Predicated region
      $region9: #{tpu_custom_call.1} parent=5 // pred_check
        _
      $region10: #{tpu_custom_call.1} parent=5 // pred_check_branch
        %418 = sbr.rel (%p415) target = $region12
      $region11: #{tpu_custom_call.1} parent=5 // pred_region
        %s419 = ssub.s32 %s33, 1
        // Predicated region
        $region13: #{tpu_custom_call.1} parent=11 // pred_check
          %p420 = pneg %p106
        $region14: #{tpu_custom_call.1} parent=11 // pred_check_branch
          %422 = sbr.rel (%p420) target = $region16
        $region15: #{tpu_custom_call.1} parent=11 // pred_region
          %s424 = ssub.s32 2048, 2048
          %425 = vsyncadd [#allocation6], %s424
          %s426 = sshll.u32 [#allocation7], 4
          %s427 = int_to_ptr.vmem [resolvable:$true] %s426
          %432 = dma.hbm_to_vmem [thread:$0]  %s2, 2048, %s427, [#allocation6], 128, 128, 8
        $region16: #{tpu_custom_call.1} parent=11 // pred_fallthru
          _
        // Predicated region
        $region17: #{tpu_custom_call.1} parent=11 // pred_check
          %p433 = pneg %p127
        $region18: #{tpu_custom_call.1} parent=11 // pred_check_branch
          %435 = sbr.rel (%p433) target = $region20
        $region19: #{tpu_custom_call.1} parent=11 // pred_region
          _
        $region20: #{tpu_custom_call.1} parent=11 // pred_fallthru
          _
        // Predicated region
        $region21: #{tpu_custom_call.1} parent=11 // pred_check
          %p436 = pneg %p148
        $region22: #{tpu_custom_call.1} parent=11 // pred_check_branch
          %438 = sbr.rel (%p436) target = $region24
        $region23: #{tpu_custom_call.1} parent=11 // pred_region
          %s440 = ssub.s32 1024, 1024
          %441 = vsyncadd [#allocation9], %s440
          %s442 = sshll.u32 [#allocation8], 4
          %s443 = int_to_ptr.vmem [resolvable:$true] %s442
          %448 = dma.hbm_to_vmem [thread:$0]  %s4, 1024, %s443, [#allocation9], 64, 64, 4
        $region24: #{tpu_custom_call.1} parent=11 // pred_fallthru
          _
        // Predicated region
        $region25: #{tpu_custom_call.1} parent=11 // pred_check
          %p449 = pneg %p169
        $region26: #{tpu_custom_call.1} parent=11 // pred_check_branch
          %451 = sbr.rel (%p449) target = $region28
        $region27: #{tpu_custom_call.1} parent=11 // pred_region
          _
        $region28: #{tpu_custom_call.1} parent=11 // pred_fallthru
          _
        // Predicated region
        $region29: #{tpu_custom_call.1} parent=11 // pred_check
          %p452 = pneg %p190
        $region30: #{tpu_custom_call.1} parent=11 // pred_check_branch
          %454 = sbr.rel (%p452) target = $region32
        $region31: #{tpu_custom_call.1} parent=11 // pred_region
          %s456 = ssub.s32 1024, 1024
          %457 = vsyncadd [#allocation9], %s456
          %s458 = sshll.u32 [#allocation10], 4
          %s459 = int_to_ptr.vmem [resolvable:$true] %s458
          %464 = dma.hbm_to_vmem [thread:$0]  %s6, 1024, %s459, [#allocation9], 64, 64, 4
        $region32: #{tpu_custom_call.1} parent=11 // pred_fallthru
          _
        // Predicated region
        $region33: #{tpu_custom_call.1} parent=11 // pred_check
          %p465 = pneg %p211
        $region34: #{tpu_custom_call.1} parent=11 // pred_check_branch
          %467 = sbr.rel (%p465) target = $region36
        $region35: #{tpu_custom_call.1} parent=11 // pred_region
          _
        $region36: #{tpu_custom_call.1} parent=11 // pred_fallthru
          _
        // Predicated region
        $region37: #{tpu_custom_call.1} parent=11 // pred_check
          %p468 = pneg %p232
        $region38: #{tpu_custom_call.1} parent=11 // pred_check_branch
          %470 = sbr.rel (%p468) target = $region40
        $region39: #{tpu_custom_call.1} parent=11 // pred_region
          _
        $region40: #{tpu_custom_call.1} parent=11 // pred_fallthru
          _
        // Predicated region
        $region41: #{tpu_custom_call.1} parent=11 // pred_check
          %p471 = pneg %p253
        $region42: #{tpu_custom_call.1} parent=11 // pred_check_branch
          %473 = sbr.rel (%p471) target = $region44
        $region43: #{tpu_custom_call.1} parent=11 // pred_region
          _
        $region44: #{tpu_custom_call.1} parent=11 // pred_fallthru
          _
        // Predicated region
        $region45: #{tpu_custom_call.1} parent=11 // pred_check
          %p474 = pneg %p274
        $region46: #{tpu_custom_call.1} parent=11 // pred_check_branch
          %476 = sbr.rel (%p474) target = $region48
        $region47: #{tpu_custom_call.1} parent=11 // pred_region
          %s478 = ssub.s32 2048, 2048
          %479 = vsyncadd [#allocation12], %s478
          %s480 = sshll.u32 [#allocation11], 4
          %s481 = int_to_ptr.vmem [resolvable:$true] %s480
          %486 = dma.hbm_to_vmem [thread:$0]  %s10, 2048, %s481, [#allocation12], 128, 128, 8
        $region48: #{tpu_custom_call.1} parent=11 // pred_fallthru
          _
        // Predicated region
        $region49: #{tpu_custom_call.1} parent=11 // pred_check
          %p487 = pneg %p295
        $region50: #{tpu_custom_call.1} parent=11 // pred_check_branch
          %489 = sbr.rel (%p487) target = $region52
        $region51: #{tpu_custom_call.1} parent=11 // pred_region
          _
        $region52: #{tpu_custom_call.1} parent=11 // pred_fallthru
          _
        // Predicated region
        $region53: #{tpu_custom_call.1} parent=11 // pred_check
          %p490 = pneg %p316
        $region54: #{tpu_custom_call.1} parent=11 // pred_check_branch
          %492 = sbr.rel (%p490) target = $region56
        $region55: #{tpu_custom_call.1} parent=11 // pred_region
          %s494 = ssub.s32 2048, 2048
          %495 = vsyncadd [#allocation12], %s494
          %s496 = sshll.u32 [#allocation13], 4
          %s497 = int_to_ptr.vmem [resolvable:$true] %s496
          %502 = dma.hbm_to_vmem [thread:$0]  %s12, 2048, %s497, [#allocation12], 64, 64, 4
        $region56: #{tpu_custom_call.1} parent=11 // pred_fallthru
          _
        // Predicated region
        $region57: #{tpu_custom_call.1} parent=11 // pred_check
          %p503 = pneg %p337
        $region58: #{tpu_custom_call.1} parent=11 // pred_check_branch
          %505 = sbr.rel (%p503) target = $region60
        $region59: #{tpu_custom_call.1} parent=11 // pred_region
          _
        $region60: #{tpu_custom_call.1} parent=11 // pred_fallthru
          _
        // Predicated region
        $region61: #{tpu_custom_call.1} parent=11 // pred_check
          %p506 = pneg %p358
        $region62: #{tpu_custom_call.1} parent=11 // pred_check_branch
          %508 = sbr.rel (%p506) target = $region64
        $region63: #{tpu_custom_call.1} parent=11 // pred_region
          _
        $region64: #{tpu_custom_call.1} parent=11 // pred_fallthru
          _
        // Predicated region
        $region65: #{tpu_custom_call.1} parent=11 // pred_check
          %p509 = pneg %p379
        $region66: #{tpu_custom_call.1} parent=11 // pred_check_branch
          %511 = sbr.rel (%p509) target = $region68
        $region67: #{tpu_custom_call.1} parent=11 // pred_region
          _
        $region68: #{tpu_custom_call.1} parent=11 // pred_fallthru
          _
      $region12: #{tpu_custom_call.1} parent=5 // pred_fallthru
        _
      %p512 = scmp.lt.s32.totalorder %s33, 4
      // Predicated region
      $region69: #{tpu_custom_call.1} parent=5 // pred_check
        %p513 = pneg %p512
      $region70: #{tpu_custom_call.1} parent=5 // pred_check_branch
        %515 = sbr.rel (%p513) target = $region72
      $region71: #{tpu_custom_call.1} parent=5 // pred_region
        // Predicated region
        $region73: #{tpu_custom_call.1} parent=71 // pred_check
          %p516 = pneg %p53
        $region74: #{tpu_custom_call.1} parent=71 // pred_check_branch
          %518 = sbr.rel (%p516) target = $region76
        $region75: #{tpu_custom_call.1} parent=71 // pred_region
          %s519 = sand.u32 %s43, 1
          %s520 = scalar_lea.sflag [#allocation3], %s519
          %s521 = sand.u32 %s43, 1
          %s522 = smul.addr %s521, 16
          %s523 = scalar_lea.vmem [#allocation2], %s522
          %s524 = smul.u32 2, %s33
          %s526 = ssub.s32 256, 256
          %527 = vsyncadd %s520, %s526
          %s528 = smul.addr %s524, 128
          %s529 = scalar_lea.hbm %s0, %s528
          %s530 = sshll.u32 %s523, 4
          %s531 = int_to_ptr.vmem [resolvable:$true] %s530
          %536 = dma.hbm_to_vmem [thread:$0]  %s529, 256, %s531, %s520, 128, 128, 8
        $region76: #{tpu_custom_call.1} parent=71 // pred_fallthru
          _
        // Predicated region
        $region77: #{tpu_custom_call.1} parent=71 // pred_check
          %p537 = pneg %p79
        $region78: #{tpu_custom_call.1} parent=71 // pred_check_branch
          %539 = sbr.rel (%p537) target = $region80
        $region79: #{tpu_custom_call.1} parent=71 // pred_region
          %s540 = sand.u32 %s33, 1
          %s541 = scalar_lea.sflag [#allocation6], %s540
          %s542 = sand.u32 %s69, 1
          %s543 = smul.addr %s542, 16
          %s544 = scalar_lea.vmem [#allocation5], %s543
          %s545 = smul.u32 2, %s33
          %s547 = ssub.s32 256, 256
          %548 = vsyncadd %s541, %s547
          %s549 = smul.addr %s545, 128
          %s550 = scalar_lea.hbm %s1, %s549
          %s551 = sshll.u32 %s544, 4
          %s552 = int_to_ptr.vmem [resolvable:$true] %s551
          %557 = dma.hbm_to_vmem [thread:$0]  %s550, 256, %s552, %s541, 128, 128, 8
        $region80: #{tpu_custom_call.1} parent=71 // pred_fallthru
          _
      $region72: #{tpu_custom_call.1} parent=5 // pred_fallthru
        _
      %p558 = scmp.le.s32.totalorder 1, %s33
      %p559 = scmp.lt.s32.totalorder %s33, 5
      %p560 = pnand %p558, %p559
      %p561 = pneg %p560
      // Predicated region
      $region81: #{tpu_custom_call.1} parent=5 // pred_check
        _
      $region82: #{tpu_custom_call.1} parent=5 // pred_check_branch
        %563 = sbr.rel (%p560) target = $region84
      $region83: #{tpu_custom_call.1} parent=5 // pred_region
        %s564 = ssub.s32 %s33, 1
        %s565 = sand.u32 %s46, 1
        %s566 = scalar_lea.sflag [#allocation3], %s565
        %s567 = sand.u32 %s46, 1
        %s568 = smul.addr %s567, 16
        %s569 = scalar_lea.vmem [#allocation2], %s568
        // Predicated region
        $region85: #{tpu_custom_call.1} parent=83 // pred_check
          %p570 = pneg %p59
        $region86: #{tpu_custom_call.1} parent=83 // pred_check_branch
          %572 = sbr.rel (%p570) target = $region88
        $region87: #{tpu_custom_call.1} parent=83 // pred_region
          %573 = dma.done %s566, 256
        $region88: #{tpu_custom_call.1} parent=83 // pred_fallthru
          _
        %s574 = sand.u32 %s38, 1
        %s575 = scalar_lea.sflag [#allocation6], %s574
        %s576 = sand.u32 %s72, 1
        %s577 = smul.addr %s576, 16
        %s578 = scalar_lea.vmem [#allocation5], %s577
        // Predicated region
        $region89: #{tpu_custom_call.1} parent=83 // pred_check
          %p579 = pneg %p85
        $region90: #{tpu_custom_call.1} parent=83 // pred_check_branch
          %581 = sbr.rel (%p579) target = $region92
        $region91: #{tpu_custom_call.1} parent=83 // pred_region
          %582 = dma.done %s575, 256
        $region92: #{tpu_custom_call.1} parent=83 // pred_fallthru
          _
        // Predicated region
        $region93: #{tpu_custom_call.1} parent=83 // pred_check
          %p583 = pneg %p106
        $region94: #{tpu_custom_call.1} parent=83 // pred_check_branch
          %585 = sbr.rel (%p583) target = $region96
        $region95: #{tpu_custom_call.1} parent=83 // pred_region
          %586 = dma.done [#allocation6], 2048
        $region96: #{tpu_custom_call.1} parent=83 // pred_fallthru
          _
        // Predicated region
        $region97: #{tpu_custom_call.1} parent=83 // pred_check
          %p587 = pneg %p148
        $region98: #{tpu_custom_call.1} parent=83 // pred_check_branch
          %589 = sbr.rel (%p587) target = $region100
        $region99: #{tpu_custom_call.1} parent=83 // pred_region
          %590 = dma.done [#allocation9], 1024
        $region100: #{tpu_custom_call.1} parent=83 // pred_fallthru
          _
        // Predicated region
        $region101: #{tpu_custom_call.1} parent=83 // pred_check
          %p591 = pneg %p190
        $region102: #{tpu_custom_call.1} parent=83 // pred_check_branch
          %593 = sbr.rel (%p591) target = $region104
        $region103: #{tpu_custom_call.1} parent=83 // pred_region
          %594 = dma.done [#allocation9], 1024
        $region104: #{tpu_custom_call.1} parent=83 // pred_fallthru
          _
        // Predicated region
        $region105: #{tpu_custom_call.1} parent=83 // pred_check
          %p595 = pneg %p274
        $region106: #{tpu_custom_call.1} parent=83 // pred_check_branch
          %597 = sbr.rel (%p595) target = $region108
        $region107: #{tpu_custom_call.1} parent=83 // pred_region
          %598 = dma.done [#allocation12], 2048
        $region108: #{tpu_custom_call.1} parent=83 // pred_fallthru
          _
        // Predicated region
        $region109: #{tpu_custom_call.1} parent=83 // pred_check
          %p599 = pneg %p316
        $region110: #{tpu_custom_call.1} parent=83 // pred_check_branch
          %601 = sbr.rel (%p599) target = $region112
        $region111: #{tpu_custom_call.1} parent=83 // pred_region
          %602 = dma.done [#allocation12], 2048
        $region112: #{tpu_custom_call.1} parent=83 // pred_fallthru
          _
        %s603 = sand.u32 %s46, 1
        %s604 = scalar_lea.sflag [#allocation3], %s603
        %s605 = sand.u32 %s46, 1
        %s606 = smul.addr %s605, 16
        %s607 = scalar_lea.vmem [#allocation2], %s606
        %p608 = pneg %p59
        %p609 = pneg %p56
        %s610 = sand.u32 %s38, 1
        %s611 = scalar_lea.sflag [#allocation6], %s610
        %s612 = sand.u32 %s72, 1
        %s613 = smul.addr %s612, 16
        %s614 = scalar_lea.vmem [#allocation5], %s613
        %p615 = pneg %p85
        %p616 = pneg %p82
        %p617 = pneg %p106
        %p618 = pneg %p103
        %p619 = pneg %p127
        %p620 = pneg %p124
        %p621 = pneg %p148
        %p622 = pneg %p145
        %p623 = pneg %p169
        %p624 = pneg %p166
        %p625 = pneg %p190
        %p626 = pneg %p187
        %p627 = pneg %p211
        %p628 = pneg %p208
        %p629 = pneg %p232
        %p630 = pneg %p229
        %p631 = pneg %p253
        %p632 = pneg %p250
        %p633 = pneg %p274
        %p634 = pneg %p271
        %p635 = pneg %p295
        %p636 = pneg %p292
        %p637 = pneg %p316
        %p638 = pneg %p313
        %p639 = pneg %p337
        %p640 = pneg %p334
        %p641 = pneg %p358
        %p642 = pneg %p355
        %p643 = pneg %p379
        %p644 = pneg %p376
        %p645 = pneg %p405
        %p646 = pneg %p402
        %s647 = sand.u32 %s392, 1
        %s648 = scalar_lea.sflag [#allocation4], %s647
        %s649 = sand.u32 %s392, 1
        %s650 = smul.addr %s649, 16
        %s651 = scalar_lea.vmem [#allocation14], %s650
        %s652 = smul.u32 2, %s38
        %s653 = smul.u32 2, %s38
        %s654 = smul.u32 2, %s38
        %v656 = vld [vmem:[%s569] sm:$0xff]
        %v657 = vld [vmem:[%s569 + $0x8] sm:$0xff]
        %v658 = vld [vmem:[%s578] sm:$0xff]
        %v659 = vld [vmem:[%s578 + $0x8] sm:$0xff]
        %v660 = vadd.f32 %v656, %v658
        %v661 = vadd.f32 %v657, %v659
        %v662 = vpack.c.bf16 %v661, %v660
        %v663 = vld [vmem:[#allocation7] sm:$0xff]
        %v664 = vld [vmem:[#allocation7 + $0x8] sm:$0xff]
        %v665 = vld [vmem:[#allocation7 + $0x10] sm:$0xff]
        %v666 = vld [vmem:[#allocation7 + $0x18] sm:$0xff]
        %v667 = vld [vmem:[#allocation7 + $0x20] sm:$0xff]
        %v668 = vld [vmem:[#allocation7 + $0x28] sm:$0xff]
        %v669 = vld [vmem:[#allocation7 + $0x30] sm:$0xff]
        %v670 = vld [vmem:[#allocation7 + $0x38] sm:$0xff]
        %v671 = vld [vmem:[#allocation7 + $0x40] sm:$0xff]
        %v672 = vld [vmem:[#allocation7 + $0x48] sm:$0xff]
        %v673 = vld [vmem:[#allocation7 + $0x50] sm:$0xff]
        %v674 = vld [vmem:[#allocation7 + $0x58] sm:$0xff]
        %v675 = vld [vmem:[#allocation7 + $0x60] sm:$0xff]
        %v676 = vld [vmem:[#allocation7 + $0x68] sm:$0xff]
        %v677 = vld [vmem:[#allocation7 + $0x70] sm:$0xff]
        %v678 = vld [vmem:[#allocation7 + $0x78] sm:$0xff]
        %v679 = vld [vmem:[%s3] sm:$0x3]
        %v681 = vlaneseq
        %v682 = vshrl.u32 %v681, 7
        %v683 = vsub.s32 0, %v682
        %v684 = vrot.slane %v679, %v683
        %v685 = vlaneseq
        %v686 = vshrl.u32 %v685, 7
        %v687 = vsub.s32 1, %v686
        %v688 = vrot.slane %v679, %v687
        %v707 = vunpack.c.l.b16 %v663
        %v708 = vunpack.c.h.b16 %v663
        %v709 = vunpack.c.l.b16 %v664
        %v710 = vunpack.c.h.b16 %v664
        %v711 = vunpack.c.l.b16 %v665
        %v712 = vunpack.c.h.b16 %v665
        %v713 = vunpack.c.l.b16 %v666
        %v714 = vunpack.c.h.b16 %v666
        %v715 = vunpack.c.l.b16 %v667
        %v716 = vunpack.c.h.b16 %v667
        %v717 = vunpack.c.l.b16 %v668
        %v718 = vunpack.c.h.b16 %v668
        %v719 = vunpack.c.l.b16 %v669
        %v720 = vunpack.c.h.b16 %v669
        %v721 = vunpack.c.l.b16 %v670
        %v722 = vunpack.c.h.b16 %v670
        %v723 = vunpack.c.l.b16 %v671
        %v724 = vunpack.c.h.b16 %v671
        %v725 = vunpack.c.l.b16 %v672
        %v726 = vunpack.c.h.b16 %v672
        %v727 = vunpack.c.l.b16 %v673
        %v728 = vunpack.c.h.b16 %v673
        %v729 = vunpack.c.l.b16 %v674
        %v730 = vunpack.c.h.b16 %v674
        %v731 = vunpack.c.l.b16 %v675
        %v732 = vunpack.c.h.b16 %v675
        %v733 = vunpack.c.l.b16 %v676
        %v734 = vunpack.c.h.b16 %v676
        %v735 = vunpack.c.l.b16 %v677
        %v736 = vunpack.c.h.b16 %v677
        %v737 = vunpack.c.l.b16 %v678
        %v738 = vunpack.c.h.b16 %v678
        %v739 = vpack.c.b16 %v709, %v707
        %v740 = vpack.c.b16 %v710, %v708
        %v741 = vpack.c.b16 %v713, %v711
        %v742 = vpack.c.b16 %v714, %v712
        %v743 = vpack.c.b16 %v717, %v715
        %v744 = vpack.c.b16 %v718, %v716
        %v745 = vpack.c.b16 %v721, %v719
        %v746 = vpack.c.b16 %v722, %v720
        %v747 = vpack.c.b16 %v725, %v723
        %v748 = vpack.c.b16 %v726, %v724
        %v749 = vpack.c.b16 %v729, %v727
        %v750 = vpack.c.b16 %v730, %v728
        %v751 = vpack.c.b16 %v733, %v731
        %v752 = vpack.c.b16 %v734, %v732
        %v753 = vpack.c.b16 %v737, %v735
        %v754 = vpack.c.b16 %v738, %v736
        %771 = vmatprep.subr.bf16.mxu0 %v754
        %772 = vmatpush1.bf16.msra.mxu0 %v753
        %773 = vmatprep.subr.bf16.mxu0 %v752
        %774 = vmatpush1.bf16.msra.mxu0 %v751
        %775 = vmatprep.subr.bf16.mxu0 %v750
        %776 = vmatpush1.bf16.msra.mxu0 %v749
        %777 = vmatprep.subr.bf16.mxu0 %v748
        %778 = vmatpush1.bf16.msra.mxu0 %v747
        %779 = vmatprep.subr.bf16.mxu0 %v746
        %780 = vmatpush1.bf16.msra.mxu0 %v745
        %781 = vmatprep.subr.bf16.mxu0 %v744
        %782 = vmatpush1.bf16.msra.mxu0 %v743
        %783 = vmatprep.subr.bf16.mxu0 %v742
        %784 = vmatpush1.bf16.msra.mxu0 %v741
        %785 = vmatprep.subr.bf16.mxu0 %v740
        %786 = vmatpush1.bf16.msra.mxu0 %v739
        %787 = vmatprep.subr.bf16.mxu0 0
        %788 = vmatpush2.bf16.msra.mxu0 0
        %789 = vmatprep.subr.bf16.mxu0 0
        %790 = vmatpush2.bf16.msra.mxu0 0
        %791 = vmatprep.subr.bf16.mxu0 0
        %792 = vmatpush2.bf16.msra.mxu0 0
        %793 = vmatprep.subr.bf16.mxu0 0
        %794 = vmatpush2.bf16.msra.mxu0 0
        %795 = vmatprep.subr.bf16.mxu0 0
        %796 = vmatpush2.bf16.msra.mxu0 0
        %797 = vmatprep.subr.bf16.mxu0 0
        %798 = vmatpush2.bf16.msra.mxu0 0
        %799 = vmatprep.subr.bf16.mxu0 0
        %800 = vmatpush2.bf16.msra.mxu0 0
        %801 = vmatprep.subr.bf16.mxu0 0
        %802 = vmatpush2.bf16.msra.mxu0 0
        %803 = vmatprep.mubr.bf16.mxu0 0
        %804 = vmatmul.mubr.bf16.gmra.mxu0 %v662
        %v805 = vpop.f32.mrf.mxu0
        %v806 = vadd.f32 %v684, %v805
        %v807 = vpop.f32.mrf.mxu0
        %v808 = vadd.f32 %v688, %v807
        %v809 = vpop.f32.mrf.mxu0
        %v810 = vadd.f32 %v684, %v809
        %v811 = vpop.f32.mrf.mxu0
        %v812 = vadd.f32 %v688, %v811
        %813 = vdwg.mxu0
        %v814 = vpack.c.bf16 %v657, %v656
        %v815 = vld [vmem:[#allocation8] sm:$0xf]
        %v816 = vld [vmem:[#allocation8 + $0x4] sm:$0xf]
        %v817 = vld [vmem:[#allocation8 + $0x8] sm:$0xf]
        %v818 = vld [vmem:[#allocation8 + $0xc] sm:$0xf]
        %v819 = vld [vmem:[#allocation8 + $0x10] sm:$0xf]
        %v820 = vld [vmem:[#allocation8 + $0x14] sm:$0xf]
        %v821 = vld [vmem:[#allocation8 + $0x18] sm:$0xf]
        %v822 = vld [vmem:[#allocation8 + $0x1c] sm:$0xf]
        %v823 = vld [vmem:[#allocation8 + $0x20] sm:$0xf]
        %v824 = vld [vmem:[#allocation8 + $0x24] sm:$0xf]
        %v825 = vld [vmem:[#allocation8 + $0x28] sm:$0xf]
        %v826 = vld [vmem:[#allocation8 + $0x2c] sm:$0xf]
        %v827 = vld [vmem:[#allocation8 + $0x30] sm:$0xf]
        %v828 = vld [vmem:[#allocation8 + $0x34] sm:$0xf]
        %v829 = vld [vmem:[#allocation8 + $0x38] sm:$0xf]
        %v830 = vld [vmem:[#allocation8 + $0x3c] sm:$0xf]
        %v831 = vld [vmem:[%s5] sm:$0x1]
        %v833 = vlaneseq
        %v834 = vshrl.u32 %v833, 7
        %v835 = vsub.s32 0, %v834
        %v836 = vrot.slane %v831, %v835
        %v854 = vunpack.c.l.b16 %v815
        %v855 = vunpack.c.l.b16 %v816
        %v856 = vunpack.c.l.b16 %v817
        %v857 = vunpack.c.l.b16 %v818
        %v858 = vunpack.c.l.b16 %v819
        %v859 = vunpack.c.l.b16 %v820
        %v860 = vunpack.c.l.b16 %v821
        %v861 = vunpack.c.l.b16 %v822
        %v862 = vunpack.c.l.b16 %v823
        %v863 = vunpack.c.l.b16 %v824
        %v864 = vunpack.c.l.b16 %v825
        %v865 = vunpack.c.l.b16 %v826
        %v866 = vunpack.c.l.b16 %v827
        %v867 = vunpack.c.l.b16 %v828
        %v868 = vunpack.c.l.b16 %v829
        %v869 = vunpack.c.l.b16 %v830
        %v870 = vpack.c.b16 %v855, %v854
        %v871 = vpack.c.b16 %v857, %v856
        %v872 = vpack.c.b16 %v859, %v858
        %v873 = vpack.c.b16 %v861, %v860
        %v874 = vpack.c.b16 %v863, %v862
        %v875 = vpack.c.b16 %v865, %v864
        %v876 = vpack.c.b16 %v867, %v866
        %v877 = vpack.c.b16 %v869, %v868
        %886 = vmatprep.subr.bf16.mxu0 0
        %887 = vmatpush1.bf16.msra.mxu0 %v877
        %888 = vmatprep.subr.bf16.mxu0 0
        %889 = vmatpush1.bf16.msra.mxu0 %v876
        %890 = vmatprep.subr.bf16.mxu0 0
        %891 = vmatpush1.bf16.msra.mxu0 %v875
        %892 = vmatprep.subr.bf16.mxu0 0
        %893 = vmatpush1.bf16.msra.mxu0 %v874
        %894 = vmatprep.subr.bf16.mxu0 0
        %895 = vmatpush1.bf16.msra.mxu0 %v873
        %896 = vmatprep.subr.bf16.mxu0 0
        %897 = vmatpush1.bf16.msra.mxu0 %v872
        %898 = vmatprep.subr.bf16.mxu0 0
        %899 = vmatpush1.bf16.msra.mxu0 %v871
        %900 = vmatprep.subr.bf16.mxu0 0
        %901 = vmatpush1.bf16.msra.mxu0 %v870
        %902 = vmatprep.subr.bf16.mxu0 0
        %903 = vmatpush2.bf16.msra.mxu0 0
        %904 = vmatprep.subr.bf16.mxu0 0
        %905 = vmatpush2.bf16.msra.mxu0 0
        %906 = vmatprep.subr.bf16.mxu0 0
        %907 = vmatpush2.bf16.msra.mxu0 0
        %908 = vmatprep.subr.bf16.mxu0 0
        %909 = vmatpush2.bf16.msra.mxu0 0
        %910 = vmatprep.subr.bf16.mxu0 0
        %911 = vmatpush2.bf16.msra.mxu0 0
        %912 = vmatprep.subr.bf16.mxu0 0
        %913 = vmatpush2.bf16.msra.mxu0 0
        %914 = vmatprep.subr.bf16.mxu0 0
        %915 = vmatpush2.bf16.msra.mxu0 0
        %916 = vmatprep.subr.bf16.mxu0 0
        %917 = vmatpush2.bf16.msra.mxu0 0
        %918 = vmatprep.mubr.bf16.mxu0 0
        %919 = vmatmul.mubr.bf16.gmra.mxu0 %v814
        %v920 = vpop.f32.mrf.mxu0
        %v921 = vadd.f32 %v836, %v920
        %v922 = vpop.f32.mrf.mxu0
        %v923 = vpop.f32.mrf.mxu0
        %v924 = vadd.f32 %v836, %v923
        %v925 = vpop.f32.mrf.mxu0
        %926 = vdwg.mxu0
        %v927 = vpack.c.bf16 %v810, %v806
        %v928 = vpack.c.bf16 %v812, %v808
        %v929 = vpack.c.bf16 %v924, %v921
        %vm930 = vcmask 130048
        %v932 = vsel %vm930, %v927, 0
        %v935 = vsel %vm930, %v928, 0
        %937 = vmatprep.subr.bf16.mxu0 0
        %938 = vmatpush1.bf16.xpose.msra.mxu0 0
        %939 = vmatprep.subr.bf16.mxu0 0
        %940 = vmatpush1.bf16.xpose.msra.mxu0 0
        %941 = vmatprep.subr.bf16.mxu0 0
        %942 = vmatpush1.bf16.xpose.msra.mxu0 0
        %943 = vmatprep.subr.bf16.mxu0 0
        %944 = vmatpush1.bf16.xpose.msra.mxu0 0
        %945 = vmatprep.subr.bf16.mxu0 0
        %946 = vmatpush1.bf16.xpose.msra.mxu0 0
        %947 = vmatprep.subr.bf16.mxu0 0
        %948 = vmatpush1.bf16.xpose.msra.mxu0 0
        %949 = vmatprep.subr.bf16.mxu0 0
        %950 = vmatpush1.bf16.xpose.msra.mxu0 0
        %951 = vmatprep.subr.bf16.mxu0 0
        %952 = vmatpush1.bf16.xpose.msra.mxu0 %v935
        %953 = vmatprep.subr.bf16.mxu0 0
        %954 = vmatpush2.bf16.xpose.msra.mxu0 0
        %955 = vmatprep.subr.bf16.mxu0 0
        %956 = vmatpush2.bf16.xpose.msra.mxu0 0
        %957 = vmatprep.subr.bf16.mxu0 0
        %958 = vmatpush2.bf16.xpose.msra.mxu0 0
        %959 = vmatprep.subr.bf16.mxu0 0
        %960 = vmatpush2.bf16.xpose.msra.mxu0 0
        %961 = vmatprep.subr.bf16.mxu0 0
        %962 = vmatpush2.bf16.xpose.msra.mxu0 0
        %963 = vmatprep.subr.bf16.mxu0 0
        %964 = vmatpush2.bf16.xpose.msra.mxu0 0
        %965 = vmatprep.subr.bf16.mxu0 0
        %966 = vmatpush2.bf16.xpose.msra.mxu0 0
        %967 = vmatprep.subr.bf16.mxu0 0
        %968 = vmatpush2.bf16.xpose.msra.mxu0 0
        %969 = vmatprep.mubr.bf16.mxu0 0
        %970 = vmatmul.mubr.bf16.gmra.mxu0 %v932
        %v971 = vpop.f32.mrf.mxu0
        %v972 = vadd.f32 0.0, %v971
        %v973 = vpop.f32.mrf.mxu0
        %v974 = vpop.f32.mrf.mxu0
        %v975 = vadd.f32 0.0, %v974
        %v976 = vpop.f32.mrf.mxu0
        %977 = vdwg.mxu0
        %v978 = vsel %vm930, %v972, -inf
        %979 = vmax.xlane.f32.xlu0 %v978
        %v980 = vpop.xlane.xlu0 %979
        %v981 = vsel %vm930, %v975, -inf
        %982 = vmax.xlane.f32.xlu0 %v981
        %v983 = vpop.xlane.xlu0 %982
        %v984 = vsub.f32 %v972, %v980
        %v985 = vsub.f32 %v975, %v983
        %v986 = vmul.f32 %v984, 1.442695
        %v987 = vpow.pop %v986
        %v988 = vmul.f32 %v985, 1.442695
        %v989 = vpow.pop %v988
        %v990 = vsel %vm930, %v987, 0.0
        %991 = vadd.xlane.f32.xlu0 %v990
        %v992 = vpop.xlane.xlu0 %991
        %v993 = vsel %vm930, %v989, 0.0
        %994 = vadd.xlane.f32.xlu0 %v993
        %v995 = vpop.xlane.xlu0 %994
        %v996 = vrcp.pop %v992
        %v997 = vrcp.pop %v995
        %v998 = vmul.f32 %v987, %v996
        %v999 = vmul.f32 %v989, %v997
        %v1000 = vpack.c.bf16 %v999, %v998
        %v1002 = vsel %vm930, %v1000, 0
        %1004 = vmatprep.subr.bf16.mxu0 0
        %1005 = vmatpush1.bf16.msra.mxu0 0
        %1006 = vmatprep.subr.bf16.mxu0 0
        %1007 = vmatpush1.bf16.msra.mxu0 0
        %1008 = vmatprep.subr.bf16.mxu0 0
        %1009 = vmatpush1.bf16.msra.mxu0 0
        %1010 = vmatprep.subr.bf16.mxu0 0
        %1011 = vmatpush1.bf16.msra.mxu0 0
        %1012 = vmatprep.subr.bf16.mxu0 0
        %1013 = vmatpush1.bf16.msra.mxu0 0
        %1014 = vmatprep.subr.bf16.mxu0 0
        %1015 = vmatpush1.bf16.msra.mxu0 0
        %1016 = vmatprep.subr.bf16.mxu0 0
        %1017 = vmatpush1.bf16.msra.mxu0 0
        %1018 = vmatprep.subr.bf16.mxu0 0
        %1019 = vmatpush1.bf16.msra.mxu0 %v929
        %1020 = vmatprep.subr.bf16.mxu0 0
        %1021 = vmatpush2.bf16.msra.mxu0 0
        %1022 = vmatprep.subr.bf16.mxu0 0
        %1023 = vmatpush2.bf16.msra.mxu0 0
        %1024 = vmatprep.subr.bf16.mxu0 0
        %1025 = vmatpush2.bf16.msra.mxu0 0
        %1026 = vmatprep.subr.bf16.mxu0 0
        %1027 = vmatpush2.bf16.msra.mxu0 0
        %1028 = vmatprep.subr.bf16.mxu0 0
        %1029 = vmatpush2.bf16.msra.mxu0 0
        %1030 = vmatprep.subr.bf16.mxu0 0
        %1031 = vmatpush2.bf16.msra.mxu0 0
        %1032 = vmatprep.subr.bf16.mxu0 0
        %1033 = vmatpush2.bf16.msra.mxu0 0
        %1034 = vmatprep.subr.bf16.mxu0 0
        %1035 = vmatpush2.bf16.msra.mxu0 0
        %1036 = vmatprep.mubr.bf16.mxu0 0
        %1037 = vmatmul.mubr.bf16.gmra.mxu0 %v1002
        %v1038 = vpop.f32.mrf.mxu0
        %v1039 = vadd.f32 0.0, %v1038
        %v1040 = vpop.f32.mrf.mxu0
        %v1041 = vpop.f32.mrf.mxu0
        %v1042 = vadd.f32 0.0, %v1041
        %v1043 = vpop.f32.mrf.mxu0
        %1044 = vdwg.mxu0
        %v1045 = vpack.c.bf16 %v1042, %v1039
        %v1046 = vld [vmem:[#allocation10] sm:$0xf]
        %v1047 = vld [vmem:[#allocation10 + $0x4] sm:$0xf]
        %1049 = vrot.lane.b32.xlu0 %v927, 112
        %v1050 = vpop.permute.xlu0 %1049
        %1052 = vrot.lane.b32.xlu0 %v928, 112
        %v1053 = vpop.permute.xlu0 %1052
        %v1055 = vsel %vm930, %v1050, 0
        %v1058 = vsel %vm930, %v1053, 0
        %1060 = vmatprep.subr.bf16.mxu0 0
        %1061 = vmatpush1.bf16.xpose.msra.mxu0 0
        %1062 = vmatprep.subr.bf16.mxu0 0
        %1063 = vmatpush1.bf16.xpose.msra.mxu0 0
        %1064 = vmatprep.subr.bf16.mxu0 0
        %1065 = vmatpush1.bf16.xpose.msra.mxu0 0
        %1066 = vmatprep.subr.bf16.mxu0 0
        %1067 = vmatpush1.bf16.xpose.msra.mxu0 0
        %1068 = vmatprep.subr.bf16.mxu0 0
        %1069 = vmatpush1.bf16.xpose.msra.mxu0 0
        %1070 = vmatprep.subr.bf16.mxu0 0
        %1071 = vmatpush1.bf16.xpose.msra.mxu0 0
        %1072 = vmatprep.subr.bf16.mxu0 0
        %1073 = vmatpush1.bf16.xpose.msra.mxu0 0
        %1074 = vmatprep.subr.bf16.mxu0 0
        %1075 = vmatpush1.bf16.xpose.msra.mxu0 %v1058
        %1076 = vmatprep.subr.bf16.mxu0 0
        %1077 = vmatpush2.bf16.xpose.msra.mxu0 0
        %1078 = vmatprep.subr.bf16.mxu0 0
        %1079 = vmatpush2.bf16.xpose.msra.mxu0 0
        %1080 = vmatprep.subr.bf16.mxu0 0
        %1081 = vmatpush2.bf16.xpose.msra.mxu0 0
        %1082 = vmatprep.subr.bf16.mxu0 0
        %1083 = vmatpush2.bf16.xpose.msra.mxu0 0
        %1084 = vmatprep.subr.bf16.mxu0 0
        %1085 = vmatpush2.bf16.xpose.msra.mxu0 0
        %1086 = vmatprep.subr.bf16.mxu0 0
        %1087 = vmatpush2.bf16.xpose.msra.mxu0 0
        %1088 = vmatprep.subr.bf16.mxu0 0
        %1089 = vmatpush2.bf16.xpose.msra.mxu0 0
        %1090 = vmatprep.subr.bf16.mxu0 0
        %1091 = vmatpush2.bf16.xpose.msra.mxu0 0
        %1092 = vmatprep.mubr.bf16.mxu0 0
        %1093 = vmatmul.mubr.bf16.gmra.mxu0 %v1055
        %v1094 = vpop.f32.mrf.mxu0
        %v1095 = vadd.f32 0.0, %v1094
        %v1096 = vpop.f32.mrf.mxu0
        %v1097 = vpop.f32.mrf.mxu0
        %v1098 = vadd.f32 0.0, %v1097
        %v1099 = vpop.f32.mrf.mxu0
        %1100 = vdwg.mxu0
        %v1101 = vsel %vm930, %v1095, -inf
        %1102 = vmax.xlane.f32.xlu0 %v1101
        %v1103 = vpop.xlane.xlu0 %1102
        %v1104 = vsel %vm930, %v1098, -inf
        %1105 = vmax.xlane.f32.xlu0 %v1104
        %v1106 = vpop.xlane.xlu0 %1105
        %v1107 = vsub.f32 %v1095, %v1103
        %v1108 = vsub.f32 %v1098, %v1106
        %v1109 = vmul.f32 %v1107, 1.442695
        %v1110 = vpow.pop %v1109
        %v1111 = vmul.f32 %v1108, 1.442695
        %v1112 = vpow.pop %v1111
        %v1113 = vsel %vm930, %v1110, 0.0
        %1114 = vadd.xlane.f32.xlu0 %v1113
        %v1115 = vpop.xlane.xlu0 %1114
        %v1116 = vsel %vm930, %v1112, 0.0
        %1117 = vadd.xlane.f32.xlu0 %v1116
        %v1118 = vpop.xlane.xlu0 %1117
        %v1119 = vrcp.pop %v1115
        %v1120 = vrcp.pop %v1118
        %v1121 = vmul.f32 %v1110, %v1119
        %v1122 = vmul.f32 %v1112, %v1120
        %v1123 = vpack.c.bf16 %v1122, %v1121
        %1125 = vrot.lane.b32.xlu0 %v929, 112
        %v1126 = vpop.permute.xlu0 %1125
        %v1129 = vsel %vm930, %v1123, 0
        %1131 = vmatprep.subr.bf16.mxu0 0
        %1132 = vmatpush1.bf16.msra.mxu0 0
        %1133 = vmatprep.subr.bf16.mxu0 0
        %1134 = vmatpush1.bf16.msra.mxu0 0
        %1135 = vmatprep.subr.bf16.mxu0 0
        %1136 = vmatpush1.bf16.msra.mxu0 0
        %1137 = vmatprep.subr.bf16.mxu0 0
        %1138 = vmatpush1.bf16.msra.mxu0 0
        %1139 = vmatprep.subr.bf16.mxu0 0
        %1140 = vmatpush1.bf16.msra.mxu0 0
        %1141 = vmatprep.subr.bf16.mxu0 0
        %1142 = vmatpush1.bf16.msra.mxu0 0
        %1143 = vmatprep.subr.bf16.mxu0 0
        %1144 = vmatpush1.bf16.msra.mxu0 0
        %1145 = vmatprep.subr.bf16.mxu0 0
        %1146 = vmatpush1.bf16.msra.mxu0 %v1126
        %1147 = vmatprep.subr.bf16.mxu0 0
        %1148 = vmatpush2.bf16.msra.mxu0 0
        %1149 = vmatprep.subr.bf16.mxu0 0
        %1150 = vmatpush2.bf16.msra.mxu0 0
        %1151 = vmatprep.subr.bf16.mxu0 0
        %1152 = vmatpush2.bf16.msra.mxu0 0
        %1153 = vmatprep.subr.bf16.mxu0 0
        %1154 = vmatpush2.bf16.msra.mxu0 0
        %1155 = vmatprep.subr.bf16.mxu0 0
        %1156 = vmatpush2.bf16.msra.mxu0 0
        %1157 = vmatprep.subr.bf16.mxu0 0
        %1158 = vmatpush2.bf16.msra.mxu0 0
        %1159 = vmatprep.subr.bf16.mxu0 0
        %1160 = vmatpush2.bf16.msra.mxu0 0
        %1161 = vmatprep.subr.bf16.mxu0 0
        %1162 = vmatpush2.bf16.msra.mxu0 0
        %1163 = vmatprep.mubr.bf16.mxu0 0
        %1164 = vmatmul.mubr.bf16.gmra.mxu0 %v1129
        %v1165 = vpop.f32.mrf.mxu0
        %v1166 = vadd.f32 0.0, %v1165
        %v1167 = vpop.f32.mrf.mxu0
        %v1168 = vpop.f32.mrf.mxu0
        %v1169 = vadd.f32 0.0, %v1168
        %v1170 = vpop.f32.mrf.mxu0
        %1171 = vdwg.mxu0
        %v1172 = vpack.c.bf16 %v1169, %v1166
        %v1173 = vld [vmem:[#allocation10 + $0x8] sm:$0xf]
        %v1174 = vld [vmem:[#allocation10 + $0xc] sm:$0xf]
        %v1177 = vunpack.c.l.b16 %v1173
        %v1178 = vunpack.c.l.b16 %v1174
        %v1179 = vpack.c.b16 %v1178, %v1177
        %v1182 = vsel %vm930, %v1172, 0
        %1184 = vmatprep.subr.bf16.mxu0 0
        %1185 = vmatpush1.bf16.msra.mxu0 0
        %1186 = vmatprep.subr.bf16.mxu0 0
        %1187 = vmatpush1.bf16.msra.mxu0 0
        %1188 = vmatprep.subr.bf16.mxu0 0
        %1189 = vmatpush1.bf16.msra.mxu0 0
        %1190 = vmatprep.subr.bf16.mxu0 0
        %1191 = vmatpush1.bf16.msra.mxu0 0
        %1192 = vmatprep.subr.bf16.mxu0 0
        %1193 = vmatpush1.bf16.msra.mxu0 0
        %1194 = vmatprep.subr.bf16.mxu0 0
        %1195 = vmatpush1.bf16.msra.mxu0 0
        %1196 = vmatprep.subr.bf16.mxu0 0
        %1197 = vmatpush1.bf16.msra.mxu0 0
        %1198 = vmatprep.subr.bf16.mxu0 0
        %1199 = vmatpush1.bf16.msra.mxu0 %v1179
        %1200 = vmatprep.subr.bf16.mxu0 0
        %1201 = vmatpush2.bf16.msra.mxu0 0
        %1202 = vmatprep.subr.bf16.mxu0 0
        %1203 = vmatpush2.bf16.msra.mxu0 0
        %1204 = vmatprep.subr.bf16.mxu0 0
        %1205 = vmatpush2.bf16.msra.mxu0 0
        %1206 = vmatprep.subr.bf16.mxu0 0
        %1207 = vmatpush2.bf16.msra.mxu0 0
        %1208 = vmatprep.subr.bf16.mxu0 0
        %1209 = vmatpush2.bf16.msra.mxu0 0
        %1210 = vmatprep.subr.bf16.mxu0 0
        %1211 = vmatpush2.bf16.msra.mxu0 0
        %1212 = vmatprep.subr.bf16.mxu0 0
        %1213 = vmatpush2.bf16.msra.mxu0 0
        %1214 = vmatprep.subr.bf16.mxu0 0
        %1215 = vmatpush2.bf16.msra.mxu0 0
        %1216 = vmatprep.mubr.bf16.mxu0 0
        %1217 = vmatmul.mubr.bf16.gmra.mxu0 %v1182
        %v1218 = vpop.f32.mrf.mxu0
        %v1219 = vadd.f32 0.0, %v1218
        %v1220 = vpop.f32.mrf.mxu0
        %v1221 = vpop.f32.mrf.mxu0
        %v1222 = vadd.f32 0.0, %v1221
        %v1223 = vpop.f32.mrf.mxu0
        %1224 = vdwg.mxu0
        %v1227 = vunpack.c.l.b16 %v1046
        %v1228 = vunpack.c.l.b16 %v1047
        %v1229 = vpack.c.b16 %v1228, %v1227
        %v1232 = vsel %vm930, %v1045, 0
        %1234 = vmatprep.subr.bf16.mxu0 0
        %1235 = vmatpush1.bf16.msra.mxu0 0
        %1236 = vmatprep.subr.bf16.mxu0 0
        %1237 = vmatpush1.bf16.msra.mxu0 0
        %1238 = vmatprep.subr.bf16.mxu0 0
        %1239 = vmatpush1.bf16.msra.mxu0 0
        %1240 = vmatprep.subr.bf16.mxu0 0
        %1241 = vmatpush1.bf16.msra.mxu0 0
        %1242 = vmatprep.subr.bf16.mxu0 0
        %1243 = vmatpush1.bf16.msra.mxu0 0
        %1244 = vmatprep.subr.bf16.mxu0 0
        %1245 = vmatpush1.bf16.msra.mxu0 0
        %1246 = vmatprep.subr.bf16.mxu0 0
        %1247 = vmatpush1.bf16.msra.mxu0 0
        %1248 = vmatprep.subr.bf16.mxu0 0
        %1249 = vmatpush1.bf16.msra.mxu0 %v1229
        %1250 = vmatprep.subr.bf16.mxu0 0
        %1251 = vmatpush2.bf16.msra.mxu0 0
        %1252 = vmatprep.subr.bf16.mxu0 0
        %1253 = vmatpush2.bf16.msra.mxu0 0
        %1254 = vmatprep.subr.bf16.mxu0 0
        %1255 = vmatpush2.bf16.msra.mxu0 0
        %1256 = vmatprep.subr.bf16.mxu0 0
        %1257 = vmatpush2.bf16.msra.mxu0 0
        %1258 = vmatprep.subr.bf16.mxu0 0
        %1259 = vmatpush2.bf16.msra.mxu0 0
        %1260 = vmatprep.subr.bf16.mxu0 0
        %1261 = vmatpush2.bf16.msra.mxu0 0
        %1262 = vmatprep.subr.bf16.mxu0 0
        %1263 = vmatpush2.bf16.msra.mxu0 0
        %1264 = vmatprep.subr.bf16.mxu0 0
        %1265 = vmatpush2.bf16.msra.mxu0 0
        %1266 = vmatprep.mubr.bf16.mxu0 0
        %1267 = vmatmul.mubr.bf16.gmra.mxu0 %v1232
        %v1268 = vpop.f32.mrf.mxu0
        %v1269 = vadd.f32 %v1219, %v1268
        %v1270 = vpop.f32.mrf.mxu0
        %v1271 = vpop.f32.mrf.mxu0
        %v1272 = vadd.f32 %v1222, %v1271
        %v1273 = vpop.f32.mrf.mxu0
        %1274 = vdwg.mxu0
        %1275 = vrot.lane.b32.xlu0 %v927, 96
        %v1276 = vpop.permute.xlu0 %1275
        %1277 = vrot.lane.b32.xlu0 %v928, 96
        %v1278 = vpop.permute.xlu0 %1277
        %v1280 = vsel %vm930, %v1276, 0
        %v1283 = vsel %vm930, %v1278, 0
        %1285 = vmatprep.subr.bf16.mxu0 0
        %1286 = vmatpush1.bf16.xpose.msra.mxu0 0
        %1287 = vmatprep.subr.bf16.mxu0 0
        %1288 = vmatpush1.bf16.xpose.msra.mxu0 0
        %1289 = vmatprep.subr.bf16.mxu0 0
        %1290 = vmatpush1.bf16.xpose.msra.mxu0 0
        %1291 = vmatprep.subr.bf16.mxu0 0
        %1292 = vmatpush1.bf16.xpose.msra.mxu0 0
        %1293 = vmatprep.subr.bf16.mxu0 0
        %1294 = vmatpush1.bf16.xpose.msra.mxu0 0
        %1295 = vmatprep.subr.bf16.mxu0 0
        %1296 = vmatpush1.bf16.xpose.msra.mxu0 0
        %1297 = vmatprep.subr.bf16.mxu0 0
        %1298 = vmatpush1.bf16.xpose.msra.mxu0 0
        %1299 = vmatprep.subr.bf16.mxu0 0
        %1300 = vmatpush1.bf16.xpose.msra.mxu0 %v1283
        %1301 = vmatprep.subr.bf16.mxu0 0
        %1302 = vmatpush2.bf16.xpose.msra.mxu0 0
        %1303 = vmatprep.subr.bf16.mxu0 0
        %1304 = vmatpush2.bf16.xpose.msra.mxu0 0
        %1305 = vmatprep.subr.bf16.mxu0 0
        %1306 = vmatpush2.bf16.xpose.msra.mxu0 0
        %1307 = vmatprep.subr.bf16.mxu0 0
        %1308 = vmatpush2.bf16.xpose.msra.mxu0 0
        %1309 = vmatprep.subr.bf16.mxu0 0
        %1310 = vmatpush2.bf16.xpose.msra.mxu0 0
        %1311 = vmatprep.subr.bf16.mxu0 0
        %1312 = vmatpush2.bf16.xpose.msra.mxu0 0
        %1313 = vmatprep.subr.bf16.mxu0 0
        %1314 = vmatpush2.bf16.xpose.msra.mxu0 0
        %1315 = vmatprep.subr.bf16.mxu0 0
        %1316 = vmatpush2.bf16.xpose.msra.mxu0 0
        %1317 = vmatprep.mubr.bf16.mxu0 0
        %1318 = vmatmul.mubr.bf16.gmra.mxu0 %v1280
        %v1319 = vpop.f32.mrf.mxu0
        %v1320 = vadd.f32 0.0, %v1319
        %v1321 = vpop.f32.mrf.mxu0
        %v1322 = vpop.f32.mrf.mxu0
        %v1323 = vadd.f32 0.0, %v1322
        %v1324 = vpop.f32.mrf.mxu0
        %1325 = vdwg.mxu0
        %v1326 = vsel %vm930, %v1320, -inf
        %1327 = vmax.xlane.f32.xlu0 %v1326
        %v1328 = vpop.xlane.xlu0 %1327
        %v1329 = vsel %vm930, %v1323, -inf
        %1330 = vmax.xlane.f32.xlu0 %v1329
        %v1331 = vpop.xlane.xlu0 %1330
        %v1332 = vsub.f32 %v1320, %v1328
        %v1333 = vsub.f32 %v1323, %v1331
        %v1334 = vmul.f32 %v1332, 1.442695
        %v1335 = vpow.pop %v1334
        %v1336 = vmul.f32 %v1333, 1.442695
        %v1337 = vpow.pop %v1336
        %v1338 = vsel %vm930, %v1335, 0.0
        %1339 = vadd.xlane.f32.xlu0 %v1338
        %v1340 = vpop.xlane.xlu0 %1339
        %v1341 = vsel %vm930, %v1337, 0.0
        %1342 = vadd.xlane.f32.xlu0 %v1341
        %v1343 = vpop.xlane.xlu0 %1342
        %v1344 = vrcp.pop %v1340
        %v1345 = vrcp.pop %v1343
        %v1346 = vmul.f32 %v1335, %v1344
        %v1347 = vmul.f32 %v1337, %v1345
        %v1348 = vpack.c.bf16 %v1347, %v1346
        %1349 = vrot.lane.b32.xlu0 %v929, 96
        %v1350 = vpop.permute.xlu0 %1349
        %v1353 = vsel %vm930, %v1348, 0
        %1355 = vmatprep.subr.bf16.mxu0 0
        %1356 = vmatpush1.bf16.msra.mxu0 0
        %1357 = vmatprep.subr.bf16.mxu0 0
        %1358 = vmatpush1.bf16.msra.mxu0 0
        %1359 = vmatprep.subr.bf16.mxu0 0
        %1360 = vmatpush1.bf16.msra.mxu0 0
        %1361 = vmatprep.subr.bf16.mxu0 0
        %1362 = vmatpush1.bf16.msra.mxu0 0
        %1363 = vmatprep.subr.bf16.mxu0 0
        %1364 = vmatpush1.bf16.msra.mxu0 0
        %1365 = vmatprep.subr.bf16.mxu0 0
        %1366 = vmatpush1.bf16.msra.mxu0 0
        %1367 = vmatprep.subr.bf16.mxu0 0
        %1368 = vmatpush1.bf16.msra.mxu0 0
        %1369 = vmatprep.subr.bf16.mxu0 0
        %1370 = vmatpush1.bf16.msra.mxu0 %v1350
        %1371 = vmatprep.subr.bf16.mxu0 0
        %1372 = vmatpush2.bf16.msra.mxu0 0
        %1373 = vmatprep.subr.bf16.mxu0 0
        %1374 = vmatpush2.bf16.msra.mxu0 0
        %1375 = vmatprep.subr.bf16.mxu0 0
        %1376 = vmatpush2.bf16.msra.mxu0 0
        %1377 = vmatprep.subr.bf16.mxu0 0
        %1378 = vmatpush2.bf16.msra.mxu0 0
        %1379 = vmatprep.subr.bf16.mxu0 0
        %1380 = vmatpush2.bf16.msra.mxu0 0
        %1381 = vmatprep.subr.bf16.mxu0 0
        %1382 = vmatpush2.bf16.msra.mxu0 0
        %1383 = vmatprep.subr.bf16.mxu0 0
        %1384 = vmatpush2.bf16.msra.mxu0 0
        %1385 = vmatprep.subr.bf16.mxu0 0
        %1386 = vmatpush2.bf16.msra.mxu0 0
        %1387 = vmatprep.mubr.bf16.mxu0 0
        %1388 = vmatmul.mubr.bf16.gmra.mxu0 %v1353
        %v1389 = vpop.f32.mrf.mxu0
        %v1390 = vadd.f32 0.0, %v1389
        %v1391 = vpop.f32.mrf.mxu0
        %v1392 = vpop.f32.mrf.mxu0
        %v1393 = vadd.f32 0.0, %v1392
        %v1394 = vpop.f32.mrf.mxu0
        %1395 = vdwg.mxu0
        %v1396 = vpack.c.bf16 %v1393, %v1390
        %v1397 = vld [vmem:[#allocation10 + $0x10] sm:$0xf]
        %v1398 = vld [vmem:[#allocation10 + $0x14] sm:$0xf]
        %v1401 = vunpack.c.l.b16 %v1397
        %v1402 = vunpack.c.l.b16 %v1398
        %v1403 = vpack.c.b16 %v1402, %v1401
        %v1406 = vsel %vm930, %v1396, 0
        %1408 = vmatprep.subr.bf16.mxu0 0
        %1409 = vmatpush1.bf16.msra.mxu0 0
        %1410 = vmatprep.subr.bf16.mxu0 0
        %1411 = vmatpush1.bf16.msra.mxu0 0
        %1412 = vmatprep.subr.bf16.mxu0 0
        %1413 = vmatpush1.bf16.msra.mxu0 0
        %1414 = vmatprep.subr.bf16.mxu0 0
        %1415 = vmatpush1.bf16.msra.mxu0 0
        %1416 = vmatprep.subr.bf16.mxu0 0
        %1417 = vmatpush1.bf16.msra.mxu0 0
        %1418 = vmatprep.subr.bf16.mxu0 0
        %1419 = vmatpush1.bf16.msra.mxu0 0
        %1420 = vmatprep.subr.bf16.mxu0 0
        %1421 = vmatpush1.bf16.msra.mxu0 0
        %1422 = vmatprep.subr.bf16.mxu0 0
        %1423 = vmatpush1.bf16.msra.mxu0 %v1403
        %1424 = vmatprep.subr.bf16.mxu0 0
        %1425 = vmatpush2.bf16.msra.mxu0 0
        %1426 = vmatprep.subr.bf16.mxu0 0
        %1427 = vmatpush2.bf16.msra.mxu0 0
        %1428 = vmatprep.subr.bf16.mxu0 0
        %1429 = vmatpush2.bf16.msra.mxu0 0
        %1430 = vmatprep.subr.bf16.mxu0 0
        %1431 = vmatpush2.bf16.msra.mxu0 0
        %1432 = vmatprep.subr.bf16.mxu0 0
        %1433 = vmatpush2.bf16.msra.mxu0 0
        %1434 = vmatprep.subr.bf16.mxu0 0
        %1435 = vmatpush2.bf16.msra.mxu0 0
        %1436 = vmatprep.subr.bf16.mxu0 0
        %1437 = vmatpush2.bf16.msra.mxu0 0
        %1438 = vmatprep.subr.bf16.mxu0 0
        %1439 = vmatpush2.bf16.msra.mxu0 0
        %1440 = vmatprep.mubr.bf16.mxu0 0
        %1441 = vmatmul.mubr.bf16.gmra.mxu0 %v1406
        %v1442 = vpop.f32.mrf.mxu0
        %v1443 = vadd.f32 0.0, %v1442
        %v1444 = vpop.f32.mrf.mxu0
        %v1445 = vpop.f32.mrf.mxu0
        %v1446 = vadd.f32 0.0, %v1445
        %v1447 = vpop.f32.mrf.mxu0
        %1448 = vdwg.mxu0
        %v1449 = vadd.f32 %v1269, %v1443
        %v1450 = vadd.f32 %v1272, %v1446
        %1451 = vrot.lane.b32.xlu0 %v927, 80
        %v1452 = vpop.permute.xlu0 %1451
        %1453 = vrot.lane.b32.xlu0 %v928, 80
        %v1454 = vpop.permute.xlu0 %1453
        %v1456 = vsel %vm930, %v1452, 0
        %v1459 = vsel %vm930, %v1454, 0
        %1461 = vmatprep.subr.bf16.mxu0 0
        %1462 = vmatpush1.bf16.xpose.msra.mxu0 0
        %1463 = vmatprep.subr.bf16.mxu0 0
        %1464 = vmatpush1.bf16.xpose.msra.mxu0 0
        %1465 = vmatprep.subr.bf16.mxu0 0
        %1466 = vmatpush1.bf16.xpose.msra.mxu0 0
        %1467 = vmatprep.subr.bf16.mxu0 0
        %1468 = vmatpush1.bf16.xpose.msra.mxu0 0
        %1469 = vmatprep.subr.bf16.mxu0 0
        %1470 = vmatpush1.bf16.xpose.msra.mxu0 0
        %1471 = vmatprep.subr.bf16.mxu0 0
        %1472 = vmatpush1.bf16.xpose.msra.mxu0 0
        %1473 = vmatprep.subr.bf16.mxu0 0
        %1474 = vmatpush1.bf16.xpose.msra.mxu0 0
        %1475 = vmatprep.subr.bf16.mxu0 0
        %1476 = vmatpush1.bf16.xpose.msra.mxu0 %v1459
        %1477 = vmatprep.subr.bf16.mxu0 0
        %1478 = vmatpush2.bf16.xpose.msra.mxu0 0
        %1479 = vmatprep.subr.bf16.mxu0 0
        %1480 = vmatpush2.bf16.xpose.msra.mxu0 0
        %1481 = vmatprep.subr.bf16.mxu0 0
        %1482 = vmatpush2.bf16.xpose.msra.mxu0 0
        %1483 = vmatprep.subr.bf16.mxu0 0
        %1484 = vmatpush2.bf16.xpose.msra.mxu0 0
        %1485 = vmatprep.subr.bf16.mxu0 0
        %1486 = vmatpush2.bf16.xpose.msra.mxu0 0
        %1487 = vmatprep.subr.bf16.mxu0 0
        %1488 = vmatpush2.bf16.xpose.msra.mxu0 0
        %1489 = vmatprep.subr.bf16.mxu0 0
        %1490 = vmatpush2.bf16.xpose.msra.mxu0 0
        %1491 = vmatprep.subr.bf16.mxu0 0
        %1492 = vmatpush2.bf16.xpose.msra.mxu0 0
        %1493 = vmatprep.mubr.bf16.mxu0 0
        %1494 = vmatmul.mubr.bf16.gmra.mxu0 %v1456
        %v1495 = vpop.f32.mrf.mxu0
        %v1496 = vadd.f32 0.0, %v1495
        %v1497 = vpop.f32.mrf.mxu0
        %v1498 = vpop.f32.mrf.mxu0
        %v1499 = vadd.f32 0.0, %v1498
        %v1500 = vpop.f32.mrf.mxu0
        %1501 = vdwg.mxu0
        %v1502 = vsel %vm930, %v1496, -inf
        %1503 = vmax.xlane.f32.xlu0 %v1502
        %v1504 = vpop.xlane.xlu0 %1503
        %v1505 = vsel %vm930, %v1499, -inf
        %1506 = vmax.xlane.f32.xlu0 %v1505
        %v1507 = vpop.xlane.xlu0 %1506
        %v1508 = vsub.f32 %v1496, %v1504
        %v1509 = vsub.f32 %v1499, %v1507
        %v1510 = vmul.f32 %v1508, 1.442695
        %v1511 = vpow.pop %v1510
        %v1512 = vmul.f32 %v1509, 1.442695
        %v1513 = vpow.pop %v1512
        %v1514 = vsel %vm930, %v1511, 0.0
        %1515 = vadd.xlane.f32.xlu0 %v1514
        %v1516 = vpop.xlane.xlu0 %1515
        %v1517 = vsel %vm930, %v1513, 0.0
        %1518 = vadd.xlane.f32.xlu0 %v1517
        %v1519 = vpop.xlane.xlu0 %1518
        %v1520 = vrcp.pop %v1516
        %v1521 = vrcp.pop %v1519
        %v1522 = vmul.f32 %v1511, %v1520
        %v1523 = vmul.f32 %v1513, %v1521
        %v1524 = vpack.c.bf16 %v1523, %v1522
        %1525 = vrot.lane.b32.xlu0 %v929, 80
        %v1526 = vpop.permute.xlu0 %1525
        %v1529 = vsel %vm930, %v1524, 0
        %1531 = vmatprep.subr.bf16.mxu0 0
        %1532 = vmatpush1.bf16.msra.mxu0 0
        %1533 = vmatprep.subr.bf16.mxu0 0
        %1534 = vmatpush1.bf16.msra.mxu0 0
        %1535 = vmatprep.subr.bf16.mxu0 0
        %1536 = vmatpush1.bf16.msra.mxu0 0
        %1537 = vmatprep.subr.bf16.mxu0 0
        %1538 = vmatpush1.bf16.msra.mxu0 0
        %1539 = vmatprep.subr.bf16.mxu0 0
        %1540 = vmatpush1.bf16.msra.mxu0 0
        %1541 = vmatprep.subr.bf16.mxu0 0
        %1542 = vmatpush1.bf16.msra.mxu0 0
        %1543 = vmatprep.subr.bf16.mxu0 0
        %1544 = vmatpush1.bf16.msra.mxu0 0
        %1545 = vmatprep.subr.bf16.mxu0 0
        %1546 = vmatpush1.bf16.msra.mxu0 %v1526
        %1547 = vmatprep.subr.bf16.mxu0 0
        %1548 = vmatpush2.bf16.msra.mxu0 0
        %1549 = vmatprep.subr.bf16.mxu0 0
        %1550 = vmatpush2.bf16.msra.mxu0 0
        %1551 = vmatprep.subr.bf16.mxu0 0
        %1552 = vmatpush2.bf16.msra.mxu0 0
        %1553 = vmatprep.subr.bf16.mxu0 0
        %1554 = vmatpush2.bf16.msra.mxu0 0
        %1555 = vmatprep.subr.bf16.mxu0 0
        %1556 = vmatpush2.bf16.msra.mxu0 0
        %1557 = vmatprep.subr.bf16.mxu0 0
        %1558 = vmatpush2.bf16.msra.mxu0 0
        %1559 = vmatprep.subr.bf16.mxu0 0
        %1560 = vmatpush2.bf16.msra.mxu0 0
        %1561 = vmatprep.subr.bf16.mxu0 0
        %1562 = vmatpush2.bf16.msra.mxu0 0
        %1563 = vmatprep.mubr.bf16.mxu0 0
        %1564 = vmatmul.mubr.bf16.gmra.mxu0 %v1529
        %v1565 = vpop.f32.mrf.mxu0
        %v1566 = vadd.f32 0.0, %v1565
        %v1567 = vpop.f32.mrf.mxu0
        %v1568 = vpop.f32.mrf.mxu0
        %v1569 = vadd.f32 0.0, %v1568
        %v1570 = vpop.f32.mrf.mxu0
        %1571 = vdwg.mxu0
        %v1572 = vpack.c.bf16 %v1569, %v1566
        %v1573 = vld [vmem:[#allocation10 + $0x18] sm:$0xf]
        %v1574 = vld [vmem:[#allocation10 + $0x1c] sm:$0xf]
        %v1577 = vunpack.c.l.b16 %v1573
        %v1578 = vunpack.c.l.b16 %v1574
        %v1579 = vpack.c.b16 %v1578, %v1577
        %v1582 = vsel %vm930, %v1572, 0
        %1584 = vmatprep.subr.bf16.mxu0 0
        %1585 = vmatpush1.bf16.msra.mxu0 0
        %1586 = vmatprep.subr.bf16.mxu0 0
        %1587 = vmatpush1.bf16.msra.mxu0 0
        %1588 = vmatprep.subr.bf16.mxu0 0
        %1589 = vmatpush1.bf16.msra.mxu0 0
        %1590 = vmatprep.subr.bf16.mxu0 0
        %1591 = vmatpush1.bf16.msra.mxu0 0
        %1592 = vmatprep.subr.bf16.mxu0 0
        %1593 = vmatpush1.bf16.msra.mxu0 0
        %1594 = vmatprep.subr.bf16.mxu0 0
        %1595 = vmatpush1.bf16.msra.mxu0 0
        %1596 = vmatprep.subr.bf16.mxu0 0
        %1597 = vmatpush1.bf16.msra.mxu0 0
        %1598 = vmatprep.subr.bf16.mxu0 0
        %1599 = vmatpush1.bf16.msra.mxu0 %v1579
        %1600 = vmatprep.subr.bf16.mxu0 0
        %1601 = vmatpush2.bf16.msra.mxu0 0
        %1602 = vmatprep.subr.bf16.mxu0 0
        %1603 = vmatpush2.bf16.msra.mxu0 0
        %1604 = vmatprep.subr.bf16.mxu0 0
        %1605 = vmatpush2.bf16.msra.mxu0 0
        %1606 = vmatprep.subr.bf16.mxu0 0
        %1607 = vmatpush2.bf16.msra.mxu0 0
        %1608 = vmatprep.subr.bf16.mxu0 0
        %1609 = vmatpush2.bf16.msra.mxu0 0
        %1610 = vmatprep.subr.bf16.mxu0 0
        %1611 = vmatpush2.bf16.msra.mxu0 0
        %1612 = vmatprep.subr.bf16.mxu0 0
        %1613 = vmatpush2.bf16.msra.mxu0 0
        %1614 = vmatprep.subr.bf16.mxu0 0
        %1615 = vmatpush2.bf16.msra.mxu0 0
        %1616 = vmatprep.mubr.bf16.mxu0 0
        %1617 = vmatmul.mubr.bf16.gmra.mxu0 %v1582
        %v1618 = vpop.f32.mrf.mxu0
        %v1619 = vadd.f32 0.0, %v1618
        %v1620 = vpop.f32.mrf.mxu0
        %v1621 = vpop.f32.mrf.mxu0
        %v1622 = vadd.f32 0.0, %v1621
        %v1623 = vpop.f32.mrf.mxu0
        %1624 = vdwg.mxu0
        %v1625 = vadd.f32 %v1449, %v1619
        %v1626 = vadd.f32 %v1450, %v1622
        %1627 = vrot.lane.b32.xlu0 %v927, 64
        %v1628 = vpop.permute.xlu0 %1627
        %1629 = vrot.lane.b32.xlu0 %v928, 64
        %v1630 = vpop.permute.xlu0 %1629
        %v1632 = vsel %vm930, %v1628, 0
        %v1635 = vsel %vm930, %v1630, 0
        %1637 = vmatprep.subr.bf16.mxu0 0
        %1638 = vmatpush1.bf16.xpose.msra.mxu0 0
        %1639 = vmatprep.subr.bf16.mxu0 0
        %1640 = vmatpush1.bf16.xpose.msra.mxu0 0
        %1641 = vmatprep.subr.bf16.mxu0 0
        %1642 = vmatpush1.bf16.xpose.msra.mxu0 0
        %1643 = vmatprep.subr.bf16.mxu0 0
        %1644 = vmatpush1.bf16.xpose.msra.mxu0 0
        %1645 = vmatprep.subr.bf16.mxu0 0
        %1646 = vmatpush1.bf16.xpose.msra.mxu0 0
        %1647 = vmatprep.subr.bf16.mxu0 0
        %1648 = vmatpush1.bf16.xpose.msra.mxu0 0
        %1649 = vmatprep.subr.bf16.mxu0 0
        %1650 = vmatpush1.bf16.xpose.msra.mxu0 0
        %1651 = vmatprep.subr.bf16.mxu0 0
        %1652 = vmatpush1.bf16.xpose.msra.mxu0 %v1635
        %1653 = vmatprep.subr.bf16.mxu0 0
        %1654 = vmatpush2.bf16.xpose.msra.mxu0 0
        %1655 = vmatprep.subr.bf16.mxu0 0
        %1656 = vmatpush2.bf16.xpose.msra.mxu0 0
        %1657 = vmatprep.subr.bf16.mxu0 0
        %1658 = vmatpush2.bf16.xpose.msra.mxu0 0
        %1659 = vmatprep.subr.bf16.mxu0 0
        %1660 = vmatpush2.bf16.xpose.msra.mxu0 0
        %1661 = vmatprep.subr.bf16.mxu0 0
        %1662 = vmatpush2.bf16.xpose.msra.mxu0 0
        %1663 = vmatprep.subr.bf16.mxu0 0
        %1664 = vmatpush2.bf16.xpose.msra.mxu0 0
        %1665 = vmatprep.subr.bf16.mxu0 0
        %1666 = vmatpush2.bf16.xpose.msra.mxu0 0
        %1667 = vmatprep.subr.bf16.mxu0 0
        %1668 = vmatpush2.bf16.xpose.msra.mxu0 0
        %1669 = vmatprep.mubr.bf16.mxu0 0
        %1670 = vmatmul.mubr.bf16.gmra.mxu0 %v1632
        %v1671 = vpop.f32.mrf.mxu0
        %v1672 = vadd.f32 0.0, %v1671
        %v1673 = vpop.f32.mrf.mxu0
        %v1674 = vpop.f32.mrf.mxu0
        %v1675 = vadd.f32 0.0, %v1674
        %v1676 = vpop.f32.mrf.mxu0
        %1677 = vdwg.mxu0
        %v1678 = vsel %vm930, %v1672, -inf
        %1679 = vmax.xlane.f32.xlu0 %v1678
        %v1680 = vpop.xlane.xlu0 %1679
        %v1681 = vsel %vm930, %v1675, -inf
        %1682 = vmax.xlane.f32.xlu0 %v1681
        %v1683 = vpop.xlane.xlu0 %1682
        %v1684 = vsub.f32 %v1672, %v1680
        %v1685 = vsub.f32 %v1675, %v1683
        %v1686 = vmul.f32 %v1684, 1.442695
        %v1687 = vpow.pop %v1686
        %v1688 = vmul.f32 %v1685, 1.442695
        %v1689 = vpow.pop %v1688
        %v1690 = vsel %vm930, %v1687, 0.0
        %1691 = vadd.xlane.f32.xlu0 %v1690
        %v1692 = vpop.xlane.xlu0 %1691
        %v1693 = vsel %vm930, %v1689, 0.0
        %1694 = vadd.xlane.f32.xlu0 %v1693
        %v1695 = vpop.xlane.xlu0 %1694
        %v1696 = vrcp.pop %v1692
        %v1697 = vrcp.pop %v1695
        %v1698 = vmul.f32 %v1687, %v1696
        %v1699 = vmul.f32 %v1689, %v1697
        %v1700 = vpack.c.bf16 %v1699, %v1698
        %1701 = vrot.lane.b32.xlu0 %v929, 64
        %v1702 = vpop.permute.xlu0 %1701
        %v1705 = vsel %vm930, %v1700, 0
        %1707 = vmatprep.subr.bf16.mxu0 0
        %1708 = vmatpush1.bf16.msra.mxu0 0
        %1709 = vmatprep.subr.bf16.mxu0 0
        %1710 = vmatpush1.bf16.msra.mxu0 0
        %1711 = vmatprep.subr.bf16.mxu0 0
        %1712 = vmatpush1.bf16.msra.mxu0 0
        %1713 = vmatprep.subr.bf16.mxu0 0
        %1714 = vmatpush1.bf16.msra.mxu0 0
        %1715 = vmatprep.subr.bf16.mxu0 0
        %1716 = vmatpush1.bf16.msra.mxu0 0
        %1717 = vmatprep.subr.bf16.mxu0 0
        %1718 = vmatpush1.bf16.msra.mxu0 0
        %1719 = vmatprep.subr.bf16.mxu0 0
        %1720 = vmatpush1.bf16.msra.mxu0 0
        %1721 = vmatprep.subr.bf16.mxu0 0
        %1722 = vmatpush1.bf16.msra.mxu0 %v1702
        %1723 = vmatprep.subr.bf16.mxu0 0
        %1724 = vmatpush2.bf16.msra.mxu0 0
        %1725 = vmatprep.subr.bf16.mxu0 0
        %1726 = vmatpush2.bf16.msra.mxu0 0
        %1727 = vmatprep.subr.bf16.mxu0 0
        %1728 = vmatpush2.bf16.msra.mxu0 0
        %1729 = vmatprep.subr.bf16.mxu0 0
        %1730 = vmatpush2.bf16.msra.mxu0 0
        %1731 = vmatprep.subr.bf16.mxu0 0
        %1732 = vmatpush2.bf16.msra.mxu0 0
        %1733 = vmatprep.subr.bf16.mxu0 0
        %1734 = vmatpush2.bf16.msra.mxu0 0
        %1735 = vmatprep.subr.bf16.mxu0 0
        %1736 = vmatpush2.bf16.msra.mxu0 0
        %1737 = vmatprep.subr.bf16.mxu0 0
        %1738 = vmatpush2.bf16.msra.mxu0 0
        %1739 = vmatprep.mubr.bf16.mxu0 0
        %1740 = vmatmul.mubr.bf16.gmra.mxu0 %v1705
        %v1741 = vpop.f32.mrf.mxu0
        %v1742 = vadd.f32 0.0, %v1741
        %v1743 = vpop.f32.mrf.mxu0
        %v1744 = vpop.f32.mrf.mxu0
        %v1745 = vadd.f32 0.0, %v1744
        %v1746 = vpop.f32.mrf.mxu0
        %1747 = vdwg.mxu0
        %v1748 = vpack.c.bf16 %v1745, %v1742
        %v1749 = vld [vmem:[#allocation10 + $0x20] sm:$0xf]
        %v1750 = vld [vmem:[#allocation10 + $0x24] sm:$0xf]
        %v1753 = vunpack.c.l.b16 %v1749
        %v1754 = vunpack.c.l.b16 %v1750
        %v1755 = vpack.c.b16 %v1754, %v1753
        %v1758 = vsel %vm930, %v1748, 0
        %1760 = vmatprep.subr.bf16.mxu0 0
        %1761 = vmatpush1.bf16.msra.mxu0 0
        %1762 = vmatprep.subr.bf16.mxu0 0
        %1763 = vmatpush1.bf16.msra.mxu0 0
        %1764 = vmatprep.subr.bf16.mxu0 0
        %1765 = vmatpush1.bf16.msra.mxu0 0
        %1766 = vmatprep.subr.bf16.mxu0 0
        %1767 = vmatpush1.bf16.msra.mxu0 0
        %1768 = vmatprep.subr.bf16.mxu0 0
        %1769 = vmatpush1.bf16.msra.mxu0 0
        %1770 = vmatprep.subr.bf16.mxu0 0
        %1771 = vmatpush1.bf16.msra.mxu0 0
        %1772 = vmatprep.subr.bf16.mxu0 0
        %1773 = vmatpush1.bf16.msra.mxu0 0
        %1774 = vmatprep.subr.bf16.mxu0 0
        %1775 = vmatpush1.bf16.msra.mxu0 %v1755
        %1776 = vmatprep.subr.bf16.mxu0 0
        %1777 = vmatpush2.bf16.msra.mxu0 0
        %1778 = vmatprep.subr.bf16.mxu0 0
        %1779 = vmatpush2.bf16.msra.mxu0 0
        %1780 = vmatprep.subr.bf16.mxu0 0
        %1781 = vmatpush2.bf16.msra.mxu0 0
        %1782 = vmatprep.subr.bf16.mxu0 0
        %1783 = vmatpush2.bf16.msra.mxu0 0
        %1784 = vmatprep.subr.bf16.mxu0 0
        %1785 = vmatpush2.bf16.msra.mxu0 0
        %1786 = vmatprep.subr.bf16.mxu0 0
        %1787 = vmatpush2.bf16.msra.mxu0 0
        %1788 = vmatprep.subr.bf16.mxu0 0
        %1789 = vmatpush2.bf16.msra.mxu0 0
        %1790 = vmatprep.subr.bf16.mxu0 0
        %1791 = vmatpush2.bf16.msra.mxu0 0
        %1792 = vmatprep.mubr.bf16.mxu0 0
        %1793 = vmatmul.mubr.bf16.gmra.mxu0 %v1758
        %v1794 = vpop.f32.mrf.mxu0
        %v1795 = vadd.f32 0.0, %v1794
        %v1796 = vpop.f32.mrf.mxu0
        %v1797 = vpop.f32.mrf.mxu0
        %v1798 = vadd.f32 0.0, %v1797
        %v1799 = vpop.f32.mrf.mxu0
        %1800 = vdwg.mxu0
        %v1801 = vadd.f32 %v1625, %v1795
        %v1802 = vadd.f32 %v1626, %v1798
        %1803 = vrot.lane.b32.xlu0 %v927, 48
        %v1804 = vpop.permute.xlu0 %1803
        %1805 = vrot.lane.b32.xlu0 %v928, 48
        %v1806 = vpop.permute.xlu0 %1805
        %v1808 = vsel %vm930, %v1804, 0
        %v1811 = vsel %vm930, %v1806, 0
        %1813 = vmatprep.subr.bf16.mxu0 0
        %1814 = vmatpush1.bf16.xpose.msra.mxu0 0
        %1815 = vmatprep.subr.bf16.mxu0 0
        %1816 = vmatpush1.bf16.xpose.msra.mxu0 0
        %1817 = vmatprep.subr.bf16.mxu0 0
        %1818 = vmatpush1.bf16.xpose.msra.mxu0 0
        %1819 = vmatprep.subr.bf16.mxu0 0
        %1820 = vmatpush1.bf16.xpose.msra.mxu0 0
        %1821 = vmatprep.subr.bf16.mxu0 0
        %1822 = vmatpush1.bf16.xpose.msra.mxu0 0
        %1823 = vmatprep.subr.bf16.mxu0 0
        %1824 = vmatpush1.bf16.xpose.msra.mxu0 0
        %1825 = vmatprep.subr.bf16.mxu0 0
        %1826 = vmatpush1.bf16.xpose.msra.mxu0 0
        %1827 = vmatprep.subr.bf16.mxu0 0
        %1828 = vmatpush1.bf16.xpose.msra.mxu0 %v1811
        %1829 = vmatprep.subr.bf16.mxu0 0
        %1830 = vmatpush2.bf16.xpose.msra.mxu0 0
        %1831 = vmatprep.subr.bf16.mxu0 0
        %1832 = vmatpush2.bf16.xpose.msra.mxu0 0
        %1833 = vmatprep.subr.bf16.mxu0 0
        %1834 = vmatpush2.bf16.xpose.msra.mxu0 0
        %1835 = vmatprep.subr.bf16.mxu0 0
        %1836 = vmatpush2.bf16.xpose.msra.mxu0 0
        %1837 = vmatprep.subr.bf16.mxu0 0
        %1838 = vmatpush2.bf16.xpose.msra.mxu0 0
        %1839 = vmatprep.subr.bf16.mxu0 0
        %1840 = vmatpush2.bf16.xpose.msra.mxu0 0
        %1841 = vmatprep.subr.bf16.mxu0 0
        %1842 = vmatpush2.bf16.xpose.msra.mxu0 0
        %1843 = vmatprep.subr.bf16.mxu0 0
        %1844 = vmatpush2.bf16.xpose.msra.mxu0 0
        %1845 = vmatprep.mubr.bf16.mxu0 0
        %1846 = vmatmul.mubr.bf16.gmra.mxu0 %v1808
        %v1847 = vpop.f32.mrf.mxu0
        %v1848 = vadd.f32 0.0, %v1847
        %v1849 = vpop.f32.mrf.mxu0
        %v1850 = vpop.f32.mrf.mxu0
        %v1851 = vadd.f32 0.0, %v1850
        %v1852 = vpop.f32.mrf.mxu0
        %1853 = vdwg.mxu0
        %v1854 = vsel %vm930, %v1848, -inf
        %1855 = vmax.xlane.f32.xlu0 %v1854
        %v1856 = vpop.xlane.xlu0 %1855
        %v1857 = vsel %vm930, %v1851, -inf
        %1858 = vmax.xlane.f32.xlu0 %v1857
        %v1859 = vpop.xlane.xlu0 %1858
        %v1860 = vsub.f32 %v1848, %v1856
        %v1861 = vsub.f32 %v1851, %v1859
        %v1862 = vmul.f32 %v1860, 1.442695
        %v1863 = vpow.pop %v1862
        %v1864 = vmul.f32 %v1861, 1.442695
        %v1865 = vpow.pop %v1864
        %v1866 = vsel %vm930, %v1863, 0.0
        %1867 = vadd.xlane.f32.xlu0 %v1866
        %v1868 = vpop.xlane.xlu0 %1867
        %v1869 = vsel %vm930, %v1865, 0.0
        %1870 = vadd.xlane.f32.xlu0 %v1869
        %v1871 = vpop.xlane.xlu0 %1870
        %v1872 = vrcp.pop %v1868
        %v1873 = vrcp.pop %v1871
        %v1874 = vmul.f32 %v1863, %v1872
        %v1875 = vmul.f32 %v1865, %v1873
        %v1876 = vpack.c.bf16 %v1875, %v1874
        %1877 = vrot.lane.b32.xlu0 %v929, 48
        %v1878 = vpop.permute.xlu0 %1877
        %v1881 = vsel %vm930, %v1876, 0
        %1883 = vmatprep.subr.bf16.mxu0 0
        %1884 = vmatpush1.bf16.msra.mxu0 0
        %1885 = vmatprep.subr.bf16.mxu0 0
        %1886 = vmatpush1.bf16.msra.mxu0 0
        %1887 = vmatprep.subr.bf16.mxu0 0
        %1888 = vmatpush1.bf16.msra.mxu0 0
        %1889 = vmatprep.subr.bf16.mxu0 0
        %1890 = vmatpush1.bf16.msra.mxu0 0
        %1891 = vmatprep.subr.bf16.mxu0 0
        %1892 = vmatpush1.bf16.msra.mxu0 0
        %1893 = vmatprep.subr.bf16.mxu0 0
        %1894 = vmatpush1.bf16.msra.mxu0 0
        %1895 = vmatprep.subr.bf16.mxu0 0
        %1896 = vmatpush1.bf16.msra.mxu0 0
        %1897 = vmatprep.subr.bf16.mxu0 0
        %1898 = vmatpush1.bf16.msra.mxu0 %v1878
        %1899 = vmatprep.subr.bf16.mxu0 0
        %1900 = vmatpush2.bf16.msra.mxu0 0
        %1901 = vmatprep.subr.bf16.mxu0 0
        %1902 = vmatpush2.bf16.msra.mxu0 0
        %1903 = vmatprep.subr.bf16.mxu0 0
        %1904 = vmatpush2.bf16.msra.mxu0 0
        %1905 = vmatprep.subr.bf16.mxu0 0
        %1906 = vmatpush2.bf16.msra.mxu0 0
        %1907 = vmatprep.subr.bf16.mxu0 0
        %1908 = vmatpush2.bf16.msra.mxu0 0
        %1909 = vmatprep.subr.bf16.mxu0 0
        %1910 = vmatpush2.bf16.msra.mxu0 0
        %1911 = vmatprep.subr.bf16.mxu0 0
        %1912 = vmatpush2.bf16.msra.mxu0 0
        %1913 = vmatprep.subr.bf16.mxu0 0
        %1914 = vmatpush2.bf16.msra.mxu0 0
        %1915 = vmatprep.mubr.bf16.mxu0 0
        %1916 = vmatmul.mubr.bf16.gmra.mxu0 %v1881
        %v1917 = vpop.f32.mrf.mxu0
        %v1918 = vadd.f32 0.0, %v1917
        %v1919 = vpop.f32.mrf.mxu0
        %v1920 = vpop.f32.mrf.mxu0
        %v1921 = vadd.f32 0.0, %v1920
        %v1922 = vpop.f32.mrf.mxu0
        %1923 = vdwg.mxu0
        %v1924 = vpack.c.bf16 %v1921, %v1918
        %v1925 = vld [vmem:[#allocation10 + $0x28] sm:$0xf]
        %v1926 = vld [vmem:[#allocation10 + $0x2c] sm:$0xf]
        %v1929 = vunpack.c.l.b16 %v1925
        %v1930 = vunpack.c.l.b16 %v1926
        %v1931 = vpack.c.b16 %v1930, %v1929
        %v1934 = vsel %vm930, %v1924, 0
        %1936 = vmatprep.subr.bf16.mxu0 0
        %1937 = vmatpush1.bf16.msra.mxu0 0
        %1938 = vmatprep.subr.bf16.mxu0 0
        %1939 = vmatpush1.bf16.msra.mxu0 0
        %1940 = vmatprep.subr.bf16.mxu0 0
        %1941 = vmatpush1.bf16.msra.mxu0 0
        %1942 = vmatprep.subr.bf16.mxu0 0
        %1943 = vmatpush1.bf16.msra.mxu0 0
        %1944 = vmatprep.subr.bf16.mxu0 0
        %1945 = vmatpush1.bf16.msra.mxu0 0
        %1946 = vmatprep.subr.bf16.mxu0 0
        %1947 = vmatpush1.bf16.msra.mxu0 0
        %1948 = vmatprep.subr.bf16.mxu0 0
        %1949 = vmatpush1.bf16.msra.mxu0 0
        %1950 = vmatprep.subr.bf16.mxu0 0
        %1951 = vmatpush1.bf16.msra.mxu0 %v1931
        %1952 = vmatprep.subr.bf16.mxu0 0
        %1953 = vmatpush2.bf16.msra.mxu0 0
        %1954 = vmatprep.subr.bf16.mxu0 0
        %1955 = vmatpush2.bf16.msra.mxu0 0
        %1956 = vmatprep.subr.bf16.mxu0 0
        %1957 = vmatpush2.bf16.msra.mxu0 0
        %1958 = vmatprep.subr.bf16.mxu0 0
        %1959 = vmatpush2.bf16.msra.mxu0 0
        %1960 = vmatprep.subr.bf16.mxu0 0
        %1961 = vmatpush2.bf16.msra.mxu0 0
        %1962 = vmatprep.subr.bf16.mxu0 0
        %1963 = vmatpush2.bf16.msra.mxu0 0
        %1964 = vmatprep.subr.bf16.mxu0 0
        %1965 = vmatpush2.bf16.msra.mxu0 0
        %1966 = vmatprep.subr.bf16.mxu0 0
        %1967 = vmatpush2.bf16.msra.mxu0 0
        %1968 = vmatprep.mubr.bf16.mxu0 0
        %1969 = vmatmul.mubr.bf16.gmra.mxu0 %v1934
        %v1970 = vpop.f32.mrf.mxu0
        %v1971 = vadd.f32 0.0, %v1970
        %v1972 = vpop.f32.mrf.mxu0
        %v1973 = vpop.f32.mrf.mxu0
        %v1974 = vadd.f32 0.0, %v1973
        %v1975 = vpop.f32.mrf.mxu0
        %1976 = vdwg.mxu0
        %v1977 = vadd.f32 %v1801, %v1971
        %v1978 = vadd.f32 %v1802, %v1974
        %1979 = vrot.lane.b32.xlu0 %v927, 32
        %v1980 = vpop.permute.xlu0 %1979
        %1981 = vrot.lane.b32.xlu0 %v928, 32
        %v1982 = vpop.permute.xlu0 %1981
        %v1984 = vsel %vm930, %v1980, 0
        %v1987 = vsel %vm930, %v1982, 0
        %1989 = vmatprep.subr.bf16.mxu0 0
        %1990 = vmatpush1.bf16.xpose.msra.mxu0 0
        %1991 = vmatprep.subr.bf16.mxu0 0
        %1992 = vmatpush1.bf16.xpose.msra.mxu0 0
        %1993 = vmatprep.subr.bf16.mxu0 0
        %1994 = vmatpush1.bf16.xpose.msra.mxu0 0
        %1995 = vmatprep.subr.bf16.mxu0 0
        %1996 = vmatpush1.bf16.xpose.msra.mxu0 0
        %1997 = vmatprep.subr.bf16.mxu0 0
        %1998 = vmatpush1.bf16.xpose.msra.mxu0 0
        %1999 = vmatprep.subr.bf16.mxu0 0
        %2000 = vmatpush1.bf16.xpose.msra.mxu0 0
        %2001 = vmatprep.subr.bf16.mxu0 0
        %2002 = vmatpush1.bf16.xpose.msra.mxu0 0
        %2003 = vmatprep.subr.bf16.mxu0 0
        %2004 = vmatpush1.bf16.xpose.msra.mxu0 %v1987
        %2005 = vmatprep.subr.bf16.mxu0 0
        %2006 = vmatpush2.bf16.xpose.msra.mxu0 0
        %2007 = vmatprep.subr.bf16.mxu0 0
        %2008 = vmatpush2.bf16.xpose.msra.mxu0 0
        %2009 = vmatprep.subr.bf16.mxu0 0
        %2010 = vmatpush2.bf16.xpose.msra.mxu0 0
        %2011 = vmatprep.subr.bf16.mxu0 0
        %2012 = vmatpush2.bf16.xpose.msra.mxu0 0
        %2013 = vmatprep.subr.bf16.mxu0 0
        %2014 = vmatpush2.bf16.xpose.msra.mxu0 0
        %2015 = vmatprep.subr.bf16.mxu0 0
        %2016 = vmatpush2.bf16.xpose.msra.mxu0 0
        %2017 = vmatprep.subr.bf16.mxu0 0
        %2018 = vmatpush2.bf16.xpose.msra.mxu0 0
        %2019 = vmatprep.subr.bf16.mxu0 0
        %2020 = vmatpush2.bf16.xpose.msra.mxu0 0
        %2021 = vmatprep.mubr.bf16.mxu0 0
        %2022 = vmatmul.mubr.bf16.gmra.mxu0 %v1984
        %v2023 = vpop.f32.mrf.mxu0
        %v2024 = vadd.f32 0.0, %v2023
        %v2025 = vpop.f32.mrf.mxu0
        %v2026 = vpop.f32.mrf.mxu0
        %v2027 = vadd.f32 0.0, %v2026
        %v2028 = vpop.f32.mrf.mxu0
        %2029 = vdwg.mxu0
        %v2030 = vsel %vm930, %v2024, -inf
        %2031 = vmax.xlane.f32.xlu0 %v2030
        %v2032 = vpop.xlane.xlu0 %2031
        %v2033 = vsel %vm930, %v2027, -inf
        %2034 = vmax.xlane.f32.xlu0 %v2033
        %v2035 = vpop.xlane.xlu0 %2034
        %v2036 = vsub.f32 %v2024, %v2032
        %v2037 = vsub.f32 %v2027, %v2035
        %v2038 = vmul.f32 %v2036, 1.442695
        %v2039 = vpow.pop %v2038
        %v2040 = vmul.f32 %v2037, 1.442695
        %v2041 = vpow.pop %v2040
        %v2042 = vsel %vm930, %v2039, 0.0
        %2043 = vadd.xlane.f32.xlu0 %v2042
        %v2044 = vpop.xlane.xlu0 %2043
        %v2045 = vsel %vm930, %v2041, 0.0
        %2046 = vadd.xlane.f32.xlu0 %v2045
        %v2047 = vpop.xlane.xlu0 %2046
        %v2048 = vrcp.pop %v2044
        %v2049 = vrcp.pop %v2047
        %v2050 = vmul.f32 %v2039, %v2048
        %v2051 = vmul.f32 %v2041, %v2049
        %v2052 = vpack.c.bf16 %v2051, %v2050
        %2053 = vrot.lane.b32.xlu0 %v929, 32
        %v2054 = vpop.permute.xlu0 %2053
        %v2057 = vsel %vm930, %v2052, 0
        %2059 = vmatprep.subr.bf16.mxu0 0
        %2060 = vmatpush1.bf16.msra.mxu0 0
        %2061 = vmatprep.subr.bf16.mxu0 0
        %2062 = vmatpush1.bf16.msra.mxu0 0
        %2063 = vmatprep.subr.bf16.mxu0 0
        %2064 = vmatpush1.bf16.msra.mxu0 0
        %2065 = vmatprep.subr.bf16.mxu0 0
        %2066 = vmatpush1.bf16.msra.mxu0 0
        %2067 = vmatprep.subr.bf16.mxu0 0
        %2068 = vmatpush1.bf16.msra.mxu0 0
        %2069 = vmatprep.subr.bf16.mxu0 0
        %2070 = vmatpush1.bf16.msra.mxu0 0
        %2071 = vmatprep.subr.bf16.mxu0 0
        %2072 = vmatpush1.bf16.msra.mxu0 0
        %2073 = vmatprep.subr.bf16.mxu0 0
        %2074 = vmatpush1.bf16.msra.mxu0 %v2054
        %2075 = vmatprep.subr.bf16.mxu0 0
        %2076 = vmatpush2.bf16.msra.mxu0 0
        %2077 = vmatprep.subr.bf16.mxu0 0
        %2078 = vmatpush2.bf16.msra.mxu0 0
        %2079 = vmatprep.subr.bf16.mxu0 0
        %2080 = vmatpush2.bf16.msra.mxu0 0
        %2081 = vmatprep.subr.bf16.mxu0 0
        %2082 = vmatpush2.bf16.msra.mxu0 0
        %2083 = vmatprep.subr.bf16.mxu0 0
        %2084 = vmatpush2.bf16.msra.mxu0 0
        %2085 = vmatprep.subr.bf16.mxu0 0
        %2086 = vmatpush2.bf16.msra.mxu0 0
        %2087 = vmatprep.subr.bf16.mxu0 0
        %2088 = vmatpush2.bf16.msra.mxu0 0
        %2089 = vmatprep.subr.bf16.mxu0 0
        %2090 = vmatpush2.bf16.msra.mxu0 0
        %2091 = vmatprep.mubr.bf16.mxu0 0
        %2092 = vmatmul.mubr.bf16.gmra.mxu0 %v2057
        %v2093 = vpop.f32.mrf.mxu0
        %v2094 = vadd.f32 0.0, %v2093
        %v2095 = vpop.f32.mrf.mxu0
        %v2096 = vpop.f32.mrf.mxu0
        %v2097 = vadd.f32 0.0, %v2096
        %v2098 = vpop.f32.mrf.mxu0
        %2099 = vdwg.mxu0
        %v2100 = vpack.c.bf16 %v2097, %v2094
        %v2101 = vld [vmem:[#allocation10 + $0x30] sm:$0xf]
        %v2102 = vld [vmem:[#allocation10 + $0x34] sm:$0xf]
        %v2105 = vunpack.c.l.b16 %v2101
        %v2106 = vunpack.c.l.b16 %v2102
        %v2107 = vpack.c.b16 %v2106, %v2105
        %v2110 = vsel %vm930, %v2100, 0
        %2112 = vmatprep.subr.bf16.mxu0 0
        %2113 = vmatpush1.bf16.msra.mxu0 0
        %2114 = vmatprep.subr.bf16.mxu0 0
        %2115 = vmatpush1.bf16.msra.mxu0 0
        %2116 = vmatprep.subr.bf16.mxu0 0
        %2117 = vmatpush1.bf16.msra.mxu0 0
        %2118 = vmatprep.subr.bf16.mxu0 0
        %2119 = vmatpush1.bf16.msra.mxu0 0
        %2120 = vmatprep.subr.bf16.mxu0 0
        %2121 = vmatpush1.bf16.msra.mxu0 0
        %2122 = vmatprep.subr.bf16.mxu0 0
        %2123 = vmatpush1.bf16.msra.mxu0 0
        %2124 = vmatprep.subr.bf16.mxu0 0
        %2125 = vmatpush1.bf16.msra.mxu0 0
        %2126 = vmatprep.subr.bf16.mxu0 0
        %2127 = vmatpush1.bf16.msra.mxu0 %v2107
        %2128 = vmatprep.subr.bf16.mxu0 0
        %2129 = vmatpush2.bf16.msra.mxu0 0
        %2130 = vmatprep.subr.bf16.mxu0 0
        %2131 = vmatpush2.bf16.msra.mxu0 0
        %2132 = vmatprep.subr.bf16.mxu0 0
        %2133 = vmatpush2.bf16.msra.mxu0 0
        %2134 = vmatprep.subr.bf16.mxu0 0
        %2135 = vmatpush2.bf16.msra.mxu0 0
        %2136 = vmatprep.subr.bf16.mxu0 0
        %2137 = vmatpush2.bf16.msra.mxu0 0
        %2138 = vmatprep.subr.bf16.mxu0 0
        %2139 = vmatpush2.bf16.msra.mxu0 0
        %2140 = vmatprep.subr.bf16.mxu0 0
        %2141 = vmatpush2.bf16.msra.mxu0 0
        %2142 = vmatprep.subr.bf16.mxu0 0
        %2143 = vmatpush2.bf16.msra.mxu0 0
        %2144 = vmatprep.mubr.bf16.mxu0 0
        %2145 = vmatmul.mubr.bf16.gmra.mxu0 %v2110
        %v2146 = vpop.f32.mrf.mxu0
        %v2147 = vadd.f32 0.0, %v2146
        %v2148 = vpop.f32.mrf.mxu0
        %v2149 = vpop.f32.mrf.mxu0
        %v2150 = vadd.f32 0.0, %v2149
        %v2151 = vpop.f32.mrf.mxu0
        %2152 = vdwg.mxu0
        %v2153 = vadd.f32 %v1977, %v2147
        %v2154 = vadd.f32 %v1978, %v2150
        %2155 = vrot.lane.b32.xlu0 %v927, 16
        %v2156 = vpop.permute.xlu0 %2155
        %2157 = vrot.lane.b32.xlu0 %v928, 16
        %v2158 = vpop.permute.xlu0 %2157
        %v2160 = vsel %vm930, %v2156, 0
        %v2163 = vsel %vm930, %v2158, 0
        %2165 = vmatprep.subr.bf16.mxu0 0
        %2166 = vmatpush1.bf16.xpose.msra.mxu0 0
        %2167 = vmatprep.subr.bf16.mxu0 0
        %2168 = vmatpush1.bf16.xpose.msra.mxu0 0
        %2169 = vmatprep.subr.bf16.mxu0 0
        %2170 = vmatpush1.bf16.xpose.msra.mxu0 0
        %2171 = vmatprep.subr.bf16.mxu0 0
        %2172 = vmatpush1.bf16.xpose.msra.mxu0 0
        %2173 = vmatprep.subr.bf16.mxu0 0
        %2174 = vmatpush1.bf16.xpose.msra.mxu0 0
        %2175 = vmatprep.subr.bf16.mxu0 0
        %2176 = vmatpush1.bf16.xpose.msra.mxu0 0
        %2177 = vmatprep.subr.bf16.mxu0 0
        %2178 = vmatpush1.bf16.xpose.msra.mxu0 0
        %2179 = vmatprep.subr.bf16.mxu0 0
        %2180 = vmatpush1.bf16.xpose.msra.mxu0 %v2163
        %2181 = vmatprep.subr.bf16.mxu0 0
        %2182 = vmatpush2.bf16.xpose.msra.mxu0 0
        %2183 = vmatprep.subr.bf16.mxu0 0
        %2184 = vmatpush2.bf16.xpose.msra.mxu0 0
        %2185 = vmatprep.subr.bf16.mxu0 0
        %2186 = vmatpush2.bf16.xpose.msra.mxu0 0
        %2187 = vmatprep.subr.bf16.mxu0 0
        %2188 = vmatpush2.bf16.xpose.msra.mxu0 0
        %2189 = vmatprep.subr.bf16.mxu0 0
        %2190 = vmatpush2.bf16.xpose.msra.mxu0 0
        %2191 = vmatprep.subr.bf16.mxu0 0
        %2192 = vmatpush2.bf16.xpose.msra.mxu0 0
        %2193 = vmatprep.subr.bf16.mxu0 0
        %2194 = vmatpush2.bf16.xpose.msra.mxu0 0
        %2195 = vmatprep.subr.bf16.mxu0 0
        %2196 = vmatpush2.bf16.xpose.msra.mxu0 0
        %2197 = vmatprep.mubr.bf16.mxu0 0
        %2198 = vmatmul.mubr.bf16.gmra.mxu0 %v2160
        %v2199 = vpop.f32.mrf.mxu0
        %v2200 = vadd.f32 0.0, %v2199
        %v2201 = vpop.f32.mrf.mxu0
        %v2202 = vpop.f32.mrf.mxu0
        %v2203 = vadd.f32 0.0, %v2202
        %v2204 = vpop.f32.mrf.mxu0
        %2205 = vdwg.mxu0
        %v2206 = vsel %vm930, %v2200, -inf
        %2207 = vmax.xlane.f32.xlu0 %v2206
        %v2208 = vpop.xlane.xlu0 %2207
        %v2209 = vsel %vm930, %v2203, -inf
        %2210 = vmax.xlane.f32.xlu0 %v2209
        %v2211 = vpop.xlane.xlu0 %2210
        %v2212 = vsub.f32 %v2200, %v2208
        %v2213 = vsub.f32 %v2203, %v2211
        %v2214 = vmul.f32 %v2212, 1.442695
        %v2215 = vpow.pop %v2214
        %v2216 = vmul.f32 %v2213, 1.442695
        %v2217 = vpow.pop %v2216
        %v2218 = vsel %vm930, %v2215, 0.0
        %2219 = vadd.xlane.f32.xlu0 %v2218
        %v2220 = vpop.xlane.xlu0 %2219
        %v2221 = vsel %vm930, %v2217, 0.0
        %2222 = vadd.xlane.f32.xlu0 %v2221
        %v2223 = vpop.xlane.xlu0 %2222
        %v2224 = vrcp.pop %v2220
        %v2225 = vrcp.pop %v2223
        %v2226 = vmul.f32 %v2215, %v2224
        %v2227 = vmul.f32 %v2217, %v2225
        %v2228 = vpack.c.bf16 %v2227, %v2226
        %2229 = vrot.lane.b32.xlu0 %v929, 16
        %v2230 = vpop.permute.xlu0 %2229
        %v2233 = vsel %vm930, %v2228, 0
        %2235 = vmatprep.subr.bf16.mxu0 0
        %2236 = vmatpush1.bf16.msra.mxu0 0
        %2237 = vmatprep.subr.bf16.mxu0 0
        %2238 = vmatpush1.bf16.msra.mxu0 0
        %2239 = vmatprep.subr.bf16.mxu0 0
        %2240 = vmatpush1.bf16.msra.mxu0 0
        %2241 = vmatprep.subr.bf16.mxu0 0
        %2242 = vmatpush1.bf16.msra.mxu0 0
        %2243 = vmatprep.subr.bf16.mxu0 0
        %2244 = vmatpush1.bf16.msra.mxu0 0
        %2245 = vmatprep.subr.bf16.mxu0 0
        %2246 = vmatpush1.bf16.msra.mxu0 0
        %2247 = vmatprep.subr.bf16.mxu0 0
        %2248 = vmatpush1.bf16.msra.mxu0 0
        %2249 = vmatprep.subr.bf16.mxu0 0
        %2250 = vmatpush1.bf16.msra.mxu0 %v2230
        %2251 = vmatprep.subr.bf16.mxu0 0
        %2252 = vmatpush2.bf16.msra.mxu0 0
        %2253 = vmatprep.subr.bf16.mxu0 0
        %2254 = vmatpush2.bf16.msra.mxu0 0
        %2255 = vmatprep.subr.bf16.mxu0 0
        %2256 = vmatpush2.bf16.msra.mxu0 0
        %2257 = vmatprep.subr.bf16.mxu0 0
        %2258 = vmatpush2.bf16.msra.mxu0 0
        %2259 = vmatprep.subr.bf16.mxu0 0
        %2260 = vmatpush2.bf16.msra.mxu0 0
        %2261 = vmatprep.subr.bf16.mxu0 0
        %2262 = vmatpush2.bf16.msra.mxu0 0
        %2263 = vmatprep.subr.bf16.mxu0 0
        %2264 = vmatpush2.bf16.msra.mxu0 0
        %2265 = vmatprep.subr.bf16.mxu0 0
        %2266 = vmatpush2.bf16.msra.mxu0 0
        %2267 = vmatprep.mubr.bf16.mxu0 0
        %2268 = vmatmul.mubr.bf16.gmra.mxu0 %v2233
        %v2269 = vpop.f32.mrf.mxu0
        %v2270 = vadd.f32 0.0, %v2269
        %v2271 = vpop.f32.mrf.mxu0
        %v2272 = vpop.f32.mrf.mxu0
        %v2273 = vadd.f32 0.0, %v2272
        %v2274 = vpop.f32.mrf.mxu0
        %2275 = vdwg.mxu0
        %v2276 = vpack.c.bf16 %v2273, %v2270
        %v2277 = vld [vmem:[#allocation10 + $0x38] sm:$0xf]
        %v2278 = vld [vmem:[#allocation10 + $0x3c] sm:$0xf]
        %v2281 = vunpack.c.l.b16 %v2277
        %v2282 = vunpack.c.l.b16 %v2278
        %v2283 = vpack.c.b16 %v2282, %v2281
        %v2286 = vsel %vm930, %v2276, 0
        %2288 = vmatprep.subr.bf16.mxu0 0
        %2289 = vmatpush1.bf16.msra.mxu0 0
        %2290 = vmatprep.subr.bf16.mxu0 0
        %2291 = vmatpush1.bf16.msra.mxu0 0
        %2292 = vmatprep.subr.bf16.mxu0 0
        %2293 = vmatpush1.bf16.msra.mxu0 0
        %2294 = vmatprep.subr.bf16.mxu0 0
        %2295 = vmatpush1.bf16.msra.mxu0 0
        %2296 = vmatprep.subr.bf16.mxu0 0
        %2297 = vmatpush1.bf16.msra.mxu0 0
        %2298 = vmatprep.subr.bf16.mxu0 0
        %2299 = vmatpush1.bf16.msra.mxu0 0
        %2300 = vmatprep.subr.bf16.mxu0 0
        %2301 = vmatpush1.bf16.msra.mxu0 0
        %2302 = vmatprep.subr.bf16.mxu0 0
        %2303 = vmatpush1.bf16.msra.mxu0 %v2283
        %2304 = vmatprep.subr.bf16.mxu0 0
        %2305 = vmatpush2.bf16.msra.mxu0 0
        %2306 = vmatprep.subr.bf16.mxu0 0
        %2307 = vmatpush2.bf16.msra.mxu0 0
        %2308 = vmatprep.subr.bf16.mxu0 0
        %2309 = vmatpush2.bf16.msra.mxu0 0
        %2310 = vmatprep.subr.bf16.mxu0 0
        %2311 = vmatpush2.bf16.msra.mxu0 0
        %2312 = vmatprep.subr.bf16.mxu0 0
        %2313 = vmatpush2.bf16.msra.mxu0 0
        %2314 = vmatprep.subr.bf16.mxu0 0
        %2315 = vmatpush2.bf16.msra.mxu0 0
        %2316 = vmatprep.subr.bf16.mxu0 0
        %2317 = vmatpush2.bf16.msra.mxu0 0
        %2318 = vmatprep.subr.bf16.mxu0 0
        %2319 = vmatpush2.bf16.msra.mxu0 0
        %2320 = vmatprep.mubr.bf16.mxu0 0
        %2321 = vmatmul.mubr.bf16.gmra.mxu0 %v2286
        %v2322 = vpop.f32.mrf.mxu0
        %v2323 = vadd.f32 0.0, %v2322
        %v2324 = vpop.f32.mrf.mxu0
        %v2325 = vpop.f32.mrf.mxu0
        %v2326 = vadd.f32 0.0, %v2325
        %v2327 = vpop.f32.mrf.mxu0
        %2328 = vdwg.mxu0
        %v2329 = vadd.f32 %v2153, %v2323
        %v2330 = vadd.f32 %v2154, %v2326
        %v2331 = vadd.f32 %v656, %v2329
        %v2332 = vadd.f32 %v657, %v2330
        %v2333 = vld [vmem:[%s7] sm:$0x1]
        %v2335 = vlaneseq
        %v2336 = vshrl.u32 %v2335, 7
        %v2337 = vsub.s32 0, %v2336
        %v2338 = vrot.slane %v2333, %v2337
        %v2340 = vadd.f32 %v2331, %v2338
        %v2341 = vadd.f32 %v2332, %v2338
        %2342 = vadd.xlane.f32.xlu0 %v2340
        %v2343 = vpop.xlane.xlu0 %2342
        %2344 = vadd.xlane.f32.xlu0 %v2341
        %v2345 = vpop.xlane.xlu0 %2344
        %v2346 = vrcp.pop 128.0
        %v2347 = vmul.f32 %v2343, %v2346
        %v2348 = vmul.f32 %v2345, %v2346
        %v2349 = vsub.f32 %v2340, %v2347
        %v2350 = vsub.f32 %v2341, %v2348
        %v2351 = vmul.f32 %v2349, %v2349
        %v2352 = vmul.f32 %v2350, %v2350
        %2353 = vadd.xlane.f32.xlu0 %v2351
        %v2354 = vpop.xlane.xlu0 %2353
        %2355 = vadd.xlane.f32.xlu0 %v2352
        %v2356 = vpop.xlane.xlu0 %2355
        %v2357 = vmul.f32 %v2354, %v2346
        %v2358 = vmul.f32 %v2356, %v2346
        %v2359 = vadd.f32 %v2357, 1e-05
        %v2360 = vadd.f32 %v2358, 1e-05
        %v2361 = vrsqrt.pop %v2359
        %v2362 = vrsqrt.pop %v2360
        %v2363 = vmul.f32 %v2349, %v2361
        %v2364 = vmul.f32 %v2350, %v2362
        %v2365 = vld [vmem:[%s8] sm:$0x1]
        %v2367 = vlaneseq
        %v2368 = vshrl.u32 %v2367, 7
        %v2369 = vsub.s32 0, %v2368
        %v2370 = vrot.slane %v2365, %v2369
        %v2372 = vmul.f32 %v2363, %v2370
        %v2373 = vmul.f32 %v2364, %v2370
        %v2374 = vld [vmem:[%s9] sm:$0x1]
        %v2376 = vlaneseq
        %v2377 = vshrl.u32 %v2376, 7
        %v2378 = vsub.s32 0, %v2377
        %v2379 = vrot.slane %v2374, %v2378
        %v2381 = vadd.f32 %v2372, %v2379
        %v2382 = vadd.f32 %v2373, %v2379
        %v2383 = vpack.c.bf16 %v2382, %v2381
        %v2384 = vld [vmem:[#allocation11] sm:$0xff]
        %v2385 = vld [vmem:[#allocation11 + $0x8] sm:$0xff]
        %v2386 = vld [vmem:[#allocation11 + $0x10] sm:$0xff]
        %v2387 = vld [vmem:[#allocation11 + $0x18] sm:$0xff]
        %v2388 = vld [vmem:[#allocation11 + $0x20] sm:$0xff]
        %v2389 = vld [vmem:[#allocation11 + $0x28] sm:$0xff]
        %v2390 = vld [vmem:[#allocation11 + $0x30] sm:$0xff]
        %v2391 = vld [vmem:[#allocation11 + $0x38] sm:$0xff]
        %v2392 = vld [vmem:[#allocation11 + $0x40] sm:$0xff]
        %v2393 = vld [vmem:[#allocation11 + $0x48] sm:$0xff]
        %v2394 = vld [vmem:[#allocation11 + $0x50] sm:$0xff]
        %v2395 = vld [vmem:[#allocation11 + $0x58] sm:$0xff]
        %v2396 = vld [vmem:[#allocation11 + $0x60] sm:$0xff]
        %v2397 = vld [vmem:[#allocation11 + $0x68] sm:$0xff]
        %v2398 = vld [vmem:[#allocation11 + $0x70] sm:$0xff]
        %v2399 = vld [vmem:[#allocation11 + $0x78] sm:$0xff]
        %v2400 = vld [vmem:[%s11] sm:$0x3]
        %v2402 = vlaneseq
        %v2403 = vshrl.u32 %v2402, 7
        %v2404 = vsub.s32 0, %v2403
        %v2405 = vrot.slane %v2400, %v2404
        %v2406 = vlaneseq
        %v2407 = vshrl.u32 %v2406, 7
        %v2408 = vsub.s32 1, %v2407
        %v2409 = vrot.slane %v2400, %v2408
        %v2428 = vunpack.c.l.b16 %v2384
        %v2429 = vunpack.c.h.b16 %v2384
        %v2430 = vunpack.c.l.b16 %v2385
        %v2431 = vunpack.c.h.b16 %v2385
        %v2432 = vunpack.c.l.b16 %v2386
        %v2433 = vunpack.c.h.b16 %v2386
        %v2434 = vunpack.c.l.b16 %v2387
        %v2435 = vunpack.c.h.b16 %v2387
        %v2436 = vunpack.c.l.b16 %v2388
        %v2437 = vunpack.c.h.b16 %v2388
        %v2438 = vunpack.c.l.b16 %v2389
        %v2439 = vunpack.c.h.b16 %v2389
        %v2440 = vunpack.c.l.b16 %v2390
        %v2441 = vunpack.c.h.b16 %v2390
        %v2442 = vunpack.c.l.b16 %v2391
        %v2443 = vunpack.c.h.b16 %v2391
        %v2444 = vunpack.c.l.b16 %v2392
        %v2445 = vunpack.c.h.b16 %v2392
        %v2446 = vunpack.c.l.b16 %v2393
        %v2447 = vunpack.c.h.b16 %v2393
        %v2448 = vunpack.c.l.b16 %v2394
        %v2449 = vunpack.c.h.b16 %v2394
        %v2450 = vunpack.c.l.b16 %v2395
        %v2451 = vunpack.c.h.b16 %v2395
        %v2452 = vunpack.c.l.b16 %v2396
        %v2453 = vunpack.c.h.b16 %v2396
        %v2454 = vunpack.c.l.b16 %v2397
        %v2455 = vunpack.c.h.b16 %v2397
        %v2456 = vunpack.c.l.b16 %v2398
        %v2457 = vunpack.c.h.b16 %v2398
        %v2458 = vunpack.c.l.b16 %v2399
        %v2459 = vunpack.c.h.b16 %v2399
        %v2460 = vpack.c.b16 %v2430, %v2428
        %v2461 = vpack.c.b16 %v2431, %v2429
        %v2462 = vpack.c.b16 %v2434, %v2432
        %v2463 = vpack.c.b16 %v2435, %v2433
        %v2464 = vpack.c.b16 %v2438, %v2436
        %v2465 = vpack.c.b16 %v2439, %v2437
        %v2466 = vpack.c.b16 %v2442, %v2440
        %v2467 = vpack.c.b16 %v2443, %v2441
        %v2468 = vpack.c.b16 %v2446, %v2444
        %v2469 = vpack.c.b16 %v2447, %v2445
        %v2470 = vpack.c.b16 %v2450, %v2448
        %v2471 = vpack.c.b16 %v2451, %v2449
        %v2472 = vpack.c.b16 %v2454, %v2452
        %v2473 = vpack.c.b16 %v2455, %v2453
        %v2474 = vpack.c.b16 %v2458, %v2456
        %v2475 = vpack.c.b16 %v2459, %v2457
        %2492 = vmatprep.subr.bf16.mxu0 %v2475
        %2493 = vmatpush1.bf16.msra.mxu0 %v2474
        %2494 = vmatprep.subr.bf16.mxu0 %v2473
        %2495 = vmatpush1.bf16.msra.mxu0 %v2472
        %2496 = vmatprep.subr.bf16.mxu0 %v2471
        %2497 = vmatpush1.bf16.msra.mxu0 %v2470
        %2498 = vmatprep.subr.bf16.mxu0 %v2469
        %2499 = vmatpush1.bf16.msra.mxu0 %v2468
        %2500 = vmatprep.subr.bf16.mxu0 %v2467
        %2501 = vmatpush1.bf16.msra.mxu0 %v2466
        %2502 = vmatprep.subr.bf16.mxu0 %v2465
        %2503 = vmatpush1.bf16.msra.mxu0 %v2464
        %2504 = vmatprep.subr.bf16.mxu0 %v2463
        %2505 = vmatpush1.bf16.msra.mxu0 %v2462
        %2506 = vmatprep.subr.bf16.mxu0 %v2461
        %2507 = vmatpush1.bf16.msra.mxu0 %v2460
        %2508 = vmatprep.subr.bf16.mxu0 0
        %2509 = vmatpush2.bf16.msra.mxu0 0
        %2510 = vmatprep.subr.bf16.mxu0 0
        %2511 = vmatpush2.bf16.msra.mxu0 0
        %2512 = vmatprep.subr.bf16.mxu0 0
        %2513 = vmatpush2.bf16.msra.mxu0 0
        %2514 = vmatprep.subr.bf16.mxu0 0
        %2515 = vmatpush2.bf16.msra.mxu0 0
        %2516 = vmatprep.subr.bf16.mxu0 0
        %2517 = vmatpush2.bf16.msra.mxu0 0
        %2518 = vmatprep.subr.bf16.mxu0 0
        %2519 = vmatpush2.bf16.msra.mxu0 0
        %2520 = vmatprep.subr.bf16.mxu0 0
        %2521 = vmatpush2.bf16.msra.mxu0 0
        %2522 = vmatprep.subr.bf16.mxu0 0
        %2523 = vmatpush2.bf16.msra.mxu0 0
        %2524 = vmatprep.mubr.bf16.mxu0 0
        %2525 = vmatmul.mubr.bf16.gmra.mxu0 %v2383
        %v2526 = vpop.f32.mrf.mxu0
        %v2527 = vadd.f32 %v2405, %v2526
        %v2528 = vpop.f32.mrf.mxu0
        %v2529 = vadd.f32 %v2409, %v2528
        %v2530 = vpop.f32.mrf.mxu0
        %v2531 = vadd.f32 %v2405, %v2530
        %v2532 = vpop.f32.mrf.mxu0
        %v2533 = vadd.f32 %v2409, %v2532
        %2534 = vdwg.mxu0
        %v2535 = vmax.f32 %v2527, 0.0
        %v2536 = vmax.f32 %v2529, 0.0
        %v2537 = vmax.f32 %v2531, 0.0
        %v2538 = vmax.f32 %v2533, 0.0
        %v2539 = vpack.c.bf16 %v2537, %v2535
        %v2540 = vpack.c.bf16 %v2538, %v2536
        %v2541 = vld [vmem:[#allocation13] sm:$0xf]
        %v2542 = vld [vmem:[#allocation13 + $0x4] sm:$0xf]
        %v2543 = vld [vmem:[#allocation13 + $0x8] sm:$0xf]
        %v2544 = vld [vmem:[#allocation13 + $0xc] sm:$0xf]
        %v2545 = vld [vmem:[#allocation13 + $0x10] sm:$0xf]
        %v2546 = vld [vmem:[#allocation13 + $0x14] sm:$0xf]
        %v2547 = vld [vmem:[#allocation13 + $0x18] sm:$0xf]
        %v2548 = vld [vmem:[#allocation13 + $0x1c] sm:$0xf]
        %v2549 = vld [vmem:[#allocation13 + $0x20] sm:$0xf]
        %v2550 = vld [vmem:[#allocation13 + $0x24] sm:$0xf]
        %v2551 = vld [vmem:[#allocation13 + $0x28] sm:$0xf]
        %v2552 = vld [vmem:[#allocation13 + $0x2c] sm:$0xf]
        %v2553 = vld [vmem:[#allocation13 + $0x30] sm:$0xf]
        %v2554 = vld [vmem:[#allocation13 + $0x34] sm:$0xf]
        %v2555 = vld [vmem:[#allocation13 + $0x38] sm:$0xf]
        %v2556 = vld [vmem:[#allocation13 + $0x3c] sm:$0xf]
        %v2557 = vld [vmem:[#allocation13 + $0x40] sm:$0xf]
        %v2558 = vld [vmem:[#allocation13 + $0x44] sm:$0xf]
        %v2559 = vld [vmem:[#allocation13 + $0x48] sm:$0xf]
        %v2560 = vld [vmem:[#allocation13 + $0x4c] sm:$0xf]
        %v2561 = vld [vmem:[#allocation13 + $0x50] sm:$0xf]
        %v2562 = vld [vmem:[#allocation13 + $0x54] sm:$0xf]
        %v2563 = vld [vmem:[#allocation13 + $0x58] sm:$0xf]
        %v2564 = vld [vmem:[#allocation13 + $0x5c] sm:$0xf]
        %v2565 = vld [vmem:[#allocation13 + $0x60] sm:$0xf]
        %v2566 = vld [vmem:[#allocation13 + $0x64] sm:$0xf]
        %v2567 = vld [vmem:[#allocation13 + $0x68] sm:$0xf]
        %v2568 = vld [vmem:[#allocation13 + $0x6c] sm:$0xf]
        %v2569 = vld [vmem:[#allocation13 + $0x70] sm:$0xf]
        %v2570 = vld [vmem:[#allocation13 + $0x74] sm:$0xf]
        %v2571 = vld [vmem:[#allocation13 + $0x78] sm:$0xf]
        %v2572 = vld [vmem:[#allocation13 + $0x7c] sm:$0xf]
        %v2573 = vld [vmem:[%s13] sm:$0x1]
        %v2575 = vlaneseq
        %v2576 = vshrl.u32 %v2575, 7
        %v2577 = vsub.s32 0, %v2576
        %v2578 = vrot.slane %v2573, %v2577
        %v2612 = vunpack.c.l.b16 %v2541
        %v2613 = vunpack.c.l.b16 %v2542
        %v2614 = vunpack.c.l.b16 %v2543
        %v2615 = vunpack.c.l.b16 %v2544
        %v2616 = vunpack.c.l.b16 %v2545
        %v2617 = vunpack.c.l.b16 %v2546
        %v2618 = vunpack.c.l.b16 %v2547
        %v2619 = vunpack.c.l.b16 %v2548
        %v2620 = vunpack.c.l.b16 %v2549
        %v2621 = vunpack.c.l.b16 %v2550
        %v2622 = vunpack.c.l.b16 %v2551
        %v2623 = vunpack.c.l.b16 %v2552
        %v2624 = vunpack.c.l.b16 %v2553
        %v2625 = vunpack.c.l.b16 %v2554
        %v2626 = vunpack.c.l.b16 %v2555
        %v2627 = vunpack.c.l.b16 %v2556
        %v2628 = vunpack.c.l.b16 %v2557
        %v2629 = vunpack.c.l.b16 %v2558
        %v2630 = vunpack.c.l.b16 %v2559
        %v2631 = vunpack.c.l.b16 %v2560
        %v2632 = vunpack.c.l.b16 %v2561
        %v2633 = vunpack.c.l.b16 %v2562
        %v2634 = vunpack.c.l.b16 %v2563
        %v2635 = vunpack.c.l.b16 %v2564
        %v2636 = vunpack.c.l.b16 %v2565
        %v2637 = vunpack.c.l.b16 %v2566
        %v2638 = vunpack.c.l.b16 %v2567
        %v2639 = vunpack.c.l.b16 %v2568
        %v2640 = vunpack.c.l.b16 %v2569
        %v2641 = vunpack.c.l.b16 %v2570
        %v2642 = vunpack.c.l.b16 %v2571
        %v2643 = vunpack.c.l.b16 %v2572
        %v2644 = vpack.c.b16 %v2613, %v2612
        %v2645 = vpack.c.b16 %v2615, %v2614
        %v2646 = vpack.c.b16 %v2617, %v2616
        %v2647 = vpack.c.b16 %v2619, %v2618
        %v2648 = vpack.c.b16 %v2621, %v2620
        %v2649 = vpack.c.b16 %v2623, %v2622
        %v2650 = vpack.c.b16 %v2625, %v2624
        %v2651 = vpack.c.b16 %v2627, %v2626
        %v2652 = vpack.c.b16 %v2629, %v2628
        %v2653 = vpack.c.b16 %v2631, %v2630
        %v2654 = vpack.c.b16 %v2633, %v2632
        %v2655 = vpack.c.b16 %v2635, %v2634
        %v2656 = vpack.c.b16 %v2637, %v2636
        %v2657 = vpack.c.b16 %v2639, %v2638
        %v2658 = vpack.c.b16 %v2641, %v2640
        %v2659 = vpack.c.b16 %v2643, %v2642
        %2676 = vmatprep.subr.bf16.mxu0 0
        %2677 = vmatpush1.bf16.msra.mxu0 %v2651
        %2678 = vmatprep.subr.bf16.mxu0 0
        %2679 = vmatpush1.bf16.msra.mxu0 %v2650
        %2680 = vmatprep.subr.bf16.mxu0 0
        %2681 = vmatpush1.bf16.msra.mxu0 %v2649
        %2682 = vmatprep.subr.bf16.mxu0 0
        %2683 = vmatpush1.bf16.msra.mxu0 %v2648
        %2684 = vmatprep.subr.bf16.mxu0 0
        %2685 = vmatpush1.bf16.msra.mxu0 %v2647
        %2686 = vmatprep.subr.bf16.mxu0 0
        %2687 = vmatpush1.bf16.msra.mxu0 %v2646
        %2688 = vmatprep.subr.bf16.mxu0 0
        %2689 = vmatpush1.bf16.msra.mxu0 %v2645
        %2690 = vmatprep.subr.bf16.mxu0 0
        %2691 = vmatpush1.bf16.msra.mxu0 %v2644
        %2692 = vmatprep.subr.bf16.mxu0 0
        %2693 = vmatpush2.bf16.msra.mxu0 %v2659
        %2694 = vmatprep.subr.bf16.mxu0 0
        %2695 = vmatpush2.bf16.msra.mxu0 %v2658
        %2696 = vmatprep.subr.bf16.mxu0 0
        %2697 = vmatpush2.bf16.msra.mxu0 %v2657
        %2698 = vmatprep.subr.bf16.mxu0 0
        %2699 = vmatpush2.bf16.msra.mxu0 %v2656
        %2700 = vmatprep.subr.bf16.mxu0 0
        %2701 = vmatpush2.bf16.msra.mxu0 %v2655
        %2702 = vmatprep.subr.bf16.mxu0 0
        %2703 = vmatpush2.bf16.msra.mxu0 %v2654
        %2704 = vmatprep.subr.bf16.mxu0 0
        %2705 = vmatpush2.bf16.msra.mxu0 %v2653
        %2706 = vmatprep.subr.bf16.mxu0 0
        %2707 = vmatpush2.bf16.msra.mxu0 %v2652
        %2708 = vmatprep.mubr.bf16.mxu0 %v2540
        %2709 = vmatmul.mubr.bf16.gmra.mxu0 %v2539
        %v2710 = vpop.f32.mrf.mxu0
        %v2711 = vadd.f32 %v2578, %v2710
        %v2712 = vpop.f32.mrf.mxu0
        %v2713 = vpop.f32.mrf.mxu0
        %v2714 = vadd.f32 %v2578, %v2713
        %v2715 = vpop.f32.mrf.mxu0
        %2716 = vdwg.mxu0
        %v2717 = vadd.f32 %v2381, %v2711
        %v2718 = vadd.f32 %v2382, %v2714
        %2719 = vadd.xlane.f32.xlu0 %v2717
        %v2720 = vpop.xlane.xlu0 %2719
        %2721 = vadd.xlane.f32.xlu0 %v2718
        %v2722 = vpop.xlane.xlu0 %2721
        %v2723 = vmul.f32 %v2720, %v2346
        %v2724 = vmul.f32 %v2722, %v2346
        %v2725 = vsub.f32 %v2717, %v2723
        %v2726 = vsub.f32 %v2718, %v2724
        %v2727 = vmul.f32 %v2725, %v2725
        %v2728 = vmul.f32 %v2726, %v2726
        %2729 = vadd.xlane.f32.xlu0 %v2727
        %v2730 = vpop.xlane.xlu0 %2729
        %2731 = vadd.xlane.f32.xlu0 %v2728
        %v2732 = vpop.xlane.xlu0 %2731
        %v2733 = vmul.f32 %v2730, %v2346
        %v2734 = vmul.f32 %v2732, %v2346
        %v2735 = vadd.f32 %v2733, 1e-05
        %v2736 = vadd.f32 %v2734, 1e-05
        %v2737 = vrsqrt.pop %v2735
        %v2738 = vrsqrt.pop %v2736
        %v2739 = vmul.f32 %v2725, %v2737
        %v2740 = vmul.f32 %v2726, %v2738
        %v2741 = vld [vmem:[%s14] sm:$0x1]
        %v2743 = vlaneseq
        %v2744 = vshrl.u32 %v2743, 7
        %v2745 = vsub.s32 0, %v2744
        %v2746 = vrot.slane %v2741, %v2745
        %v2748 = vmul.f32 %v2739, %v2746
        %v2749 = vmul.f32 %v2740, %v2746
        %v2750 = vld [vmem:[%s15] sm:$0x1]
        %v2752 = vlaneseq
        %v2753 = vshrl.u32 %v2752, 7
        %v2754 = vsub.s32 0, %v2753
        %v2755 = vrot.slane %v2750, %v2754
        %v2757 = vadd.f32 %v2748, %v2755
        %v2758 = vadd.f32 %v2749, %v2755
        %2759 = vst [vmem:[%s651] sm:$0xff] %v2757
        %2760 = vst [vmem:[%s651 + $0x8] sm:$0xff] %v2758
        %s2761 = sand.u32 %s392, 1
        %s2762 = scalar_lea.sflag [#allocation4], %s2761
        %s2763 = sand.u32 %s392, 1
        %s2764 = smul.addr %s2763, 16
        %s2765 = scalar_lea.vmem [#allocation14], %s2764
        // Predicated region
        $region113: #{tpu_custom_call.1} parent=83 // pred_check
          %p2766 = pneg %p402
        $region114: #{tpu_custom_call.1} parent=83 // pred_check_branch
          %2768 = sbr.rel (%p2766) target = $region116
        $region115: #{tpu_custom_call.1} parent=83 // pred_region
          %s2769 = smul.u32 2, %s38
          %s2771 = ssub.s32 256, 256
          %2772 = vsyncadd %s2762, %s2771
          %s2773 = smul.addr %s2769, 128
          %s2774 = scalar_lea.hbm %s16, %s2773
          %s2775 = sshll.u32 %s2765, 4
          %s2776 = int_to_ptr.vmem [resolvable:$true] %s2775
          %2781 = dma.vmem_to_hbm [thread:$0]  %s2776, 256, %s2774, %s2762, 128, 128, 8
        $region116: #{tpu_custom_call.1} parent=83 // pred_fallthru
          _
      $region84: #{tpu_custom_call.1} parent=5 // pred_fallthru
        _
      %p2782 = scmp.le.s32.totalorder 2, %s33
      // Predicated region
      $region117: #{tpu_custom_call.1} parent=5 // pred_check
        %p2783 = pneg %p2782
      $region118: #{tpu_custom_call.1} parent=5 // pred_check_branch
        %2785 = sbr.rel (%p2783) target = $region120
      $region119: #{tpu_custom_call.1} parent=5 // pred_region
        %s2786 = ssub.s32 %s33, 2
        // Predicated region
        $region121: #{tpu_custom_call.1} parent=119 // pred_check
          %p2787 = pneg %p408
        $region122: #{tpu_custom_call.1} parent=119 // pred_check_branch
          %2789 = sbr.rel (%p2787) target = $region124
        $region123: #{tpu_custom_call.1} parent=119 // pred_region
          %s2790 = sand.u32 %s393, 1
          %s2791 = scalar_lea.sflag [#allocation4], %s2790
          %s2792 = sand.u32 %s393, 1
          %s2793 = smul.addr %s2792, 16
          %s2794 = scalar_lea.vmem [#allocation14], %s2793
          %2795 = dma.done %s2791, 256
        $region124: #{tpu_custom_call.1} parent=119 // pred_fallthru
          _
      $region120: #{tpu_custom_call.1} parent=5 // pred_fallthru
        _
    $region6: #{tpu_custom_call.1} parent=1 // loop_footer
      %s37 = sadd.s32 1, %s33
    $region7: #{tpu_custom_call.1} parent=1 // loop_footer_branch
      %32 = sbr.rel target = $region3
    $region8: #{tpu_custom_call.1} parent=1 // loop_exit
      _
    %2796 = vsyncpa [#allocation3], 1
    %s2797 = scalar_lea.sflag [#allocation3], 1
    %2798 = vsyncpa %s2797, 1
    %2799 = vsyncpa [#allocation6], 1
    %s2800 = scalar_lea.sflag [#allocation6], 1
    %2801 = vsyncpa %s2800, 1
    %2802 = vsyncpa [#allocation9], 1
    %2803 = vsyncpa [#allocation12], 1
    %2804 = vsyncpa [#allocation4], 1
    %s2805 = scalar_lea.sflag [#allocation4], 1
    %2806 = vsyncpa %s2805, 1

</llo_original>
